<compile_context>
chip_gen: v5e
topology: v5e:2x2
jax: 0.10.0
libtpu: 0.0.40
codegen_flags: <defaults>
</compile_context>

<pallas_src>
import numpy as np
import jax
import jax.numpy as jnp
from jax.experimental import pallas as pl
from jax.experimental.pallas import tpu as pltpu

EXPANSION = 4
BN_EPS = 1e-5
LANE = 128


def _round_up(x, m):
    return (x + m - 1) // m * m


# ----------------------------------------------------------------------------
# Pallas kernel: the whole bottleneck for one batch element.
# ----------------------------------------------------------------------------
def _make_kernel(H, W, stride, has_downsample, P_p):
    Ho, Wo = H // stride, W // stride
    HW, HWo = H * W, Ho * Wo

    def pool_sum(v):
        # Sum over stride x stride windows (the 1/stride^2 scale is folded
        # into w3 / wd on the host).  Identity when stride == 1.
        if stride == 1:
            return v
        C = v.shape[-1]
        v3 = v.reshape(Ho, stride * W, C)            # row-split, layout no-op
        t = v3[:, 0:W, :]
        for di in range(1, stride):                  # vertical window: aligned
            t = t + v3[:, di * W:(di + 1) * W, :]    # sublane slices (W%8==0)
        t = t.reshape(Ho, Wo, stride, C)             # horizontal decimation
        return jnp.sum(t, axis=2).reshape(HWo, C)

    def kernel(x_ref, w1_ref, b1_ref, w2_ref, b2_ref, w3_ref, b3_ref, *rest):
        if has_downsample:
            wd_ref, bd_ref, o_ref = rest
        else:
            (o_ref,) = rest

        x = x_ref[0]                                 # (HW, Cin_p) bf16

        # ---- conv1 (1x1, BN scale pre-folded) + bias + relu ---------------
        h = jnp.dot(x, w1_ref[...], preferred_element_type=jnp.float32)
        h = jnp.maximum(h + b1_ref[...], 0.0)        # (HW, P_p) f32

        # ---- conv2 (3x3, padding=1) ----------------------------------------
        # 9 taps from static XLU rolls of `h` along the flattened-spatial axis
        # plus boundary masks; each tap is cast to bf16 and contracted
        # immediately: acc += tap @ w2[k].  No hpad copy, no (HW, 9P) concat.
        rows = jax.lax.broadcasted_iota(jnp.int32, (HW, 1), 0)
        col = rows % W
        not_top = rows >= W
        not_bot = rows < HW - W
        not_left = col != 0
        not_right = col != W - 1

        acc = jnp.broadcast_to(b2_ref[...], (HW, P_p))          # f32
        k = 0
        for dy in (-1, 0, 1):
            for dx in (-1, 0, 1):
                off = dy * W + dx
                t = pltpu.roll(h, shift=(-off) % HW, axis=0) if off else h
                mask = None
                if dy == -1:
                    mask = not_top
                elif dy == 1:
                    mask = not_bot
                if dx == -1:
                    mask = not_left if mask is None else mask & not_left
                elif dx == 1:
                    mask = not_right if mask is None else mask & not_right
                if mask is not None:
                    t = jnp.where(mask, t, 0.0)      # mask in f32, then cast
                acc = acc + jnp.dot(t.astype(jnp.bfloat16), w2_ref[k],
                                    preferred_element_type=jnp.float32)
                k += 1
        h2 = jnp.maximum(acc, 0.0)                   # (HW, P_p) f32

        # ---- avgpool (sum form; scale folded into w3 / wd) ------------------
        h2 = pool_sum(h2)                            # (HWo, P_p) f32

        # ---- conv3 (1x1, BN folded); ReLU deferred past the residual --------
        out = jnp.dot(h2.astype(jnp.bfloat16), w3_ref[...],
                      preferred_element_type=jnp.float32)
        out = out + b3_ref[...]                      # (HWo, Cout_p) f32

        # ---- identity / downsample branch -----------------------------------
        if has_downsample:
            xp = pool_sum(x.astype(jnp.float32))     # (HWo, Cin_p) f32
            idn = jnp.dot(xp.astype(jnp.bfloat16), wd_ref[...],
                          preferred_element_type=jnp.float32)
            idn = idn + bd_ref[...]
        else:
            idn = x.astype(jnp.float32)              # stride==1, Cin==Cout

        o_ref[0] = jnp.maximum(out + idn, 0.0).astype(o_ref.dtype)

    return kernel


# ----------------------------------------------------------------------------
# Host-side weight preparation: fold BN scales + pool scale, pad to 128 lanes,
# cast matmul operands to bf16.  Done once per block per network.
# ----------------------------------------------------------------------------
def prepare_block(params, stride):
    f32 = jnp.float32
    planes, inplanes = params['w1'].shape[0], params['w1'].shape[1]
    cout = planes * EXPANSION
    has_downsample = 'wd' in params

    Cin_p = _round_up(inplanes, LANE)
    P_p = _round_up(planes, LANE)
    Cout_p = _round_up(cout, LANE)
    pool_scale = 1.0 / float(stride * stride)

    s1, b1 = params['s1'].astype(f32), params['b1'].astype(f32)
    s2, b2 = params['s2'].astype(f32), params['b2'].astype(f32)
    s3, b3 = params['s3'].astype(f32), params['b3'].astype(f32)

    def pad2(w, r, c):
        return jnp.pad(w, ((0, r - w.shape[0]), (0, c - w.shape[1])))

    w1 = pad2(params['w1'][:, :, 0, 0].astype(f32).T * s1[None, :],
              Cin_p, P_p).astype(jnp.bfloat16)                        # (Cin_p, P_p)
    b1p = jnp.pad(b1, (0, P_p - planes)).reshape(1, P_p)

    # one (P_p, P_p) matrix per 3x3 tap, same (dy, dx) order as the kernel loop
    w2 = jnp.stack(
        [pad2(params['w2'][:, :, dy, dx].astype(f32).T * s2[None, :], P_p, P_p)
         for dy in range(3) for dx in range(3)], axis=0).astype(jnp.bfloat16)
    b2p = jnp.pad(b2, (0, P_p - planes)).reshape(1, P_p)

    w3 = pad2(params['w3'][:, :, 0, 0].astype(f32).T * (s3[None, :] * pool_scale),
              P_p, Cout_p).astype(jnp.bfloat16)                       # (P_p, Cout_p)
    b3p = jnp.pad(b3, (0, Cout_p - cout)).reshape(1, Cout_p)

    prepped = dict(w1=w1, b1=b1p, w2=w2, b2=b2p, w3=w3, b3=b3p,
                   planes=planes, inplanes=inplanes, cout=cout,
                   Cin_p=Cin_p, P_p=P_p, Cout_p=Cout_p,
                   stride=stride, has_downsample=has_downsample)
    if has_downsample:
        sd, bd = params['sd'].astype(f32), params['bd'].astype(f32)
        wd = pad2(params['wd'][:, :, 0, 0].astype(f32).T * (sd[None, :] * pool_scale),
                  Cin_p, Cout_p).astype(jnp.bfloat16)                 # (Cin_p, Cout_p)
        prepped['wd'] = wd
        prepped['bd'] = jnp.pad(bd, (0, Cout_p - cout)).reshape(1, Cout_p)
    return prepped


# ----------------------------------------------------------------------------
# Channels-last core: (N, H*W, Cin_p) bf16  ->  (N, Ho*Wo, Cout_p) bf16.
# A multi-block network chains these without any layout round-trips.
# ----------------------------------------------------------------------------
def bottleneck_block(x_cl, prepped, H, W):
    N = x_cl.shape[0]
    stride = prepped['stride']
    Ho, Wo = H // stride, W // stride
    HW, HWo = H * W, Ho * Wo
    Cin_p, P_p, Cout_p = prepped['Cin_p'], prepped['P_p'], prepped['Cout_p']
    has_downsample = prepped['has_downsample']

    inputs = [x_cl, prepped['w1'], prepped['b1'], prepped['w2'], prepped['b2'],
              prepped['w3'], prepped['b3']]
    if has_downsample:
        inputs += [prepped['wd'], prepped['bd']]

    def const_spec(a):
        nd = a.ndim
        return pl.BlockSpec(a.shape, lambda n, _nd=nd: (0,) * _nd)

    in_specs = [pl.BlockSpec((1, HW, Cin_p), lambda n: (n, 0, 0))]
    in_specs += [const_spec(a) for a in inputs[1:]]

    flops = N * (2 * HW * Cin_p * P_p
                 + 2 * HW * 9 * P_p * P_p
                 + 2 * HWo * P_p * Cout_p
                 + (2 * HWo * Cin_p * Cout_p if has_downsample else 0))
    bytes_accessed = (sum(int(a.size) * a.dtype.itemsize for a in inputs)
                      + N * HWo * Cout_p * 2)

    return pl.pallas_call(
        _make_kernel(H, W, stride, has_downsample, P_p),
        out_shape=jax.ShapeDtypeStruct((N, HWo, Cout_p), jnp.bfloat16),
        grid=(N,),
        in_specs=in_specs,
        out_specs=pl.BlockSpec((1, HWo, Cout_p), lambda n: (n, 0, 0)),
        compiler_params=pltpu.CompilerParams(
            dimension_semantics=("parallel",),
            vmem_limit_bytes=64 * 1024 * 1024),
        cost_estimate=pl.CostEstimate(flops=flops, transcendentals=0,
                                      bytes_accessed=bytes_accessed),
    )(*inputs)


# ----------------------------------------------------------------------------
# Convenience NCHW wrapper (layout conversion once, used by the test).
# ----------------------------------------------------------------------------
def bottleneck_forward(x_nchw, params, stride):
    N, Cin, H, W = x_nchw.shape
    prepped = prepare_block(params, stride)
    assert Cin == prepped['inplanes']
    if not prepped['has_downsample']:
        assert stride == 1 and Cin == prepped['cout'], (
            "Bottleneck without a downsample branch requires stride == 1 and "
            "inplanes == planes * expansion.")
    assert H % stride == 0 and W % stride == 0

    Cin_p = prepped['Cin_p']
    Ho, Wo = H // stride, W // stride

    x = jnp.transpose(x_nchw.astype(jnp.float32), (0, 2, 3, 1)).reshape(N, H * W, Cin)
    x = jnp.pad(x, ((0, 0), (0, 0), (0, Cin_p - Cin))).astype(jnp.bfloat16)

    out = bottleneck_block(x, prepped, H, W)             # (N, HWo, Cout_p) bf16
    out = out[:, :, :prepped['cout']].astype(jnp.float32)
    out = out.reshape(N, Ho, Wo, prepped['cout'])
    return jnp.transpose(out, (0, 3, 1, 2))


# ----------------------------------------------------------------------------
# Deterministic parameter init (shapes from Bottleneck.__init__); BN folded.
# ----------------------------------------------------------------------------
def init_params(key, inplanes, planes, stride):
    cout = planes * EXPANSION
    keys = iter(jax.random.split(key, 24))

    def conv_w(co, ci, kh, kw):
        fan_in = ci * kh * kw
        return (jax.random.normal(next(keys), (co, ci, kh, kw), jnp.float32)
                / np.sqrt(fan_in))

    def bn_fold(c):
        gamma = 1.0 + 0.1 * jax.random.normal(next(keys), (c,), jnp.float32)
        beta = 0.1 * jax.random.normal(next(keys), (c,), jnp.float32)
        mean = 0.1 * jax.random.normal(next(keys), (c,), jnp.float32)
        var = jnp.abs(1.0 + 0.1 * jax.random.normal(next(keys), (c,), jnp.float32))
        scale = gamma / jnp.sqrt(var + BN_EPS)
        return scale, beta - mean * scale

    p = {}
    p['w1'] = conv_w(planes, inplanes, 1, 1)
    p['s1'], p['b1'] = bn_fold(planes)
    p['w2'] = conv_w(planes, planes, 3, 3)
    p['s2'], p['b2'] = bn_fold(planes)
    p['w3'] = conv_w(cout, planes, 1, 1)
    p['s3'], p['b3'] = bn_fold(cout)
    if stride > 1 or inplanes != cout:
        p['wd'] = conv_w(cout, inplanes, 1, 1)
        p['sd'], p['bd'] = bn_fold(cout)
    return p


# ----------------------------------------------------------------------------
# Pure-JAX reference (independent path: lax.conv + reshape-mean pooling).
# ----------------------------------------------------------------------------
def bottleneck_reference(x, params, stride):
    def conv(x, w, pad):
        return jax.lax.conv_general_dilated(
            x, w, window_strides=(1, 1), padding=[(pad, pad), (pad, pad)],
            dimension_numbers=('NCHW', 'OIHW', 'NCHW'),
            precision=jax.lax.Precision.HIGHEST)

    def bn(x, s, b):
        return x * s[None, :, None, None] + b[None, :, None, None]

    def pool(x, s):
        if s == 1:
            return x
        N, C, H, W = x.shape
        return x.reshape(N, C, H // s, s, W // s, s).mean(axis=(3, 5))

    out = jax.nn.relu(bn(conv(x, params['w1'], 0), params['s1'], params['b1']))
    out = jax.nn.relu(bn(conv(out, params['w2'], 1), params['s2'], params['b2']))
    out = pool(out, stride)
    out = bn(conv(out, params['w3'], 0), params['s3'], params['b3'])
    if 'wd' in params:
        identity = bn(conv(pool(x, stride), params['wd'], 0),
                      params['sd'], params['bd'])
    else:
        identity = x
    return jax.nn.relu(out + identity)


if __name__ == "__main__":
    key = jax.random.PRNGKey(0)
    kx, kp = jax.random.split(key)

    # Case 1: stride-2 block (exercises avgpool + downsample branch).
    N, inplanes, H, W = 2, 4, 16, 16
    planes, stride = 8, 2
    x = jax.random.normal(kx, (N, inplanes, H, W), jnp.float32)
    params = init_params(kp, inplanes, planes, stride)

    out = jax.block_until_ready(bottleneck_forward(x, params, stride))
    assert out.shape == (N, planes * EXPANSION, H // stride, W // stride)
    ref = bottleneck_reference(x, params, stride)
    np.testing.assert_allclose(np.asarray(out), np.asarray(ref),
                               atol=3e-2, rtol=3e-2)   # bf16 MXU/IO tolerance

    # Case 2: stride-1 identity block (no downsample, pooling skipped).
    kx2, kp2 = jax.random.split(kp)
    inplanes2, planes2, stride2 = 32, 8, 1
    x2 = jax.random.normal(kx2, (N, inplanes2, H, W), jnp.float32)
    params2 = init_params(kp2, inplanes2, planes2, stride2)

    out2 = jax.block_until_ready(bottleneck_forward(x2, params2, stride2))
    assert out2.shape == (N, planes2 * EXPANSION, H, W)
    ref2 = bottleneck_reference(x2, params2, stride2)
    np.testing.assert_allclose(np.asarray(out2), np.asarray(ref2),
                               atol=3e-2, rtol=3e-2)

    print("KERNEL_OK")
</pallas_src>

<mosaic_0001>
module attributes {stable_mosaic.version = 11 : i64} {
  func.func @kernel(%arg0: i32, %arg1: memref<1x256x128xbf16, #tpu.memory_space<vmem>>, %arg2: memref<128x128xbf16, #tpu.memory_space<vmem>>, %arg3: memref<1x128xf32, #tpu.memory_space<vmem>>, %arg4: memref<9x128x128xbf16, #tpu.memory_space<vmem>>, %arg5: memref<1x128xf32, #tpu.memory_space<vmem>>, %arg6: memref<128x128xbf16, #tpu.memory_space<vmem>>, %arg7: memref<1x128xf32, #tpu.memory_space<vmem>>, %arg8: memref<128x128xbf16, #tpu.memory_space<vmem>>, %arg9: memref<1x128xf32, #tpu.memory_space<vmem>>, %arg10: memref<1x64x128xbf16, #tpu.memory_space<vmem>>) attributes {dimension_semantics = [#tpu.dimension_semantics<parallel>], iteration_bounds = array<i64: 2>, scalar_prefetch = 0 : i64, scratch_operands = 0 : i64, tpu.core_type = #tpu.core_type<tc>, window_params = [{transform_indices = @transform_0, window_bounds = array<i64: 1, 256, 128>}, {pipeline_mode = #tpu.pipeline_mode<synchronous>, transform_indices = @transform_1, window_bounds = array<i64: 128, 128>}, {pipeline_mode = #tpu.pipeline_mode<synchronous>, transform_indices = @transform_2, window_bounds = array<i64: 1, 128>}, {pipeline_mode = #tpu.pipeline_mode<synchronous>, transform_indices = @transform_3, window_bounds = array<i64: 9, 128, 128>}, {pipeline_mode = #tpu.pipeline_mode<synchronous>, transform_indices = @transform_4, window_bounds = array<i64: 1, 128>}, {pipeline_mode = #tpu.pipeline_mode<synchronous>, transform_indices = @transform_5, window_bounds = array<i64: 128, 128>}, {pipeline_mode = #tpu.pipeline_mode<synchronous>, transform_indices = @transform_6, window_bounds = array<i64: 1, 128>}, {pipeline_mode = #tpu.pipeline_mode<synchronous>, transform_indices = @transform_7, window_bounds = array<i64: 128, 128>}, {pipeline_mode = #tpu.pipeline_mode<synchronous>, transform_indices = @transform_8, window_bounds = array<i64: 1, 128>}, {transform_indices = @transform_9, window_bounds = array<i64: 1, 64, 128>}]} {
    %c0 = arith.constant 0 : index
    %c0_0 = arith.constant 0 : index
    %c0_1 = arith.constant 0 : index
    %0 = vector.load %arg1[%c0, %c0_0, %c0_1] : memref<1x256x128xbf16, #tpu.memory_space<vmem>>, vector<1x256x128xbf16>
    %1 = vector.shape_cast %0 : vector<1x256x128xbf16> to vector<256x128xbf16>
    %c0_2 = arith.constant 0 : index
    %c0_3 = arith.constant 0 : index
    %2 = vector.load %arg2[%c0_2, %c0_3] : memref<128x128xbf16, #tpu.memory_space<vmem>>, vector<128x128xbf16>
    %cst = arith.constant dense<0.000000e+00> : vector<256x128xf32>
    %3 = tpu.matmul %1, %2, %cst {dimension_numbers = #tpu.dot_dimension_numbers<[1], [0], [0], [1], [0, 0, 1, 1], [], []>} : vector<256x128xbf16>, vector<128x128xbf16>, vector<256x128xf32> -> vector<256x128xf32>
    %c0_4 = arith.constant 0 : index
    %c0_5 = arith.constant 0 : index
    %4 = vector.load %arg3[%c0_4, %c0_5] : memref<1x128xf32, #tpu.memory_space<vmem>>, vector<1x128xf32>
    %5 = vector.broadcast %4 : vector<1x128xf32> to vector<256x128xf32>
    %6 = arith.addf %3, %5 : vector<256x128xf32>
    %cst_6 = arith.constant 0.000000e+00 : f32
    %7 = vector.broadcast %cst_6 : f32 to vector<256x128xf32>
    %8 = arith.maximumf %6, %7 : vector<256x128xf32>
    %9 = tpu.iota {dimensions = array<i32: 0>} : vector<256x1xi32>
    %c16_i32 = arith.constant 16 : i32
    %c0_i32 = arith.constant 0 : i32
    %10 = arith.cmpi eq, %c16_i32, %c0_i32 : i32
    %c1_i32 = arith.constant 1 : i32
    %11 = arith.select %10, %c1_i32, %c16_i32 : i32
    %12 = vector.broadcast %11 : i32 to vector<256x1xi32>
    %13 = arith.remsi %9, %12 : vector<256x1xi32>
    %c0_i32_7 = arith.constant 0 : i32
    %14 = vector.broadcast %c0_i32_7 : i32 to vector<256x1xi32>
    %15 = arith.cmpi ne, %13, %14 : vector<256x1xi32>
    %c0_i32_8 = arith.constant 0 : i32
    %16 = vector.broadcast %c0_i32_8 : i32 to vector<256x1xi32>
    %17 = arith.cmpi slt, %13, %16 : vector<256x1xi32>
    %c0_i32_9 = arith.constant 0 : i32
    %18 = arith.cmpi slt, %11, %c0_i32_9 : i32
    %19 = vector.broadcast %18 : i1 to vector<256x1xi1>
    %20 = vector.broadcast %19 : vector<256x1xi1> to vector<256x1xi1>
    %21 = arith.xori %17, %20 : vector<256x1xi1>
    %22 = arith.andi %21, %15 : vector<256x1xi1>
    %23 = vector.broadcast %11 : i32 to vector<256x1xi32>
    %24 = arith.addi %13, %23 : vector<256x1xi32>
    %25 = arith.select %22, %24, %13 : vector<256x1xi1>, vector<256x1xi32>
    %c16_i32_10 = arith.constant 16 : i32
    %26 = vector.broadcast %c16_i32_10 : i32 to vector<256x1xi32>
    %27 = arith.cmpi sge, %9, %26 : vector<256x1xi32>
    %c240_i32 = arith.constant 240 : i32
    %28 = vector.broadcast %c240_i32 : i32 to vector<256x1xi32>
    %29 = arith.cmpi slt, %9, %28 : vector<256x1xi32>
    %c0_i32_11 = arith.constant 0 : i32
    %30 = vector.broadcast %c0_i32_11 : i32 to vector<256x1xi32>
    %31 = arith.cmpi ne, %25, %30 : vector<256x1xi32>
    %c15_i32 = arith.constant 15 : i32
    %32 = vector.broadcast %c15_i32 : i32 to vector<256x1xi32>
    %33 = arith.cmpi ne, %25, %32 : vector<256x1xi32>
    %c0_12 = arith.constant 0 : index
    %c0_13 = arith.constant 0 : index
    %34 = vector.load %arg5[%c0_12, %c0_13] : memref<1x128xf32, #tpu.memory_space<vmem>>, vector<1x128xf32>
    %35 = vector.shape_cast %34 : vector<1x128xf32> to vector<1x128xf32>
    %36 = vector.broadcast %35 : vector<1x128xf32> to vector<256x128xf32>
    %c17_i32 = arith.constant 17 : i32
    %37 = tpu.dynamic_rotate %8 by %c17_i32 dim 0 : vector<256x128xf32>, i32 -> vector<256x128xf32>
    %38 = arith.andi %27, %31 : vector<256x1xi1>
    %cst_14 = arith.constant 0.000000e+00 : f32
    %39 = vector.shape_cast %38 : vector<256x1xi1> to vector<256x1xi1>
    %40 = vector.broadcast %39 : vector<256x1xi1> to vector<256x128xi1>
    %41 = vector.broadcast %cst_14 : f32 to vector<256x128xf32>
    %42 = arith.select %40, %37, %41 : vector<256x128xi1>, vector<256x128xf32>
    %43 = arith.truncf %42 : vector<256x128xf32> to vector<256x128xbf16>
    %c0_15 = arith.constant 0 : index
    %c0_16 = arith.constant 0 : index
    %c0_17 = arith.constant 0 : index
    %44 = vector.load %arg4[%c0_15, %c0_16, %c0_17] : memref<9x128x128xbf16, #tpu.memory_space<vmem>>, vector<1x128x128xbf16>
    %45 = vector.shape_cast %44 : vector<1x128x128xbf16> to vector<128x128xbf16>
    %cst_18 = arith.constant dense<0.000000e+00> : vector<256x128xf32>
    %46 = tpu.matmul %43, %45, %cst_18 {dimension_numbers = #tpu.dot_dimension_numbers<[1], [0], [0], [1], [0, 0, 1, 1], [], []>} : vector<256x128xbf16>, vector<128x128xbf16>, vector<256x128xf32> -> vector<256x128xf32>
    %47 = arith.addf %36, %46 : vector<256x128xf32>
    %c16_i32_19 = arith.constant 16 : i32
    %48 = tpu.dynamic_rotate %8 by %c16_i32_19 dim 0 : vector<256x128xf32>, i32 -> vector<256x128xf32>
    %cst_20 = arith.constant 0.000000e+00 : f32
    %49 = vector.shape_cast %27 : vector<256x1xi1> to vector<256x1xi1>
    %50 = vector.broadcast %49 : vector<256x1xi1> to vector<256x128xi1>
    %51 = vector.broadcast %cst_20 : f32 to vector<256x128xf32>
    %52 = arith.select %50, %48, %51 : vector<256x128xi1>, vector<256x128xf32>
    %53 = arith.truncf %52 : vector<256x128xf32> to vector<256x128xbf16>
    %c1 = arith.constant 1 : index
    %c0_21 = arith.constant 0 : index
    %c0_22 = arith.constant 0 : index
    %54 = vector.load %arg4[%c1, %c0_21, %c0_22] : memref<9x128x128xbf16, #tpu.memory_space<vmem>>, vector<1x128x128xbf16>
    %55 = vector.shape_cast %54 : vector<1x128x128xbf16> to vector<128x128xbf16>
    %cst_23 = arith.constant dense<0.000000e+00> : vector<256x128xf32>
    %56 = tpu.matmul %53, %55, %cst_23 {dimension_numbers = #tpu.dot_dimension_numbers<[1], [0], [0], [1], [0, 0, 1, 1], [], []>} : vector<256x128xbf16>, vector<128x128xbf16>, vector<256x128xf32> -> vector<256x128xf32>
    %57 = arith.addf %47, %56 : vector<256x128xf32>
    %c15_i32_24 = arith.constant 15 : i32
    %58 = tpu.dynamic_rotate %8 by %c15_i32_24 dim 0 : vector<256x128xf32>, i32 -> vector<256x128xf32>
    %59 = arith.andi %27, %33 : vector<256x1xi1>
    %cst_25 = arith.constant 0.000000e+00 : f32
    %60 = vector.shape_cast %59 : vector<256x1xi1> to vector<256x1xi1>
    %61 = vector.broadcast %60 : vector<256x1xi1> to vector<256x128xi1>
    %62 = vector.broadcast %cst_25 : f32 to vector<256x128xf32>
    %63 = arith.select %61, %58, %62 : vector<256x128xi1>, vector<256x128xf32>
    %64 = arith.truncf %63 : vector<256x128xf32> to vector<256x128xbf16>
    %c2 = arith.constant 2 : index
    %c0_26 = arith.constant 0 : index
    %c0_27 = arith.constant 0 : index
    %65 = vector.load %arg4[%c2, %c0_26, %c0_27] : memref<9x128x128xbf16, #tpu.memory_space<vmem>>, vector<1x128x128xbf16>
    %66 = vector.shape_cast %65 : vector<1x128x128xbf16> to vector<128x128xbf16>
    %cst_28 = arith.constant dense<0.000000e+00> : vector<256x128xf32>
    %67 = tpu.matmul %64, %66, %cst_28 {dimension_numbers = #tpu.dot_dimension_numbers<[1], [0], [0], [1], [0, 0, 1, 1], [], []>} : vector<256x128xbf16>, vector<128x128xbf16>, vector<256x128xf32> -> vector<256x128xf32>
    %68 = arith.addf %57, %67 : vector<256x128xf32>
    %c1_i32_29 = arith.constant 1 : i32
    %69 = tpu.dynamic_rotate %8 by %c1_i32_29 dim 0 : vector<256x128xf32>, i32 -> vector<256x128xf32>
    %cst_30 = arith.constant 0.000000e+00 : f32
    %70 = vector.shape_cast %31 : vector<256x1xi1> to vector<256x1xi1>
    %71 = vector.broadcast %70 : vector<256x1xi1> to vector<256x128xi1>
    %72 = vector.broadcast %cst_30 : f32 to vector<256x128xf32>
    %73 = arith.select %71, %69, %72 : vector<256x128xi1>, vector<256x128xf32>
    %74 = arith.truncf %73 : vector<256x128xf32> to vector<256x128xbf16>
    %c3 = arith.constant 3 : index
    %c0_31 = arith.constant 0 : index
    %c0_32 = arith.constant 0 : index
    %75 = vector.load %arg4[%c3, %c0_31, %c0_32] : memref<9x128x128xbf16, #tpu.memory_space<vmem>>, vector<1x128x128xbf16>
    %76 = vector.shape_cast %75 : vector<1x128x128xbf16> to vector<128x128xbf16>
    %cst_33 = arith.constant dense<0.000000e+00> : vector<256x128xf32>
    %77 = tpu.matmul %74, %76, %cst_33 {dimension_numbers = #tpu.dot_dimension_numbers<[1], [0], [0], [1], [0, 0, 1, 1], [], []>} : vector<256x128xbf16>, vector<128x128xbf16>, vector<256x128xf32> -> vector<256x128xf32>
    %78 = arith.addf %68, %77 : vector<256x128xf32>
    %79 = arith.truncf %8 : vector<256x128xf32> to vector<256x128xbf16>
    %c4 = arith.constant 4 : index
    %c0_34 = arith.constant 0 : index
    %c0_35 = arith.constant 0 : index
    %80 = vector.load %arg4[%c4, %c0_34, %c0_35] : memref<9x128x128xbf16, #tpu.memory_space<vmem>>, vector<1x128x128xbf16>
    %81 = vector.shape_cast %80 : vector<1x128x128xbf16> to vector<128x128xbf16>
    %cst_36 = arith.constant dense<0.000000e+00> : vector<256x128xf32>
    %82 = tpu.matmul %79, %81, %cst_36 {dimension_numbers = #tpu.dot_dimension_numbers<[1], [0], [0], [1], [0, 0, 1, 1], [], []>} : vector<256x128xbf16>, vector<128x128xbf16>, vector<256x128xf32> -> vector<256x128xf32>
    %83 = arith.addf %78, %82 : vector<256x128xf32>
    %c255_i32 = arith.constant 255 : i32
    %84 = tpu.dynamic_rotate %8 by %c255_i32 dim 0 : vector<256x128xf32>, i32 -> vector<256x128xf32>
    %cst_37 = arith.constant 0.000000e+00 : f32
    %85 = vector.shape_cast %33 : vector<256x1xi1> to vector<256x1xi1>
    %86 = vector.broadcast %85 : vector<256x1xi1> to vector<256x128xi1>
    %87 = vector.broadcast %cst_37 : f32 to vector<256x128xf32>
    %88 = arith.select %86, %84, %87 : vector<256x128xi1>, vector<256x128xf32>
    %89 = arith.truncf %88 : vector<256x128xf32> to vector<256x128xbf16>
    %c5 = arith.constant 5 : index
    %c0_38 = arith.constant 0 : index
    %c0_39 = arith.constant 0 : index
    %90 = vector.load %arg4[%c5, %c0_38, %c0_39] : memref<9x128x128xbf16, #tpu.memory_space<vmem>>, vector<1x128x128xbf16>
    %91 = vector.shape_cast %90 : vector<1x128x128xbf16> to vector<128x128xbf16>
    %cst_40 = arith.constant dense<0.000000e+00> : vector<256x128xf32>
    %92 = tpu.matmul %89, %91, %cst_40 {dimension_numbers = #tpu.dot_dimension_numbers<[1], [0], [0], [1], [0, 0, 1, 1], [], []>} : vector<256x128xbf16>, vector<128x128xbf16>, vector<256x128xf32> -> vector<256x128xf32>
    %93 = arith.addf %83, %92 : vector<256x128xf32>
    %c241_i32 = arith.constant 241 : i32
    %94 = tpu.dynamic_rotate %8 by %c241_i32 dim 0 : vector<256x128xf32>, i32 -> vector<256x128xf32>
    %95 = arith.andi %29, %31 : vector<256x1xi1>
    %cst_41 = arith.constant 0.000000e+00 : f32
    %96 = vector.shape_cast %95 : vector<256x1xi1> to vector<256x1xi1>
    %97 = vector.broadcast %96 : vector<256x1xi1> to vector<256x128xi1>
    %98 = vector.broadcast %cst_41 : f32 to vector<256x128xf32>
    %99 = arith.select %97, %94, %98 : vector<256x128xi1>, vector<256x128xf32>
    %100 = arith.truncf %99 : vector<256x128xf32> to vector<256x128xbf16>
    %c6 = arith.constant 6 : index
    %c0_42 = arith.constant 0 : index
    %c0_43 = arith.constant 0 : index
    %101 = vector.load %arg4[%c6, %c0_42, %c0_43] : memref<9x128x128xbf16, #tpu.memory_space<vmem>>, vector<1x128x128xbf16>
    %102 = vector.shape_cast %101 : vector<1x128x128xbf16> to vector<128x128xbf16>
    %cst_44 = arith.constant dense<0.000000e+00> : vector<256x128xf32>
    %103 = tpu.matmul %100, %102, %cst_44 {dimension_numbers = #tpu.dot_dimension_numbers<[1], [0], [0], [1], [0, 0, 1, 1], [], []>} : vector<256x128xbf16>, vector<128x128xbf16>, vector<256x128xf32> -> vector<256x128xf32>
    %104 = arith.addf %93, %103 : vector<256x128xf32>
    %c240_i32_45 = arith.constant 240 : i32
    %105 = tpu.dynamic_rotate %8 by %c240_i32_45 dim 0 : vector<256x128xf32>, i32 -> vector<256x128xf32>
    %cst_46 = arith.constant 0.000000e+00 : f32
    %106 = vector.shape_cast %29 : vector<256x1xi1> to vector<256x1xi1>
    %107 = vector.broadcast %106 : vector<256x1xi1> to vector<256x128xi1>
    %108 = vector.broadcast %cst_46 : f32 to vector<256x128xf32>
    %109 = arith.select %107, %105, %108 : vector<256x128xi1>, vector<256x128xf32>
    %110 = arith.truncf %109 : vector<256x128xf32> to vector<256x128xbf16>
    %c7 = arith.constant 7 : index
    %c0_47 = arith.constant 0 : index
    %c0_48 = arith.constant 0 : index
    %111 = vector.load %arg4[%c7, %c0_47, %c0_48] : memref<9x128x128xbf16, #tpu.memory_space<vmem>>, vector<1x128x128xbf16>
    %112 = vector.shape_cast %111 : vector<1x128x128xbf16> to vector<128x128xbf16>
    %cst_49 = arith.constant dense<0.000000e+00> : vector<256x128xf32>
    %113 = tpu.matmul %110, %112, %cst_49 {dimension_numbers = #tpu.dot_dimension_numbers<[1], [0], [0], [1], [0, 0, 1, 1], [], []>} : vector<256x128xbf16>, vector<128x128xbf16>, vector<256x128xf32> -> vector<256x128xf32>
    %114 = arith.addf %104, %113 : vector<256x128xf32>
    %c239_i32 = arith.constant 239 : i32
    %115 = tpu.dynamic_rotate %8 by %c239_i32 dim 0 : vector<256x128xf32>, i32 -> vector<256x128xf32>
    %116 = arith.andi %29, %33 : vector<256x1xi1>
    %cst_50 = arith.constant 0.000000e+00 : f32
    %117 = vector.shape_cast %116 : vector<256x1xi1> to vector<256x1xi1>
    %118 = vector.broadcast %117 : vector<256x1xi1> to vector<256x128xi1>
    %119 = vector.broadcast %cst_50 : f32 to vector<256x128xf32>
    %120 = arith.select %118, %115, %119 : vector<256x128xi1>, vector<256x128xf32>
    %121 = arith.truncf %120 : vector<256x128xf32> to vector<256x128xbf16>
    %c8 = arith.constant 8 : index
    %c0_51 = arith.constant 0 : index
    %c0_52 = arith.constant 0 : index
    %122 = vector.load %arg4[%c8, %c0_51, %c0_52] : memref<9x128x128xbf16, #tpu.memory_space<vmem>>, vector<1x128x128xbf16>
    %123 = vector.shape_cast %122 : vector<1x128x128xbf16> to vector<128x128xbf16>
    %cst_53 = arith.constant dense<0.000000e+00> : vector<256x128xf32>
    %124 = tpu.matmul %121, %123, %cst_53 {dimension_numbers = #tpu.dot_dimension_numbers<[1], [0], [0], [1], [0, 0, 1, 1], [], []>} : vector<256x128xbf16>, vector<128x128xbf16>, vector<256x128xf32> -> vector<256x128xf32>
    %125 = arith.addf %114, %124 : vector<256x128xf32>
    %cst_54 = arith.constant 0.000000e+00 : f32
    %126 = vector.broadcast %cst_54 : f32 to vector<256x128xf32>
    %127 = arith.maximumf %125, %126 : vector<256x128xf32>
    %128 = vector.shape_cast %127 : vector<256x128xf32> to vector<8x32x128xf32>
    %129 = vector.extract_strided_slice %128 {offsets = [0, 0, 0], sizes = [8, 16, 128], strides = [1, 1, 1]} : vector<8x32x128xf32> to vector<8x16x128xf32>
    %130 = vector.extract_strided_slice %128 {offsets = [0, 16, 0], sizes = [8, 16, 128], strides = [1, 1, 1]} : vector<8x32x128xf32> to vector<8x16x128xf32>
    %131 = arith.addf %129, %130 : vector<8x16x128xf32>
    %132 = vector.shape_cast %131 : vector<8x16x128xf32> to vector<8x8x2x128xf32>
    %cst_55 = arith.constant dense<0.000000e+00> : vector<8x8x128xf32>
    %133 = vector.multi_reduction <add>, %132, %cst_55 [2] : vector<8x8x2x128xf32> to vector<8x8x128xf32>
    %134 = vector.shape_cast %133 : vector<8x8x128xf32> to vector<64x128xf32>
    %135 = arith.truncf %134 : vector<64x128xf32> to vector<64x128xbf16>
    %c0_56 = arith.constant 0 : index
    %c0_57 = arith.constant 0 : index
    %136 = vector.load %arg6[%c0_56, %c0_57] : memref<128x128xbf16, #tpu.memory_space<vmem>>, vector<128x128xbf16>
    %cst_58 = arith.constant dense<0.000000e+00> : vector<64x128xf32>
    %137 = tpu.matmul %135, %136, %cst_58 {dimension_numbers = #tpu.dot_dimension_numbers<[1], [0], [0], [1], [0, 0, 1, 1], [], []>} : vector<64x128xbf16>, vector<128x128xbf16>, vector<64x128xf32> -> vector<64x128xf32>
    %c0_59 = arith.constant 0 : index
    %c0_60 = arith.constant 0 : index
    %138 = vector.load %arg7[%c0_59, %c0_60] : memref<1x128xf32, #tpu.memory_space<vmem>>, vector<1x128xf32>
    %139 = vector.broadcast %138 : vector<1x128xf32> to vector<64x128xf32>
    %140 = arith.addf %137, %139 : vector<64x128xf32>
    %141 = arith.extf %1 : vector<256x128xbf16> to vector<256x128xf32>
    %142 = vector.shape_cast %141 : vector<256x128xf32> to vector<8x32x128xf32>
    %143 = vector.extract_strided_slice %142 {offsets = [0, 0, 0], sizes = [8, 16, 128], strides = [1, 1, 1]} : vector<8x32x128xf32> to vector<8x16x128xf32>
    %144 = vector.extract_strided_slice %142 {offsets = [0, 16, 0], sizes = [8, 16, 128], strides = [1, 1, 1]} : vector<8x32x128xf32> to vector<8x16x128xf32>
    %145 = arith.addf %143, %144 : vector<8x16x128xf32>
    %146 = vector.shape_cast %145 : vector<8x16x128xf32> to vector<8x8x2x128xf32>
    %cst_61 = arith.constant dense<0.000000e+00> : vector<8x8x128xf32>
    %147 = vector.multi_reduction <add>, %146, %cst_61 [2] : vector<8x8x2x128xf32> to vector<8x8x128xf32>
    %148 = vector.shape_cast %147 : vector<8x8x128xf32> to vector<64x128xf32>
    %149 = arith.truncf %148 : vector<64x128xf32> to vector<64x128xbf16>
    %c0_62 = arith.constant 0 : index
    %c0_63 = arith.constant 0 : index
    %150 = vector.load %arg8[%c0_62, %c0_63] : memref<128x128xbf16, #tpu.memory_space<vmem>>, vector<128x128xbf16>
    %cst_64 = arith.constant dense<0.000000e+00> : vector<64x128xf32>
    %151 = tpu.matmul %149, %150, %cst_64 {dimension_numbers = #tpu.dot_dimension_numbers<[1], [0], [0], [1], [0, 0, 1, 1], [], []>} : vector<64x128xbf16>, vector<128x128xbf16>, vector<64x128xf32> -> vector<64x128xf32>
    %c0_65 = arith.constant 0 : index
    %c0_66 = arith.constant 0 : index
    %152 = vector.load %arg9[%c0_65, %c0_66] : memref<1x128xf32, #tpu.memory_space<vmem>>, vector<1x128xf32>
    %153 = vector.broadcast %152 : vector<1x128xf32> to vector<64x128xf32>
    %154 = arith.addf %151, %153 : vector<64x128xf32>
    %155 = arith.addf %140, %154 : vector<64x128xf32>
    %cst_67 = arith.constant 0.000000e+00 : f32
    %156 = vector.broadcast %cst_67 : f32 to vector<64x128xf32>
    %157 = arith.maximumf %155, %156 : vector<64x128xf32>
    %158 = arith.truncf %157 : vector<64x128xf32> to vector<64x128xbf16>
    %c0_68 = arith.constant 0 : index
    %c0_69 = arith.constant 0 : index
    %c0_70 = arith.constant 0 : index
    %159 = vector.load %arg10[%c0_68, %c0_69, %c0_70] : memref<1x64x128xbf16, #tpu.memory_space<vmem>>, vector<1x64x128xbf16>
    %160 = vector.shape_cast %159 : vector<1x64x128xbf16> to vector<64x128xbf16>
    %161 = vector.shape_cast %158 : vector<64x128xbf16> to vector<1x64x128xbf16>
    tpu.vector_store %arg10[%c0_68, %c0_69, %c0_70], %161 {strides = array<i32>} : memref<1x64x128xbf16, #tpu.memory_space<vmem>>, vector<1x64x128xbf16>,
    return
  }
  func.func @transform_0(%arg0: i32) -> (i32, i32, i32) {
    %c0_i32 = arith.constant 0 : i32
    %c0_i32_0 = arith.constant 0 : i32
    %c0_i32_1 = arith.constant 0 : i32
    return %arg0, %c0_i32, %c0_i32_0 : i32, i32, i32
  }
  func.func @transform_1(%arg0: i32) -> (i32, i32) {
    %c0_i32 = arith.constant 0 : i32
    %c0_i32_0 = arith.constant 0 : i32
    %c0_i32_1 = arith.constant 0 : i32
    return %c0_i32, %c0_i32_0 : i32, i32
  }
  func.func @transform_2(%arg0: i32) -> (i32, i32) {
    %c0_i32 = arith.constant 0 : i32
    %c0_i32_0 = arith.constant 0 : i32
    %c0_i32_1 = arith.constant 0 : i32
    return %c0_i32, %c0_i32_0 : i32, i32
  }
  func.func @transform_3(%arg0: i32) -> (i32, i32, i32) {
    %c0_i32 = arith.constant 0 : i32
    %c0_i32_0 = arith.constant 0 : i32
    %c0_i32_1 = arith.constant 0 : i32
    %c0_i32_2 = arith.constant 0 : i32
    return %c0_i32, %c0_i32_0, %c0_i32_1 : i32, i32, i32
  }
  func.func @transform_4(%arg0: i32) -> (i32, i32) {
    %c0_i32 = arith.constant 0 : i32
    %c0_i32_0 = arith.constant 0 : i32
    %c0_i32_1 = arith.constant 0 : i32
    return %c0_i32, %c0_i32_0 : i32, i32
  }
  func.func @transform_5(%arg0: i32) -> (i32, i32) {
    %c0_i32 = arith.constant 0 : i32
    %c0_i32_0 = arith.constant 0 : i32
    %c0_i32_1 = arith.constant 0 : i32
    return %c0_i32, %c0_i32_0 : i32, i32
  }
  func.func @transform_6(%arg0: i32) -> (i32, i32) {
    %c0_i32 = arith.constant 0 : i32
    %c0_i32_0 = arith.constant 0 : i32
    %c0_i32_1 = arith.constant 0 : i32
    return %c0_i32, %c0_i32_0 : i32, i32
  }
  func.func @transform_7(%arg0: i32) -> (i32, i32) {
    %c0_i32 = arith.constant 0 : i32
    %c0_i32_0 = arith.constant 0 : i32
    %c0_i32_1 = arith.constant 0 : i32
    return %c0_i32, %c0_i32_0 : i32, i32
  }
  func.func @transform_8(%arg0: i32) -> (i32, i32) {
    %c0_i32 = arith.constant 0 : i32
    %c0_i32_0 = arith.constant 0 : i32
    %c0_i32_1 = arith.constant 0 : i32
    return %c0_i32, %c0_i32_0 : i32, i32
  }
  func.func @transform_9(%arg0: i32) -> (i32, i32, i32) {
    %c0_i32 = arith.constant 0 : i32
    %c0_i32_0 = arith.constant 0 : i32
    %c0_i32_1 = arith.constant 0 : i32
    return %arg0, %c0_i32, %c0_i32_0 : i32, i32, i32
  }
}

</mosaic_0001>

<llo_original>
// kernel: tpu_custom_call.1
$region0: #{tpu_custom_call.1}
  #allocation0 [shape = 'u32[]', space=smem, size = 0x4, offset = 0x4, fixed_abs, tag = 'smem constant byte address 0x4 - core index']
  #allocation1 [shape = 'u32[72,128]{1,0:T(1,128)}', space=vmem, size = 0x9000, scoped, tag = 'internal scratch']
  %s0 = inlined_call_operand.hbm [shape: bf16[2,256,128], index: 0, kind: input, shape index: {}]
  %s1 = inlined_call_operand.hbm [shape: bf16[128,128], index: 1, kind: input, shape index: {}]
  %s2 = inlined_call_operand.vmem [shape: f32[1,128], index: 2, kind: input, shape index: {}]
  %s3 = inlined_call_operand.hbm [shape: bf16[9,128,128], index: 3, kind: input, shape index: {}]
  %s4 = inlined_call_operand.vmem [shape: f32[1,128], index: 4, kind: input, shape index: {}]
  %s5 = inlined_call_operand.hbm [shape: bf16[128,128], index: 5, kind: input, shape index: {}]
  %s6 = inlined_call_operand.vmem [shape: f32[1,128], index: 6, kind: input, shape index: {}]
  %s7 = inlined_call_operand.hbm [shape: bf16[128,128], index: 7, kind: input, shape index: {}]
  %s8 = inlined_call_operand.vmem [shape: f32[1,128], index: 8, kind: input, shape index: {}]
  %s9 = inlined_call_operand.hbm [shape: bf16[2,64,128], index: 9, kind: output, shape index: {}]
  %s10 = sld [smem:[#allocation0]]
  $region89: #{tpu_custom_call.1} parent=0
    _
  %s12 = ssub.s32 1, %s10
  %s13 = scalar_select 0, %s12, %s10
  $region1: #{tpu_custom_call.1} parent=0
    #allocation2 [shape = 'u8[131072]{0}', space=vmem, size = 0x20000, scoped, tag = 'input window, operand 0']
    #allocation3 [shape = 's32[2]{0}', space=sflag, size = 0x8, scoped, tag = 'scoped memory for tpu_custom_call.1']
    #allocation4 [shape = 's32[2]{0}', space=sflag, size = 0x8, scoped, tag = 'scoped memory for tpu_custom_call.1']
    #allocation5 [shape = 'u8[32768]{0}', space=vmem, size = 0x8000, scoped, tag = 'input window, operand 1, single buffered']
    #allocation6 [shape = 's32[1]{0}', space=sflag, size = 0x4, scoped, tag = 'scoped memory for tpu_custom_call.1']
    #allocation7 [shape = 'u8[294912]{0}', space=vmem, size = 0x48000, scoped, tag = 'input window, operand 3, single buffered']
    #allocation8 [shape = 'u8[32768]{0}', space=vmem, size = 0x8000, scoped, tag = 'input window, operand 5, single buffered']
    #allocation9 [shape = 's32[1]{0}', space=sflag, size = 0x4, scoped, tag = 'scoped memory for tpu_custom_call.1']
    #allocation10 [shape = 'u8[32768]{0}', space=vmem, size = 0x8000, scoped, tag = 'input window, operand 7, single buffered']
    #allocation11 [shape = 'u8[32768]{0}', space=vmem, size = 0x8000, scoped, tag = 'output window, operand 0']
    %14 = vsyncpa [#allocation3], 0
    %s15 = scalar_lea.sflag [#allocation3], 1
    %16 = vsyncpa %s15, 0
    %17 = vsyncpa [#allocation6], 0
    %18 = vsyncpa [#allocation9], 0
    %19 = vsyncpa [#allocation4], 0
    %s20 = scalar_lea.sflag [#allocation4], 1
    %21 = vsyncpa %s20, 0
    loop: start=0, step=1, limit=4
    $region2: #{tpu_custom_call.1} parent=1 // loop_pre_header
      _
    $region3: #{tpu_custom_call.1} parent=1 // loop_header
      %s23 = sphi 0, %s27
      %p24 = scmp.ge.s32.totalorder %s23, 4
      %s33 = sphi 0, %s35
      %s36 = sphi 0, %s33
      %s37 = sphi 0, %s36
      %s53 = sphi 0, %s37
      %s57 = sphi 0, %s57
      %s59 = sphi 0, %s57
      %s60 = sphi 0, %s59
      %s74 = sphi 0, %s60
      %s78 = sphi 0, %s78
      %s80 = sphi 0, %s78
      %s81 = sphi 0, %s80
      %s95 = sphi 0, %s81
      %s99 = sphi 0, %s99
      %s101 = sphi 0, %s99
      %s102 = sphi 0, %s101
      %s116 = sphi 0, %s102
      %s120 = sphi 0, %s120
      %s122 = sphi 0, %s120
      %s123 = sphi 0, %s122
      %s137 = sphi 0, %s123
      %s141 = sphi 0, %s141
      %s143 = sphi 0, %s141
      %s144 = sphi 0, %s143
      %s158 = sphi 0, %s144
      %s162 = sphi 0, %s162
      %s164 = sphi 0, %s162
      %s165 = sphi 0, %s164
      %s179 = sphi 0, %s165
      %s183 = sphi 0, %s183
      %s185 = sphi 0, %s183
      %s186 = sphi 0, %s185
      %s200 = sphi 0, %s186
      %s204 = sphi 0, %s204
      %s206 = sphi 0, %s204
      %s207 = sphi 0, %s206
      %s221 = sphi 0, %s207
      %s227 = sphi 0, %s229
      %s230 = sphi 0, %s227
      %s231 = sphi 0, %s230
      %s247 = sphi 0, %s231
    $region4: #{tpu_custom_call.1} parent=1 // loop_header_branch
      %26 = sbr.rel (%p24) target = $region8
    $region5: #{tpu_custom_call.1} parent=1 // loop_body
      %s28 = ssub.s32 %s23, 1
      %s29 = ssub.s32 %s23, 2
      %s30 = sadd.s32 %s23, 1
      %s31 = ssub.s32 %s23, %s30
      %p32 = scmp.eq.s32.totalorder %s31, 0
      %s34 = sadd.s32 %s33, 1
      %s35 = scalar_select %p32, %s33, %s34
      %p38 = pneg %p32
      %p39 = scmp.eq.s32.totalorder %s23, 1
      %p40 = por %p38, %p39
      %p41 = scmp.ne.s32.totalorder %s33, %s36
      %p42 = scmp.eq.s32.totalorder %s23, 0
      %p43 = por %p41, %p42
      %p44 = scmp.ne.s32.totalorder %s33, %s36
      %p45 = scmp.eq.s32.totalorder %s28, 1
      %p46 = por %p44, %p45
      %p47 = scmp.ne.s32.totalorder %s36, %s37
      %p48 = scmp.eq.s32.totalorder %s28, 0
      %p49 = por %p47, %p48
      %p50 = scmp.ne.s32.totalorder %s36, %s37
      %p51 = scmp.eq.s32.totalorder %s29, 1
      %p52 = por %p50, %p51
      %p54 = scmp.ne.s32.totalorder %s37, %s53
      %p55 = scmp.eq.s32.totalorder %s29, 0
      %p56 = por %p54, %p55
      %s58 = sadd.s32 %s57, 1
      %p61 = scmp.eq.s32.totalorder %s23, 1
      %p62 = scmp.ne.s32.totalorder %s57, %s59
      %p63 = scmp.eq.s32.totalorder %s23, 0
      %p64 = por %p62, %p63
      %p65 = scmp.ne.s32.totalorder %s57, %s59
      %p66 = scmp.eq.s32.totalorder %s28, 1
      %p67 = por %p65, %p66
      %p68 = scmp.ne.s32.totalorder %s59, %s60
      %p69 = scmp.eq.s32.totalorder %s28, 0
      %p70 = por %p68, %p69
      %p71 = scmp.ne.s32.totalorder %s59, %s60
      %p72 = scmp.eq.s32.totalorder %s29, 1
      %p73 = por %p71, %p72
      %p75 = scmp.ne.s32.totalorder %s60, %s74
      %p76 = scmp.eq.s32.totalorder %s29, 0
      %p77 = por %p75, %p76
      %s79 = sadd.s32 %s78, 1
      %p82 = scmp.eq.s32.totalorder %s23, 1
      %p83 = scmp.ne.s32.totalorder %s78, %s80
      %p84 = scmp.eq.s32.totalorder %s23, 0
      %p85 = por %p83, %p84
      %p86 = scmp.ne.s32.totalorder %s78, %s80
      %p87 = scmp.eq.s32.totalorder %s28, 1
      %p88 = por %p86, %p87
      %p89 = scmp.ne.s32.totalorder %s80, %s81
      %p90 = scmp.eq.s32.totalorder %s28, 0
      %p91 = por %p89, %p90
      %p92 = scmp.ne.s32.totalorder %s80, %s81
      %p93 = scmp.eq.s32.totalorder %s29, 1
      %p94 = por %p92, %p93
      %p96 = scmp.ne.s32.totalorder %s81, %s95
      %p97 = scmp.eq.s32.totalorder %s29, 0
      %p98 = por %p96, %p97
      %s100 = sadd.s32 %s99, 1
      %p103 = scmp.eq.s32.totalorder %s23, 1
      %p104 = scmp.ne.s32.totalorder %s99, %s101
      %p105 = scmp.eq.s32.totalorder %s23, 0
      %p106 = por %p104, %p105
      %p107 = scmp.ne.s32.totalorder %s99, %s101
      %p108 = scmp.eq.s32.totalorder %s28, 1
      %p109 = por %p107, %p108
      %p110 = scmp.ne.s32.totalorder %s101, %s102
      %p111 = scmp.eq.s32.totalorder %s28, 0
      %p112 = por %p110, %p111
      %p113 = scmp.ne.s32.totalorder %s101, %s102
      %p114 = scmp.eq.s32.totalorder %s29, 1
      %p115 = por %p113, %p114
      %p117 = scmp.ne.s32.totalorder %s102, %s116
      %p118 = scmp.eq.s32.totalorder %s29, 0
      %p119 = por %p117, %p118
      %s121 = sadd.s32 %s120, 1
      %p124 = scmp.eq.s32.totalorder %s23, 1
      %p125 = scmp.ne.s32.totalorder %s120, %s122
      %p126 = scmp.eq.s32.totalorder %s23, 0
      %p127 = por %p125, %p126
      %p128 = scmp.ne.s32.totalorder %s120, %s122
      %p129 = scmp.eq.s32.totalorder %s28, 1
      %p130 = por %p128, %p129
      %p131 = scmp.ne.s32.totalorder %s122, %s123
      %p132 = scmp.eq.s32.totalorder %s28, 0
      %p133 = por %p131, %p132
      %p134 = scmp.ne.s32.totalorder %s122, %s123
      %p135 = scmp.eq.s32.totalorder %s29, 1
      %p136 = por %p134, %p135
      %p138 = scmp.ne.s32.totalorder %s123, %s137
      %p139 = scmp.eq.s32.totalorder %s29, 0
      %p140 = por %p138, %p139
      %s142 = sadd.s32 %s141, 1
      %p145 = scmp.eq.s32.totalorder %s23, 1
      %p146 = scmp.ne.s32.totalorder %s141, %s143
      %p147 = scmp.eq.s32.totalorder %s23, 0
      %p148 = por %p146, %p147
      %p149 = scmp.ne.s32.totalorder %s141, %s143
      %p150 = scmp.eq.s32.totalorder %s28, 1
      %p151 = por %p149, %p150
      %p152 = scmp.ne.s32.totalorder %s143, %s144
      %p153 = scmp.eq.s32.totalorder %s28, 0
      %p154 = por %p152, %p153
      %p155 = scmp.ne.s32.totalorder %s143, %s144
      %p156 = scmp.eq.s32.totalorder %s29, 1
      %p157 = por %p155, %p156
      %p159 = scmp.ne.s32.totalorder %s144, %s158
      %p160 = scmp.eq.s32.totalorder %s29, 0
      %p161 = por %p159, %p160
      %s163 = sadd.s32 %s162, 1
      %p166 = scmp.eq.s32.totalorder %s23, 1
      %p167 = scmp.ne.s32.totalorder %s162, %s164
      %p168 = scmp.eq.s32.totalorder %s23, 0
      %p169 = por %p167, %p168
      %p170 = scmp.ne.s32.totalorder %s162, %s164
      %p171 = scmp.eq.s32.totalorder %s28, 1
      %p172 = por %p170, %p171
      %p173 = scmp.ne.s32.totalorder %s164, %s165
      %p174 = scmp.eq.s32.totalorder %s28, 0
      %p175 = por %p173, %p174
      %p176 = scmp.ne.s32.totalorder %s164, %s165
      %p177 = scmp.eq.s32.totalorder %s29, 1
      %p178 = por %p176, %p177
      %p180 = scmp.ne.s32.totalorder %s165, %s179
      %p181 = scmp.eq.s32.totalorder %s29, 0
      %p182 = por %p180, %p181
      %s184 = sadd.s32 %s183, 1
      %p187 = scmp.eq.s32.totalorder %s23, 1
      %p188 = scmp.ne.s32.totalorder %s183, %s185
      %p189 = scmp.eq.s32.totalorder %s23, 0
      %p190 = por %p188, %p189
      %p191 = scmp.ne.s32.totalorder %s183, %s185
      %p192 = scmp.eq.s32.totalorder %s28, 1
      %p193 = por %p191, %p192
      %p194 = scmp.ne.s32.totalorder %s185, %s186
      %p195 = scmp.eq.s32.totalorder %s28, 0
      %p196 = por %p194, %p195
      %p197 = scmp.ne.s32.totalorder %s185, %s186
      %p198 = scmp.eq.s32.totalorder %s29, 1
      %p199 = por %p197, %p198
      %p201 = scmp.ne.s32.totalorder %s186, %s200
      %p202 = scmp.eq.s32.totalorder %s29, 0
      %p203 = por %p201, %p202
      %s205 = sadd.s32 %s204, 1
      %p208 = scmp.eq.s32.totalorder %s23, 1
      %p209 = scmp.ne.s32.totalorder %s204, %s206
      %p210 = scmp.eq.s32.totalorder %s23, 0
      %p211 = por %p209, %p210
      %p212 = scmp.ne.s32.totalorder %s204, %s206
      %p213 = scmp.eq.s32.totalorder %s28, 1
      %p214 = por %p212, %p213
      %p215 = scmp.ne.s32.totalorder %s206, %s207
      %p216 = scmp.eq.s32.totalorder %s28, 0
      %p217 = por %p215, %p216
      %p218 = scmp.ne.s32.totalorder %s206, %s207
      %p219 = scmp.eq.s32.totalorder %s29, 1
      %p220 = por %p218, %p219
      %p222 = scmp.ne.s32.totalorder %s207, %s221
      %p223 = scmp.eq.s32.totalorder %s29, 0
      %p224 = por %p222, %p223
      %s225 = ssub.s32 %s23, %s30
      %p226 = scmp.eq.s32.totalorder %s225, 0
      %s228 = sadd.s32 %s227, 1
      %s229 = scalar_select %p226, %s227, %s228
      %p232 = pneg %p226
      %p233 = scmp.eq.s32.totalorder %s23, 1
      %p234 = por %p232, %p233
      %p235 = scmp.ne.s32.totalorder %s227, %s230
      %p236 = scmp.eq.s32.totalorder %s23, 0
      %p237 = por %p235, %p236
      %p238 = scmp.ne.s32.totalorder %s227, %s230
      %p239 = scmp.eq.s32.totalorder %s28, 1
      %p240 = por %p238, %p239
      %p241 = scmp.ne.s32.totalorder %s230, %s231
      %p242 = scmp.eq.s32.totalorder %s28, 0
      %p243 = por %p241, %p242
      %p244 = scmp.ne.s32.totalorder %s230, %s231
      %p245 = scmp.eq.s32.totalorder %s29, 1
      %p246 = por %p244, %p245
      %p248 = scmp.ne.s32.totalorder %s231, %s247
      %p249 = scmp.eq.s32.totalorder %s29, 0
      %p250 = por %p248, %p249
      %p251 = scmp.le.s32.totalorder 1, %s23
      %p252 = scmp.lt.s32.totalorder %s23, 3
      %p253 = pnand %p251, %p252
      %p254 = pneg %p253
      // Predicated region
      $region9: #{tpu_custom_call.1} parent=5 // pred_check
        _
      $region10: #{tpu_custom_call.1} parent=5 // pred_check_branch
        %256 = sbr.rel (%p253) target = $region12
      $region11: #{tpu_custom_call.1} parent=5 // pred_region
        %s257 = ssub.s32 %s23, 1
        // Predicated region
        $region13: #{tpu_custom_call.1} parent=11 // pred_check
          %p258 = pneg %p70
        $region14: #{tpu_custom_call.1} parent=11 // pred_check_branch
          %260 = sbr.rel (%p258) target = $region16
        $region15: #{tpu_custom_call.1} parent=11 // pred_region
          %262 = vsyncadd [#allocation6], 0
          %s263 = sshll.u32 %s1, 4
          %s264 = int_to_ptr.hbm [resolvable:$true] %s263
          %s265 = sshll.u32 [#allocation5], 4
          %s266 = int_to_ptr.vmem [resolvable:$true] %s265
          %271 = dma.hbm_to_vmem [thread:$0]  %s264, 1024, %s266, [#allocation6], 64, 64, 4
        $region16: #{tpu_custom_call.1} parent=11 // pred_fallthru
          _
        // Predicated region
        $region17: #{tpu_custom_call.1} parent=11 // pred_check
          %p272 = pneg %p91
        $region18: #{tpu_custom_call.1} parent=11 // pred_check_branch
          %274 = sbr.rel (%p272) target = $region20
        $region19: #{tpu_custom_call.1} parent=11 // pred_region
          _
        $region20: #{tpu_custom_call.1} parent=11 // pred_fallthru
          _
        // Predicated region
        $region21: #{tpu_custom_call.1} parent=11 // pred_check
          %p275 = pneg %p112
        $region22: #{tpu_custom_call.1} parent=11 // pred_check_branch
          %277 = sbr.rel (%p275) target = $region24
        $region23: #{tpu_custom_call.1} parent=11 // pred_region
          %279 = vsyncadd [#allocation6], 0
          %s280 = sshll.u32 %s3, 4
          %s281 = int_to_ptr.hbm [resolvable:$true] %s280
          %s282 = sshll.u32 [#allocation7], 4
          %s283 = int_to_ptr.vmem [resolvable:$true] %s282
          %288 = dma.hbm_to_vmem [thread:$0]  %s281, 9216, %s283, [#allocation6], 64, 64, 4
        $region24: #{tpu_custom_call.1} parent=11 // pred_fallthru
          _
        // Predicated region
        $region25: #{tpu_custom_call.1} parent=11 // pred_check
          %p289 = pneg %p133
        $region26: #{tpu_custom_call.1} parent=11 // pred_check_branch
          %291 = sbr.rel (%p289) target = $region28
        $region27: #{tpu_custom_call.1} parent=11 // pred_region
          _
        $region28: #{tpu_custom_call.1} parent=11 // pred_fallthru
          _
        // Predicated region
        $region29: #{tpu_custom_call.1} parent=11 // pred_check
          %p292 = pneg %p154
        $region30: #{tpu_custom_call.1} parent=11 // pred_check_branch
          %294 = sbr.rel (%p292) target = $region32
        $region31: #{tpu_custom_call.1} parent=11 // pred_region
          %296 = vsyncadd [#allocation9], 0
          %s297 = sshll.u32 %s5, 4
          %s298 = int_to_ptr.hbm [resolvable:$true] %s297
          %s299 = sshll.u32 [#allocation8], 4
          %s300 = int_to_ptr.vmem [resolvable:$true] %s299
          %305 = dma.hbm_to_vmem [thread:$0]  %s298, 1024, %s300, [#allocation9], 64, 64, 4
        $region32: #{tpu_custom_call.1} parent=11 // pred_fallthru
          _
        // Predicated region
        $region33: #{tpu_custom_call.1} parent=11 // pred_check
          %p306 = pneg %p175
        $region34: #{tpu_custom_call.1} parent=11 // pred_check_branch
          %308 = sbr.rel (%p306) target = $region36
        $region35: #{tpu_custom_call.1} parent=11 // pred_region
          _
        $region36: #{tpu_custom_call.1} parent=11 // pred_fallthru
          _
        // Predicated region
        $region37: #{tpu_custom_call.1} parent=11 // pred_check
          %p309 = pneg %p196
        $region38: #{tpu_custom_call.1} parent=11 // pred_check_branch
          %311 = sbr.rel (%p309) target = $region40
        $region39: #{tpu_custom_call.1} parent=11 // pred_region
          %313 = vsyncadd [#allocation9], 0
          %s314 = sshll.u32 %s7, 4
          %s315 = int_to_ptr.hbm [resolvable:$true] %s314
          %s316 = sshll.u32 [#allocation10], 4
          %s317 = int_to_ptr.vmem [resolvable:$true] %s316
          %322 = dma.hbm_to_vmem [thread:$0]  %s315, 1024, %s317, [#allocation9], 64, 64, 4
        $region40: #{tpu_custom_call.1} parent=11 // pred_fallthru
          _
        // Predicated region
        $region41: #{tpu_custom_call.1} parent=11 // pred_check
          %p323 = pneg %p217
        $region42: #{tpu_custom_call.1} parent=11 // pred_check_branch
          %325 = sbr.rel (%p323) target = $region44
        $region43: #{tpu_custom_call.1} parent=11 // pred_region
          _
        $region44: #{tpu_custom_call.1} parent=11 // pred_fallthru
          _
      $region12: #{tpu_custom_call.1} parent=5 // pred_fallthru
        _
      %p326 = scmp.lt.s32.totalorder %s23, 2
      // Predicated region
      $region45: #{tpu_custom_call.1} parent=5 // pred_check
        %p327 = pneg %p326
      $region46: #{tpu_custom_call.1} parent=5 // pred_check_branch
        %329 = sbr.rel (%p327) target = $region48
      $region47: #{tpu_custom_call.1} parent=5 // pred_region
        // Predicated region
        $region49: #{tpu_custom_call.1} parent=47 // pred_check
          %p330 = pneg %p43
        $region50: #{tpu_custom_call.1} parent=47 // pred_check_branch
          %332 = sbr.rel (%p330) target = $region52
        $region51: #{tpu_custom_call.1} parent=47 // pred_region
          %s333 = sand.u32 %s33, 1
          %s334 = scalar_lea.sflag [#allocation3], %s333
          %s335 = sand.u32 %s33, 1
          %s336 = smul.addr %s335, 128
          %s337 = scalar_lea.vmem [#allocation2], %s336
          %339 = vsyncadd %s334, 0
          %s340 = smul.addr %s23, 32
          %s341 = smul.addr %s340, 4
          %s342 = scalar_lea.hbm %s0, %s341
          %s343 = sshll.u32 %s342, 4
          %s344 = int_to_ptr.hbm [resolvable:$true] %s343
          %s345 = sshll.u32 %s337, 4
          %s346 = int_to_ptr.vmem [resolvable:$true] %s345
          %351 = dma.hbm_to_vmem [thread:$0]  %s344, 2048, %s346, %s334, 64, 64, 4
        $region52: #{tpu_custom_call.1} parent=47 // pred_fallthru
          _
      $region48: #{tpu_custom_call.1} parent=5 // pred_fallthru
        _
      %p352 = scmp.le.s32.totalorder 1, %s23
      %p353 = scmp.lt.s32.totalorder %s23, 3
      %p354 = pnand %p352, %p353
      %p355 = pneg %p354
      // Predicated region
      $region53: #{tpu_custom_call.1} parent=5 // pred_check
        _
      $region54: #{tpu_custom_call.1} parent=5 // pred_check_branch
        %357 = sbr.rel (%p354) target = $region56
      $region55: #{tpu_custom_call.1} parent=5 // pred_region
        %s358 = ssub.s32 %s23, 1
        %s359 = sand.u32 %s36, 1
        %s360 = scalar_lea.sflag [#allocation3], %s359
        %s361 = sand.u32 %s36, 1
        %s362 = smul.addr %s361, 128
        %s363 = scalar_lea.vmem [#allocation2], %s362
        // Predicated region
        $region57: #{tpu_custom_call.1} parent=55 // pred_check
          %p364 = pneg %p49
        $region58: #{tpu_custom_call.1} parent=55 // pred_check_branch
          %366 = sbr.rel (%p364) target = $region60
        $region59: #{tpu_custom_call.1} parent=55 // pred_region
          %368 = dma.done %s360, 2048
        $region60: #{tpu_custom_call.1} parent=55 // pred_fallthru
          _
        // Predicated region
        $region61: #{tpu_custom_call.1} parent=55 // pred_check
          %p369 = pneg %p70
        $region62: #{tpu_custom_call.1} parent=55 // pred_check_branch
          %371 = sbr.rel (%p369) target = $region64
        $region63: #{tpu_custom_call.1} parent=55 // pred_region
          %373 = dma.done [#allocation6], 1024
        $region64: #{tpu_custom_call.1} parent=55 // pred_fallthru
          _
        // Predicated region
        $region65: #{tpu_custom_call.1} parent=55 // pred_check
          %p374 = pneg %p112
        $region66: #{tpu_custom_call.1} parent=55 // pred_check_branch
          %376 = sbr.rel (%p374) target = $region68
        $region67: #{tpu_custom_call.1} parent=55 // pred_region
          %378 = dma.done [#allocation6], 9216
        $region68: #{tpu_custom_call.1} parent=55 // pred_fallthru
          _
        // Predicated region
        $region69: #{tpu_custom_call.1} parent=55 // pred_check
          %p379 = pneg %p154
        $region70: #{tpu_custom_call.1} parent=55 // pred_check_branch
          %381 = sbr.rel (%p379) target = $region72
        $region71: #{tpu_custom_call.1} parent=55 // pred_region
          %383 = dma.done [#allocation9], 1024
        $region72: #{tpu_custom_call.1} parent=55 // pred_fallthru
          _
        // Predicated region
        $region73: #{tpu_custom_call.1} parent=55 // pred_check
          %p384 = pneg %p196
        $region74: #{tpu_custom_call.1} parent=55 // pred_check_branch
          %386 = sbr.rel (%p384) target = $region76
        $region75: #{tpu_custom_call.1} parent=55 // pred_region
          %388 = dma.done [#allocation9], 1024
        $region76: #{tpu_custom_call.1} parent=55 // pred_fallthru
          _
        %s389 = sand.u32 %s36, 1
        %s390 = scalar_lea.sflag [#allocation3], %s389
        %s391 = sand.u32 %s36, 1
        %s392 = smul.addr %s391, 128
        %s393 = scalar_lea.vmem [#allocation2], %s392
        %p394 = pneg %p49
        %p395 = pneg %p46
        %p396 = pneg %p70
        %p397 = pneg %p67
        %p398 = pneg %p91
        %p399 = pneg %p88
        %p400 = pneg %p112
        %p401 = pneg %p109
        %p402 = pneg %p133
        %p403 = pneg %p130
        %p404 = pneg %p154
        %p405 = pneg %p151
        %p406 = pneg %p175
        %p407 = pneg %p172
        %p408 = pneg %p196
        %p409 = pneg %p193
        %p410 = pneg %p217
        %p411 = pneg %p214
        %p412 = pneg %p243
        %p413 = pneg %p240
        %s414 = sand.u32 %s230, 1
        %s415 = scalar_lea.sflag [#allocation4], %s414
        %s416 = sand.u32 %s230, 1
        %s417 = smul.addr %s416, 32
        %s418 = scalar_lea.vmem [#allocation11], %s417
        %v419 = vld [vmem:[%s363] sm:$0xf]
        %v420 = vld [vmem:[%s363 + $0x4] sm:$0xf]
        %v421 = vld [vmem:[%s363 + $0x8] sm:$0xf]
        %v422 = vld [vmem:[%s363 + $0xc] sm:$0xf]
        %v423 = vld [vmem:[%s363 + $0x10] sm:$0xf]
        %v424 = vld [vmem:[%s363 + $0x14] sm:$0xf]
        %v425 = vld [vmem:[%s363 + $0x18] sm:$0xf]
        %v426 = vld [vmem:[%s363 + $0x1c] sm:$0xf]
        %v427 = vld [vmem:[%s363 + $0x20] sm:$0xf]
        %v428 = vld [vmem:[%s363 + $0x24] sm:$0xf]
        %v429 = vld [vmem:[%s363 + $0x28] sm:$0xf]
        %v430 = vld [vmem:[%s363 + $0x2c] sm:$0xf]
        %v431 = vld [vmem:[%s363 + $0x30] sm:$0xf]
        %v432 = vld [vmem:[%s363 + $0x34] sm:$0xf]
        %v433 = vld [vmem:[%s363 + $0x38] sm:$0xf]
        %v434 = vld [vmem:[%s363 + $0x3c] sm:$0xf]
        %v435 = vld [vmem:[%s363 + $0x40] sm:$0xf]
        %v436 = vld [vmem:[%s363 + $0x44] sm:$0xf]
        %v437 = vld [vmem:[%s363 + $0x48] sm:$0xf]
        %v438 = vld [vmem:[%s363 + $0x4c] sm:$0xf]
        %v439 = vld [vmem:[%s363 + $0x50] sm:$0xf]
        %v440 = vld [vmem:[%s363 + $0x54] sm:$0xf]
        %v441 = vld [vmem:[%s363 + $0x58] sm:$0xf]
        %v442 = vld [vmem:[%s363 + $0x5c] sm:$0xf]
        %v443 = vld [vmem:[%s363 + $0x60] sm:$0xf]
        %v444 = vld [vmem:[%s363 + $0x64] sm:$0xf]
        %v445 = vld [vmem:[%s363 + $0x68] sm:$0xf]
        %v446 = vld [vmem:[%s363 + $0x6c] sm:$0xf]
        %v447 = vld [vmem:[%s363 + $0x70] sm:$0xf]
        %v448 = vld [vmem:[%s363 + $0x74] sm:$0xf]
        %v449 = vld [vmem:[%s363 + $0x78] sm:$0xf]
        %v450 = vld [vmem:[%s363 + $0x7c] sm:$0xf]
        %v451 = vld [vmem:[#allocation5] sm:$0xf]
        %v452 = vld [vmem:[#allocation5 + $0x4] sm:$0xf]
        %v453 = vld [vmem:[#allocation5 + $0x8] sm:$0xf]
        %v454 = vld [vmem:[#allocation5 + $0xc] sm:$0xf]
        %v455 = vld [vmem:[#allocation5 + $0x10] sm:$0xf]
        %v456 = vld [vmem:[#allocation5 + $0x14] sm:$0xf]
        %v457 = vld [vmem:[#allocation5 + $0x18] sm:$0xf]
        %v458 = vld [vmem:[#allocation5 + $0x1c] sm:$0xf]
        %v459 = vld [vmem:[#allocation5 + $0x20] sm:$0xf]
        %v460 = vld [vmem:[#allocation5 + $0x24] sm:$0xf]
        %v461 = vld [vmem:[#allocation5 + $0x28] sm:$0xf]
        %v462 = vld [vmem:[#allocation5 + $0x2c] sm:$0xf]
        %v463 = vld [vmem:[#allocation5 + $0x30] sm:$0xf]
        %v464 = vld [vmem:[#allocation5 + $0x34] sm:$0xf]
        %v465 = vld [vmem:[#allocation5 + $0x38] sm:$0xf]
        %v466 = vld [vmem:[#allocation5 + $0x3c] sm:$0xf]
        %v467 = vld [vmem:[%s2] sm:$0x1]
        %v469 = vperm.slane %v467, 0
        %v503 = vunpack.c.l.b16 %v419
        %v504 = vunpack.c.l.b16 %v420
        %v505 = vunpack.c.l.b16 %v421
        %v506 = vunpack.c.l.b16 %v422
        %v507 = vunpack.c.l.b16 %v423
        %v508 = vunpack.c.l.b16 %v424
        %v509 = vunpack.c.l.b16 %v425
        %v510 = vunpack.c.l.b16 %v426
        %v511 = vunpack.c.l.b16 %v427
        %v512 = vunpack.c.l.b16 %v428
        %v513 = vunpack.c.l.b16 %v429
        %v514 = vunpack.c.l.b16 %v430
        %v515 = vunpack.c.l.b16 %v431
        %v516 = vunpack.c.l.b16 %v432
        %v517 = vunpack.c.l.b16 %v433
        %v518 = vunpack.c.l.b16 %v434
        %v519 = vunpack.c.l.b16 %v435
        %v520 = vunpack.c.l.b16 %v436
        %v521 = vunpack.c.l.b16 %v437
        %v522 = vunpack.c.l.b16 %v438
        %v523 = vunpack.c.l.b16 %v439
        %v524 = vunpack.c.l.b16 %v440
        %v525 = vunpack.c.l.b16 %v441
        %v526 = vunpack.c.l.b16 %v442
        %v527 = vunpack.c.l.b16 %v443
        %v528 = vunpack.c.l.b16 %v444
        %v529 = vunpack.c.l.b16 %v445
        %v530 = vunpack.c.l.b16 %v446
        %v531 = vunpack.c.l.b16 %v447
        %v532 = vunpack.c.l.b16 %v448
        %v533 = vunpack.c.l.b16 %v449
        %v534 = vunpack.c.l.b16 %v450
        %v535 = vpack.c.b16 %v504, %v503
        %v536 = vpack.c.b16 %v506, %v505
        %v537 = vpack.c.b16 %v508, %v507
        %v538 = vpack.c.b16 %v510, %v509
        %v539 = vpack.c.b16 %v512, %v511
        %v540 = vpack.c.b16 %v514, %v513
        %v541 = vpack.c.b16 %v516, %v515
        %v542 = vpack.c.b16 %v518, %v517
        %v543 = vpack.c.b16 %v520, %v519
        %v544 = vpack.c.b16 %v522, %v521
        %v545 = vpack.c.b16 %v524, %v523
        %v546 = vpack.c.b16 %v526, %v525
        %v547 = vpack.c.b16 %v528, %v527
        %v548 = vpack.c.b16 %v530, %v529
        %v549 = vpack.c.b16 %v532, %v531
        %v550 = vpack.c.b16 %v534, %v533
        %v583 = vunpack.c.l.b16 %v451
        %v584 = vunpack.c.l.b16 %v452
        %v585 = vunpack.c.l.b16 %v453
        %v586 = vunpack.c.l.b16 %v454
        %v587 = vunpack.c.l.b16 %v455
        %v588 = vunpack.c.l.b16 %v456
        %v589 = vunpack.c.l.b16 %v457
        %v590 = vunpack.c.l.b16 %v458
        %v591 = vunpack.c.l.b16 %v459
        %v592 = vunpack.c.l.b16 %v460
        %v593 = vunpack.c.l.b16 %v461
        %v594 = vunpack.c.l.b16 %v462
        %v595 = vunpack.c.l.b16 %v463
        %v596 = vunpack.c.l.b16 %v464
        %v597 = vunpack.c.l.b16 %v465
        %v598 = vunpack.c.l.b16 %v466
        %v599 = vpack.c.b16 %v584, %v583
        %v600 = vpack.c.b16 %v586, %v585
        %v601 = vpack.c.b16 %v588, %v587
        %v602 = vpack.c.b16 %v590, %v589
        %v603 = vpack.c.b16 %v592, %v591
        %v604 = vpack.c.b16 %v594, %v593
        %v605 = vpack.c.b16 %v596, %v595
        %v606 = vpack.c.b16 %v598, %v597
        %615 = vmatpush.bf16.msra.mxu0 %v606
        %616 = vmatpush.bf16.msra.mxu0 %v605
        %617 = vmatpush.bf16.msra.mxu0 %v604
        %618 = vmatpush.bf16.msra.mxu0 %v603
        %619 = vmatpush.bf16.msra.mxu0 %v602
        %620 = vmatpush.bf16.msra.mxu0 %v601
        %621 = vmatpush.bf16.msra.mxu0 %v600
        %622 = vmatpush.bf16.msra.mxu0 %v599
        %623 = vmatmul.bf16.gmra.mxu0 %v535
        %v624 = vpop.f32.mrf.mxu0
        %v625 = vadd.f32 %v469, %v624
        %v626 = vpop.f32.mrf.mxu0
        %v627 = vadd.f32 %v469, %v626
        %628 = vmatmul.bf16.gmra.mxu0 %v536
        %v629 = vpop.f32.mrf.mxu0
        %v630 = vadd.f32 %v469, %v629
        %v631 = vpop.f32.mrf.mxu0
        %v632 = vadd.f32 %v469, %v631
        %633 = vmatmul.bf16.gmra.mxu0 %v537
        %v634 = vpop.f32.mrf.mxu0
        %v635 = vadd.f32 %v469, %v634
        %v636 = vpop.f32.mrf.mxu0
        %v637 = vadd.f32 %v469, %v636
        %638 = vmatmul.bf16.gmra.mxu0 %v538
        %v639 = vpop.f32.mrf.mxu0
        %v640 = vadd.f32 %v469, %v639
        %v641 = vpop.f32.mrf.mxu0
        %v642 = vadd.f32 %v469, %v641
        %643 = vmatmul.bf16.gmra.mxu0 %v539
        %v644 = vpop.f32.mrf.mxu0
        %v645 = vadd.f32 %v469, %v644
        %v646 = vpop.f32.mrf.mxu0
        %v647 = vadd.f32 %v469, %v646
        %648 = vmatmul.bf16.gmra.mxu0 %v540
        %v649 = vpop.f32.mrf.mxu0
        %v650 = vadd.f32 %v469, %v649
        %v651 = vpop.f32.mrf.mxu0
        %v652 = vadd.f32 %v469, %v651
        %653 = vmatmul.bf16.gmra.mxu0 %v541
        %v654 = vpop.f32.mrf.mxu0
        %v655 = vadd.f32 %v469, %v654
        %v656 = vpop.f32.mrf.mxu0
        %v657 = vadd.f32 %v469, %v656
        %658 = vmatmul.bf16.gmra.mxu0 %v542
        %v659 = vpop.f32.mrf.mxu0
        %v660 = vadd.f32 %v469, %v659
        %v661 = vpop.f32.mrf.mxu0
        %v662 = vadd.f32 %v469, %v661
        %663 = vmatmul.bf16.gmra.mxu0 %v543
        %v664 = vpop.f32.mrf.mxu0
        %v665 = vadd.f32 %v469, %v664
        %v666 = vpop.f32.mrf.mxu0
        %v667 = vadd.f32 %v469, %v666
        %668 = vmatmul.bf16.gmra.mxu0 %v544
        %v669 = vpop.f32.mrf.mxu0
        %v670 = vadd.f32 %v469, %v669
        %v671 = vpop.f32.mrf.mxu0
        %v672 = vadd.f32 %v469, %v671
        %673 = vmatmul.bf16.gmra.mxu0 %v545
        %v674 = vpop.f32.mrf.mxu0
        %v675 = vadd.f32 %v469, %v674
        %v676 = vpop.f32.mrf.mxu0
        %v677 = vadd.f32 %v469, %v676
        %678 = vmatmul.bf16.gmra.mxu0 %v546
        %v679 = vpop.f32.mrf.mxu0
        %v680 = vadd.f32 %v469, %v679
        %v681 = vpop.f32.mrf.mxu0
        %v682 = vadd.f32 %v469, %v681
        %683 = vmatmul.bf16.gmra.mxu0 %v547
        %v684 = vpop.f32.mrf.mxu0
        %v685 = vadd.f32 %v469, %v684
        %v686 = vpop.f32.mrf.mxu0
        %v687 = vadd.f32 %v469, %v686
        %688 = vmatmul.bf16.gmra.mxu0 %v548
        %v689 = vpop.f32.mrf.mxu0
        %v690 = vadd.f32 %v469, %v689
        %v691 = vpop.f32.mrf.mxu0
        %v692 = vadd.f32 %v469, %v691
        %693 = vmatmul.bf16.gmra.mxu0 %v549
        %v694 = vpop.f32.mrf.mxu0
        %v695 = vadd.f32 %v469, %v694
        %v696 = vpop.f32.mrf.mxu0
        %v697 = vadd.f32 %v469, %v696
        %698 = vmatmul.bf16.gmra.mxu0 %v550
        %v699 = vpop.f32.mrf.mxu0
        %v700 = vadd.f32 %v469, %v699
        %v701 = vpop.f32.mrf.mxu0
        %v702 = vadd.f32 %v469, %v701
        %703 = vdwg.mxu0
        %v704 = vmax.f32 %v625, 0.0
        %v705 = vmax.f32 %v627, 0.0
        %v706 = vmax.f32 %v630, 0.0
        %v707 = vmax.f32 %v632, 0.0
        %v708 = vmax.f32 %v635, 0.0
        %v709 = vmax.f32 %v637, 0.0
        %v710 = vmax.f32 %v640, 0.0
        %v711 = vmax.f32 %v642, 0.0
        %v712 = vmax.f32 %v645, 0.0
        %v713 = vmax.f32 %v647, 0.0
        %v714 = vmax.f32 %v650, 0.0
        %v715 = vmax.f32 %v652, 0.0
        %v716 = vmax.f32 %v655, 0.0
        %v717 = vmax.f32 %v657, 0.0
        %v718 = vmax.f32 %v660, 0.0
        %v719 = vmax.f32 %v662, 0.0
        %v720 = vmax.f32 %v665, 0.0
        %v721 = vmax.f32 %v667, 0.0
        %v722 = vmax.f32 %v670, 0.0
        %v723 = vmax.f32 %v672, 0.0
        %v724 = vmax.f32 %v675, 0.0
        %v725 = vmax.f32 %v677, 0.0
        %v726 = vmax.f32 %v680, 0.0
        %v727 = vmax.f32 %v682, 0.0
        %v728 = vmax.f32 %v685, 0.0
        %v729 = vmax.f32 %v687, 0.0
        %v730 = vmax.f32 %v690, 0.0
        %v731 = vmax.f32 %v692, 0.0
        %v732 = vmax.f32 %v695, 0.0
        %v733 = vmax.f32 %v697, 0.0
        %v734 = vmax.f32 %v700, 0.0
        %v735 = vmax.f32 %v702, 0.0
        %v736 = vlaneseq
        %v737 = vshrl.u32 %v736, 7
        %v738 = vadd.s32 %v737, 8
        %v739 = vadd.s32 %v737, 16
        %v740 = vadd.s32 %v737, 24
        %v741 = vadd.s32 %v737, 32
        %v742 = vadd.s32 %v737, 40
        %v743 = vadd.s32 %v737, 48
        %v744 = vadd.s32 %v737, 56
        %v745 = vadd.s32 %v737, 64
        %v746 = vadd.s32 %v737, 72
        %v747 = vadd.s32 %v737, 80
        %v748 = vadd.s32 %v737, 88
        %v749 = vadd.s32 %v737, 96
        %v750 = vadd.s32 %v737, 104
        %v751 = vadd.s32 %v737, 112
        %v752 = vadd.s32 %v737, 120
        %v753 = vadd.s32 %v737, 128
        %v754 = vadd.s32 %v737, 136
        %v755 = vadd.s32 %v737, 144
        %v756 = vadd.s32 %v737, 152
        %v757 = vadd.s32 %v737, 160
        %v758 = vadd.s32 %v737, 168
        %v759 = vadd.s32 %v737, 176
        %v760 = vadd.s32 %v737, 184
        %v761 = vadd.s32 %v737, 192
        %v762 = vadd.s32 %v737, 200
        %v763 = vadd.s32 %v737, 208
        %v764 = vadd.s32 %v737, 216
        %v765 = vadd.s32 %v737, 224
        %v766 = vadd.s32 %v737, 232
        %v767 = vadd.s32 %v737, 240
        %v768 = vadd.s32 %v737, 248
        %vm769 = vcmp.lt.s32.totalorder %v737, 0
        %v770 = vsub.s32 0, %v737
        %v771 = vsel %vm769, %v770, %v737
        %v772 = vshrl.u32 %v771, 4
        %v773 = vand.u32 %v771, 15
        %v774 = vsub.s32 0, %v773
        %v775 = vsel %vm769, %v774, %v773
        %vm776 = vcmp.lt.s32.totalorder %v738, 0
        %v777 = vsub.s32 0, %v738
        %v778 = vsel %vm776, %v777, %v738
        %v779 = vshrl.u32 %v778, 4
        %v780 = vand.u32 %v778, 15
        %v781 = vsub.s32 0, %v780
        %v782 = vsel %vm776, %v781, %v780
        %vm783 = vcmp.lt.s32.totalorder %v739, 0
        %v784 = vsub.s32 0, %v739
        %v785 = vsel %vm783, %v784, %v739
        %v786 = vshrl.u32 %v785, 4
        %v787 = vand.u32 %v785, 15
        %v788 = vsub.s32 0, %v787
        %v789 = vsel %vm783, %v788, %v787
        %vm790 = vcmp.lt.s32.totalorder %v740, 0
        %v791 = vsub.s32 0, %v740
        %v792 = vsel %vm790, %v791, %v740
        %v793 = vshrl.u32 %v792, 4
        %v794 = vand.u32 %v792, 15
        %v795 = vsub.s32 0, %v794
        %v796 = vsel %vm790, %v795, %v794
        %vm797 = vcmp.lt.s32.totalorder %v741, 0
        %v798 = vsub.s32 0, %v741
        %v799 = vsel %vm797, %v798, %v741
        %v800 = vshrl.u32 %v799, 4
        %v801 = vand.u32 %v799, 15
        %v802 = vsub.s32 0, %v801
        %v803 = vsel %vm797, %v802, %v801
        %vm804 = vcmp.lt.s32.totalorder %v742, 0
        %v805 = vsub.s32 0, %v742
        %v806 = vsel %vm804, %v805, %v742
        %v807 = vshrl.u32 %v806, 4
        %v808 = vand.u32 %v806, 15
        %v809 = vsub.s32 0, %v808
        %v810 = vsel %vm804, %v809, %v808
        %vm811 = vcmp.lt.s32.totalorder %v743, 0
        %v812 = vsub.s32 0, %v743
        %v813 = vsel %vm811, %v812, %v743
        %v814 = vshrl.u32 %v813, 4
        %v815 = vand.u32 %v813, 15
        %v816 = vsub.s32 0, %v815
        %v817 = vsel %vm811, %v816, %v815
        %vm818 = vcmp.lt.s32.totalorder %v744, 0
        %v819 = vsub.s32 0, %v744
        %v820 = vsel %vm818, %v819, %v744
        %v821 = vshrl.u32 %v820, 4
        %v822 = vand.u32 %v820, 15
        %v823 = vsub.s32 0, %v822
        %v824 = vsel %vm818, %v823, %v822
        %vm825 = vcmp.lt.s32.totalorder %v745, 0
        %v826 = vsub.s32 0, %v745
        %v827 = vsel %vm825, %v826, %v745
        %v828 = vshrl.u32 %v827, 4
        %v829 = vand.u32 %v827, 15
        %v830 = vsub.s32 0, %v829
        %v831 = vsel %vm825, %v830, %v829
        %vm832 = vcmp.lt.s32.totalorder %v746, 0
        %v833 = vsub.s32 0, %v746
        %v834 = vsel %vm832, %v833, %v746
        %v835 = vshrl.u32 %v834, 4
        %v836 = vand.u32 %v834, 15
        %v837 = vsub.s32 0, %v836
        %v838 = vsel %vm832, %v837, %v836
        %vm839 = vcmp.lt.s32.totalorder %v747, 0
        %v840 = vsub.s32 0, %v747
        %v841 = vsel %vm839, %v840, %v747
        %v842 = vshrl.u32 %v841, 4
        %v843 = vand.u32 %v841, 15
        %v844 = vsub.s32 0, %v843
        %v845 = vsel %vm839, %v844, %v843
        %vm846 = vcmp.lt.s32.totalorder %v748, 0
        %v847 = vsub.s32 0, %v748
        %v848 = vsel %vm846, %v847, %v748
        %v849 = vshrl.u32 %v848, 4
        %v850 = vand.u32 %v848, 15
        %v851 = vsub.s32 0, %v850
        %v852 = vsel %vm846, %v851, %v850
        %vm853 = vcmp.lt.s32.totalorder %v749, 0
        %v854 = vsub.s32 0, %v749
        %v855 = vsel %vm853, %v854, %v749
        %v856 = vshrl.u32 %v855, 4
        %v857 = vand.u32 %v855, 15
        %v858 = vsub.s32 0, %v857
        %v859 = vsel %vm853, %v858, %v857
        %vm860 = vcmp.lt.s32.totalorder %v750, 0
        %v861 = vsub.s32 0, %v750
        %v862 = vsel %vm860, %v861, %v750
        %v863 = vshrl.u32 %v862, 4
        %v864 = vand.u32 %v862, 15
        %v865 = vsub.s32 0, %v864
        %v866 = vsel %vm860, %v865, %v864
        %vm867 = vcmp.lt.s32.totalorder %v751, 0
        %v868 = vsub.s32 0, %v751
        %v869 = vsel %vm867, %v868, %v751
        %v870 = vshrl.u32 %v869, 4
        %v871 = vand.u32 %v869, 15
        %v872 = vsub.s32 0, %v871
        %v873 = vsel %vm867, %v872, %v871
        %vm874 = vcmp.lt.s32.totalorder %v752, 0
        %v875 = vsub.s32 0, %v752
        %v876 = vsel %vm874, %v875, %v752
        %v877 = vshrl.u32 %v876, 4
        %v878 = vand.u32 %v876, 15
        %v879 = vsub.s32 0, %v878
        %v880 = vsel %vm874, %v879, %v878
        %vm881 = vcmp.lt.s32.totalorder %v753, 0
        %v882 = vsub.s32 0, %v753
        %v883 = vsel %vm881, %v882, %v753
        %v884 = vshrl.u32 %v883, 4
        %v885 = vand.u32 %v883, 15
        %v886 = vsub.s32 0, %v885
        %v887 = vsel %vm881, %v886, %v885
        %vm888 = vcmp.lt.s32.totalorder %v754, 0
        %v889 = vsub.s32 0, %v754
        %v890 = vsel %vm888, %v889, %v754
        %v891 = vshrl.u32 %v890, 4
        %v892 = vand.u32 %v890, 15
        %v893 = vsub.s32 0, %v892
        %v894 = vsel %vm888, %v893, %v892
        %vm895 = vcmp.lt.s32.totalorder %v755, 0
        %v896 = vsub.s32 0, %v755
        %v897 = vsel %vm895, %v896, %v755
        %v898 = vshrl.u32 %v897, 4
        %v899 = vand.u32 %v897, 15
        %v900 = vsub.s32 0, %v899
        %v901 = vsel %vm895, %v900, %v899
        %vm902 = vcmp.lt.s32.totalorder %v756, 0
        %v903 = vsub.s32 0, %v756
        %v904 = vsel %vm902, %v903, %v756
        %v905 = vshrl.u32 %v904, 4
        %v906 = vand.u32 %v904, 15
        %v907 = vsub.s32 0, %v906
        %v908 = vsel %vm902, %v907, %v906
        %vm909 = vcmp.lt.s32.totalorder %v757, 0
        %v910 = vsub.s32 0, %v757
        %v911 = vsel %vm909, %v910, %v757
        %v912 = vshrl.u32 %v911, 4
        %v913 = vand.u32 %v911, 15
        %v914 = vsub.s32 0, %v913
        %v915 = vsel %vm909, %v914, %v913
        %vm916 = vcmp.lt.s32.totalorder %v758, 0
        %v917 = vsub.s32 0, %v758
        %v918 = vsel %vm916, %v917, %v758
        %v919 = vshrl.u32 %v918, 4
        %v920 = vand.u32 %v918, 15
        %v921 = vsub.s32 0, %v920
        %v922 = vsel %vm916, %v921, %v920
        %vm923 = vcmp.lt.s32.totalorder %v759, 0
        %v924 = vsub.s32 0, %v759
        %v925 = vsel %vm923, %v924, %v759
        %v926 = vshrl.u32 %v925, 4
        %v927 = vand.u32 %v925, 15
        %v928 = vsub.s32 0, %v927
        %v929 = vsel %vm923, %v928, %v927
        %vm930 = vcmp.lt.s32.totalorder %v760, 0
        %v931 = vsub.s32 0, %v760
        %v932 = vsel %vm930, %v931, %v760
        %v933 = vshrl.u32 %v932, 4
        %v934 = vand.u32 %v932, 15
        %v935 = vsub.s32 0, %v934
        %v936 = vsel %vm930, %v935, %v934
        %vm937 = vcmp.lt.s32.totalorder %v761, 0
        %v938 = vsub.s32 0, %v761
        %v939 = vsel %vm937, %v938, %v761
        %v940 = vshrl.u32 %v939, 4
        %v941 = vand.u32 %v939, 15
        %v942 = vsub.s32 0, %v941
        %v943 = vsel %vm937, %v942, %v941
        %vm944 = vcmp.lt.s32.totalorder %v762, 0
        %v945 = vsub.s32 0, %v762
        %v946 = vsel %vm944, %v945, %v762
        %v947 = vshrl.u32 %v946, 4
        %v948 = vand.u32 %v946, 15
        %v949 = vsub.s32 0, %v948
        %v950 = vsel %vm944, %v949, %v948
        %vm951 = vcmp.lt.s32.totalorder %v763, 0
        %v952 = vsub.s32 0, %v763
        %v953 = vsel %vm951, %v952, %v763
        %v954 = vshrl.u32 %v953, 4
        %v955 = vand.u32 %v953, 15
        %v956 = vsub.s32 0, %v955
        %v957 = vsel %vm951, %v956, %v955
        %vm958 = vcmp.lt.s32.totalorder %v764, 0
        %v959 = vsub.s32 0, %v764
        %v960 = vsel %vm958, %v959, %v764
        %v961 = vshrl.u32 %v960, 4
        %v962 = vand.u32 %v960, 15
        %v963 = vsub.s32 0, %v962
        %v964 = vsel %vm958, %v963, %v962
        %vm965 = vcmp.lt.s32.totalorder %v765, 0
        %v966 = vsub.s32 0, %v765
        %v967 = vsel %vm965, %v966, %v765
        %v968 = vshrl.u32 %v967, 4
        %v969 = vand.u32 %v967, 15
        %v970 = vsub.s32 0, %v969
        %v971 = vsel %vm965, %v970, %v969
        %vm972 = vcmp.lt.s32.totalorder %v766, 0
        %v973 = vsub.s32 0, %v766
        %v974 = vsel %vm972, %v973, %v766
        %v975 = vshrl.u32 %v974, 4
        %v976 = vand.u32 %v974, 15
        %v977 = vsub.s32 0, %v976
        %v978 = vsel %vm972, %v977, %v976
        %vm979 = vcmp.lt.s32.totalorder %v767, 0
        %v980 = vsub.s32 0, %v767
        %v981 = vsel %vm979, %v980, %v767
        %v982 = vshrl.u32 %v981, 4
        %v983 = vand.u32 %v981, 15
        %v984 = vsub.s32 0, %v983
        %v985 = vsel %vm979, %v984, %v983
        %vm986 = vcmp.lt.s32.totalorder %v768, 0
        %v987 = vsub.s32 0, %v768
        %v988 = vsel %vm986, %v987, %v768
        %v989 = vshrl.u32 %v988, 4
        %v990 = vand.u32 %v988, 15
        %v991 = vsub.s32 0, %v990
        %v992 = vsel %vm986, %v991, %v990
        %vm993 = vcmp.ne.s32.totalorder %v775, 0
        %vm994 = vcmp.ne.s32.totalorder %v782, 0
        %vm995 = vcmp.ne.s32.totalorder %v789, 0
        %vm996 = vcmp.ne.s32.totalorder %v796, 0
        %vm997 = vcmp.ne.s32.totalorder %v803, 0
        %vm998 = vcmp.ne.s32.totalorder %v810, 0
        %vm999 = vcmp.ne.s32.totalorder %v817, 0
        %vm1000 = vcmp.ne.s32.totalorder %v824, 0
        %vm1001 = vcmp.ne.s32.totalorder %v831, 0
        %vm1002 = vcmp.ne.s32.totalorder %v838, 0
        %vm1003 = vcmp.ne.s32.totalorder %v845, 0
        %vm1004 = vcmp.ne.s32.totalorder %v852, 0
        %vm1005 = vcmp.ne.s32.totalorder %v859, 0
        %vm1006 = vcmp.ne.s32.totalorder %v866, 0
        %vm1007 = vcmp.ne.s32.totalorder %v873, 0
        %vm1008 = vcmp.ne.s32.totalorder %v880, 0
        %vm1009 = vcmp.ne.s32.totalorder %v887, 0
        %vm1010 = vcmp.ne.s32.totalorder %v894, 0
        %vm1011 = vcmp.ne.s32.totalorder %v901, 0
        %vm1012 = vcmp.ne.s32.totalorder %v908, 0
        %vm1013 = vcmp.ne.s32.totalorder %v915, 0
        %vm1014 = vcmp.ne.s32.totalorder %v922, 0
        %vm1015 = vcmp.ne.s32.totalorder %v929, 0
        %vm1016 = vcmp.ne.s32.totalorder %v936, 0
        %vm1017 = vcmp.ne.s32.totalorder %v943, 0
        %vm1018 = vcmp.ne.s32.totalorder %v950, 0
        %vm1019 = vcmp.ne.s32.totalorder %v957, 0
        %vm1020 = vcmp.ne.s32.totalorder %v964, 0
        %vm1021 = vcmp.ne.s32.totalorder %v971, 0
        %vm1022 = vcmp.ne.s32.totalorder %v978, 0
        %vm1023 = vcmp.ne.s32.totalorder %v985, 0
        %vm1024 = vcmp.ne.s32.totalorder %v992, 0
        %vm1025 = vcmp.lt.s32.totalorder %v775, 0
        %vm1026 = vcmp.lt.s32.totalorder %v782, 0
        %vm1027 = vcmp.lt.s32.totalorder %v789, 0
        %vm1028 = vcmp.lt.s32.totalorder %v796, 0
        %vm1029 = vcmp.lt.s32.totalorder %v803, 0
        %vm1030 = vcmp.lt.s32.totalorder %v810, 0
        %vm1031 = vcmp.lt.s32.totalorder %v817, 0
        %vm1032 = vcmp.lt.s32.totalorder %v824, 0
        %vm1033 = vcmp.lt.s32.totalorder %v831, 0
        %vm1034 = vcmp.lt.s32.totalorder %v838, 0
        %vm1035 = vcmp.lt.s32.totalorder %v845, 0
        %vm1036 = vcmp.lt.s32.totalorder %v852, 0
        %vm1037 = vcmp.lt.s32.totalorder %v859, 0
        %vm1038 = vcmp.lt.s32.totalorder %v866, 0
        %vm1039 = vcmp.lt.s32.totalorder %v873, 0
        %vm1040 = vcmp.lt.s32.totalorder %v880, 0
        %vm1041 = vcmp.lt.s32.totalorder %v887, 0
        %vm1042 = vcmp.lt.s32.totalorder %v894, 0
        %vm1043 = vcmp.lt.s32.totalorder %v901, 0
        %vm1044 = vcmp.lt.s32.totalorder %v908, 0
        %vm1045 = vcmp.lt.s32.totalorder %v915, 0
        %vm1046 = vcmp.lt.s32.totalorder %v922, 0
        %vm1047 = vcmp.lt.s32.totalorder %v929, 0
        %vm1048 = vcmp.lt.s32.totalorder %v936, 0
        %vm1049 = vcmp.lt.s32.totalorder %v943, 0
        %vm1050 = vcmp.lt.s32.totalorder %v950, 0
        %vm1051 = vcmp.lt.s32.totalorder %v957, 0
        %vm1052 = vcmp.lt.s32.totalorder %v964, 0
        %vm1053 = vcmp.lt.s32.totalorder %v971, 0
        %vm1054 = vcmp.lt.s32.totalorder %v978, 0
        %vm1055 = vcmp.lt.s32.totalorder %v985, 0
        %vm1056 = vcmp.lt.s32.totalorder %v992, 0
        %vm1057 = vmand %vm1025, %vm993
        %vm1058 = vmand %vm1026, %vm994
        %vm1059 = vmand %vm1027, %vm995
        %vm1060 = vmand %vm1028, %vm996
        %vm1061 = vmand %vm1029, %vm997
        %vm1062 = vmand %vm1030, %vm998
        %vm1063 = vmand %vm1031, %vm999
        %vm1064 = vmand %vm1032, %vm1000
        %vm1065 = vmand %vm1033, %vm1001
        %vm1066 = vmand %vm1034, %vm1002
        %vm1067 = vmand %vm1035, %vm1003
        %vm1068 = vmand %vm1036, %vm1004
        %vm1069 = vmand %vm1037, %vm1005
        %vm1070 = vmand %vm1038, %vm1006
        %vm1071 = vmand %vm1039, %vm1007
        %vm1072 = vmand %vm1040, %vm1008
        %vm1073 = vmand %vm1041, %vm1009
        %vm1074 = vmand %vm1042, %vm1010
        %vm1075 = vmand %vm1043, %vm1011
        %vm1076 = vmand %vm1044, %vm1012
        %vm1077 = vmand %vm1045, %vm1013
        %vm1078 = vmand %vm1046, %vm1014
        %vm1079 = vmand %vm1047, %vm1015
        %vm1080 = vmand %vm1048, %vm1016
        %vm1081 = vmand %vm1049, %vm1017
        %vm1082 = vmand %vm1050, %vm1018
        %vm1083 = vmand %vm1051, %vm1019
        %vm1084 = vmand %vm1052, %vm1020
        %vm1085 = vmand %vm1053, %vm1021
        %vm1086 = vmand %vm1054, %vm1022
        %vm1087 = vmand %vm1055, %vm1023
        %vm1088 = vmand %vm1056, %vm1024
        %v1089 = vadd.s32 %v775, 16
        %v1090 = vadd.s32 %v782, 16
        %v1091 = vadd.s32 %v789, 16
        %v1092 = vadd.s32 %v796, 16
        %v1093 = vadd.s32 %v803, 16
        %v1094 = vadd.s32 %v810, 16
        %v1095 = vadd.s32 %v817, 16
        %v1096 = vadd.s32 %v824, 16
        %v1097 = vadd.s32 %v831, 16
        %v1098 = vadd.s32 %v838, 16
        %v1099 = vadd.s32 %v845, 16
        %v1100 = vadd.s32 %v852, 16
        %v1101 = vadd.s32 %v859, 16
        %v1102 = vadd.s32 %v866, 16
        %v1103 = vadd.s32 %v873, 16
        %v1104 = vadd.s32 %v880, 16
        %v1105 = vadd.s32 %v887, 16
        %v1106 = vadd.s32 %v894, 16
        %v1107 = vadd.s32 %v901, 16
        %v1108 = vadd.s32 %v908, 16
        %v1109 = vadd.s32 %v915, 16
        %v1110 = vadd.s32 %v922, 16
        %v1111 = vadd.s32 %v929, 16
        %v1112 = vadd.s32 %v936, 16
        %v1113 = vadd.s32 %v943, 16
        %v1114 = vadd.s32 %v950, 16
        %v1115 = vadd.s32 %v957, 16
        %v1116 = vadd.s32 %v964, 16
        %v1117 = vadd.s32 %v971, 16
        %v1118 = vadd.s32 %v978, 16
        %v1119 = vadd.s32 %v985, 16
        %v1120 = vadd.s32 %v992, 16
        %v1121 = vsel %vm1057, %v1089, %v775
        %v1122 = vsel %vm1058, %v1090, %v782
        %v1123 = vsel %vm1059, %v1091, %v789
        %v1124 = vsel %vm1060, %v1092, %v796
        %v1125 = vsel %vm1061, %v1093, %v803
        %v1126 = vsel %vm1062, %v1094, %v810
        %v1127 = vsel %vm1063, %v1095, %v817
        %v1128 = vsel %vm1064, %v1096, %v824
        %v1129 = vsel %vm1065, %v1097, %v831
        %v1130 = vsel %vm1066, %v1098, %v838
        %v1131 = vsel %vm1067, %v1099, %v845
        %v1132 = vsel %vm1068, %v1100, %v852
        %v1133 = vsel %vm1069, %v1101, %v859
        %v1134 = vsel %vm1070, %v1102, %v866
        %v1135 = vsel %vm1071, %v1103, %v873
        %v1136 = vsel %vm1072, %v1104, %v880
        %v1137 = vsel %vm1073, %v1105, %v887
        %v1138 = vsel %vm1074, %v1106, %v894
        %v1139 = vsel %vm1075, %v1107, %v901
        %v1140 = vsel %vm1076, %v1108, %v908
        %v1141 = vsel %vm1077, %v1109, %v915
        %v1142 = vsel %vm1078, %v1110, %v922
        %v1143 = vsel %vm1079, %v1111, %v929
        %v1144 = vsel %vm1080, %v1112, %v936
        %v1145 = vsel %vm1081, %v1113, %v943
        %v1146 = vsel %vm1082, %v1114, %v950
        %v1147 = vsel %vm1083, %v1115, %v957
        %v1148 = vsel %vm1084, %v1116, %v964
        %v1149 = vsel %vm1085, %v1117, %v971
        %v1150 = vsel %vm1086, %v1118, %v978
        %v1151 = vsel %vm1087, %v1119, %v985
        %v1152 = vsel %vm1088, %v1120, %v992
        %vm1153 = vcmp.ge.s32.totalorder %v737, 16
        %vm1154 = vcmp.ge.s32.totalorder %v738, 16
        %vm1155 = vcmp.ge.s32.totalorder %v739, 16
        %vm1156 = vcmp.ge.s32.totalorder %v740, 16
        %vm1157 = vcmp.ge.s32.totalorder %v741, 16
        %vm1158 = vcmp.ge.s32.totalorder %v742, 16
        %vm1159 = vcmp.ge.s32.totalorder %v743, 16
        %vm1160 = vcmp.ge.s32.totalorder %v744, 16
        %vm1161 = vcmp.ge.s32.totalorder %v745, 16
        %vm1162 = vcmp.ge.s32.totalorder %v746, 16
        %vm1163 = vcmp.ge.s32.totalorder %v747, 16
        %vm1164 = vcmp.ge.s32.totalorder %v748, 16
        %vm1165 = vcmp.ge.s32.totalorder %v749, 16
        %vm1166 = vcmp.ge.s32.totalorder %v750, 16
        %vm1167 = vcmp.ge.s32.totalorder %v751, 16
        %vm1168 = vcmp.ge.s32.totalorder %v752, 16
        %vm1169 = vcmp.ge.s32.totalorder %v753, 16
        %vm1170 = vcmp.ge.s32.totalorder %v754, 16
        %vm1171 = vcmp.ge.s32.totalorder %v755, 16
        %vm1172 = vcmp.ge.s32.totalorder %v756, 16
        %vm1173 = vcmp.ge.s32.totalorder %v757, 16
        %vm1174 = vcmp.ge.s32.totalorder %v758, 16
        %vm1175 = vcmp.ge.s32.totalorder %v759, 16
        %vm1176 = vcmp.ge.s32.totalorder %v760, 16
        %vm1177 = vcmp.ge.s32.totalorder %v761, 16
        %vm1178 = vcmp.ge.s32.totalorder %v762, 16
        %vm1179 = vcmp.ge.s32.totalorder %v763, 16
        %vm1180 = vcmp.ge.s32.totalorder %v764, 16
        %vm1181 = vcmp.ge.s32.totalorder %v765, 16
        %vm1182 = vcmp.ge.s32.totalorder %v766, 16
        %vm1183 = vcmp.ge.s32.totalorder %v767, 16
        %vm1184 = vcmp.ge.s32.totalorder %v768, 16
        %vm1185 = vcmp.lt.s32.totalorder %v737, 240
        %vm1186 = vcmp.lt.s32.totalorder %v738, 240
        %vm1187 = vcmp.lt.s32.totalorder %v739, 240
        %vm1188 = vcmp.lt.s32.totalorder %v740, 240
        %vm1189 = vcmp.lt.s32.totalorder %v741, 240
        %vm1190 = vcmp.lt.s32.totalorder %v742, 240
        %vm1191 = vcmp.lt.s32.totalorder %v743, 240
        %vm1192 = vcmp.lt.s32.totalorder %v744, 240
        %vm1193 = vcmp.lt.s32.totalorder %v745, 240
        %vm1194 = vcmp.lt.s32.totalorder %v746, 240
        %vm1195 = vcmp.lt.s32.totalorder %v747, 240
        %vm1196 = vcmp.lt.s32.totalorder %v748, 240
        %vm1197 = vcmp.lt.s32.totalorder %v749, 240
        %vm1198 = vcmp.lt.s32.totalorder %v750, 240
        %vm1199 = vcmp.lt.s32.totalorder %v751, 240
        %vm1200 = vcmp.lt.s32.totalorder %v752, 240
        %vm1201 = vcmp.lt.s32.totalorder %v753, 240
        %vm1202 = vcmp.lt.s32.totalorder %v754, 240
        %vm1203 = vcmp.lt.s32.totalorder %v755, 240
        %vm1204 = vcmp.lt.s32.totalorder %v756, 240
        %vm1205 = vcmp.lt.s32.totalorder %v757, 240
        %vm1206 = vcmp.lt.s32.totalorder %v758, 240
        %vm1207 = vcmp.lt.s32.totalorder %v759, 240
        %vm1208 = vcmp.lt.s32.totalorder %v760, 240
        %vm1209 = vcmp.lt.s32.totalorder %v761, 240
        %vm1210 = vcmp.lt.s32.totalorder %v762, 240
        %vm1211 = vcmp.lt.s32.totalorder %v763, 240
        %vm1212 = vcmp.lt.s32.totalorder %v764, 240
        %vm1213 = vcmp.lt.s32.totalorder %v765, 240
        %vm1214 = vcmp.lt.s32.totalorder %v766, 240
        %vm1215 = vcmp.lt.s32.totalorder %v767, 240
        %vm1216 = vcmp.lt.s32.totalorder %v768, 240
        %vm1217 = vcmp.ne.s32.totalorder %v1121, 0
        %vm1218 = vcmp.ne.s32.totalorder %v1122, 0
        %vm1219 = vcmp.ne.s32.totalorder %v1123, 0
        %vm1220 = vcmp.ne.s32.totalorder %v1124, 0
        %vm1221 = vcmp.ne.s32.totalorder %v1125, 0
        %vm1222 = vcmp.ne.s32.totalorder %v1126, 0
        %vm1223 = vcmp.ne.s32.totalorder %v1127, 0
        %vm1224 = vcmp.ne.s32.totalorder %v1128, 0
        %vm1225 = vcmp.ne.s32.totalorder %v1129, 0
        %vm1226 = vcmp.ne.s32.totalorder %v1130, 0
        %vm1227 = vcmp.ne.s32.totalorder %v1131, 0
        %vm1228 = vcmp.ne.s32.totalorder %v1132, 0
        %vm1229 = vcmp.ne.s32.totalorder %v1133, 0
        %vm1230 = vcmp.ne.s32.totalorder %v1134, 0
        %vm1231 = vcmp.ne.s32.totalorder %v1135, 0
        %vm1232 = vcmp.ne.s32.totalorder %v1136, 0
        %vm1233 = vcmp.ne.s32.totalorder %v1137, 0
        %vm1234 = vcmp.ne.s32.totalorder %v1138, 0
        %vm1235 = vcmp.ne.s32.totalorder %v1139, 0
        %vm1236 = vcmp.ne.s32.totalorder %v1140, 0
        %vm1237 = vcmp.ne.s32.totalorder %v1141, 0
        %vm1238 = vcmp.ne.s32.totalorder %v1142, 0
        %vm1239 = vcmp.ne.s32.totalorder %v1143, 0
        %vm1240 = vcmp.ne.s32.totalorder %v1144, 0
        %vm1241 = vcmp.ne.s32.totalorder %v1145, 0
        %vm1242 = vcmp.ne.s32.totalorder %v1146, 0
        %vm1243 = vcmp.ne.s32.totalorder %v1147, 0
        %vm1244 = vcmp.ne.s32.totalorder %v1148, 0
        %vm1245 = vcmp.ne.s32.totalorder %v1149, 0
        %vm1246 = vcmp.ne.s32.totalorder %v1150, 0
        %vm1247 = vcmp.ne.s32.totalorder %v1151, 0
        %vm1248 = vcmp.ne.s32.totalorder %v1152, 0
        %vm1249 = vcmp.ne.s32.totalorder %v1121, 15
        %vm1250 = vcmp.ne.s32.totalorder %v1122, 15
        %vm1251 = vcmp.ne.s32.totalorder %v1123, 15
        %vm1252 = vcmp.ne.s32.totalorder %v1124, 15
        %vm1253 = vcmp.ne.s32.totalorder %v1125, 15
        %vm1254 = vcmp.ne.s32.totalorder %v1126, 15
        %vm1255 = vcmp.ne.s32.totalorder %v1127, 15
        %vm1256 = vcmp.ne.s32.totalorder %v1128, 15
        %vm1257 = vcmp.ne.s32.totalorder %v1129, 15
        %vm1258 = vcmp.ne.s32.totalorder %v1130, 15
        %vm1259 = vcmp.ne.s32.totalorder %v1131, 15
        %vm1260 = vcmp.ne.s32.totalorder %v1132, 15
        %vm1261 = vcmp.ne.s32.totalorder %v1133, 15
        %vm1262 = vcmp.ne.s32.totalorder %v1134, 15
        %vm1263 = vcmp.ne.s32.totalorder %v1135, 15
        %vm1264 = vcmp.ne.s32.totalorder %v1136, 15
        %vm1265 = vcmp.ne.s32.totalorder %v1137, 15
        %vm1266 = vcmp.ne.s32.totalorder %v1138, 15
        %vm1267 = vcmp.ne.s32.totalorder %v1139, 15
        %vm1268 = vcmp.ne.s32.totalorder %v1140, 15
        %vm1269 = vcmp.ne.s32.totalorder %v1141, 15
        %vm1270 = vcmp.ne.s32.totalorder %v1142, 15
        %vm1271 = vcmp.ne.s32.totalorder %v1143, 15
        %vm1272 = vcmp.ne.s32.totalorder %v1144, 15
        %vm1273 = vcmp.ne.s32.totalorder %v1145, 15
        %vm1274 = vcmp.ne.s32.totalorder %v1146, 15
        %vm1275 = vcmp.ne.s32.totalorder %v1147, 15
        %vm1276 = vcmp.ne.s32.totalorder %v1148, 15
        %vm1277 = vcmp.ne.s32.totalorder %v1149, 15
        %vm1278 = vcmp.ne.s32.totalorder %v1150, 15
        %vm1279 = vcmp.ne.s32.totalorder %v1151, 15
        %vm1280 = vcmp.ne.s32.totalorder %v1152, 15
        %v1281 = vld [vmem:[%s4] sm:$0x1]
        %v1283 = vperm.slane %v1281, 0
        %v1285 = vrot.slane %v704, 7
        %v1286 = vrot.slane %v705, 7
        %v1287 = vrot.slane %v706, 7
        %v1288 = vrot.slane %v707, 7
        %v1289 = vrot.slane %v708, 7
        %v1290 = vrot.slane %v709, 7
        %v1291 = vrot.slane %v710, 7
        %v1292 = vrot.slane %v711, 7
        %v1293 = vrot.slane %v712, 7
        %v1294 = vrot.slane %v713, 7
        %v1295 = vrot.slane %v714, 7
        %v1296 = vrot.slane %v715, 7
        %v1297 = vrot.slane %v716, 7
        %v1298 = vrot.slane %v717, 7
        %v1299 = vrot.slane %v718, 7
        %v1300 = vrot.slane %v719, 7
        %v1301 = vrot.slane %v720, 7
        %v1302 = vrot.slane %v721, 7
        %v1303 = vrot.slane %v722, 7
        %v1304 = vrot.slane %v723, 7
        %v1305 = vrot.slane %v724, 7
        %v1306 = vrot.slane %v725, 7
        %v1307 = vrot.slane %v726, 7
        %v1308 = vrot.slane %v727, 7
        %v1309 = vrot.slane %v728, 7
        %v1310 = vrot.slane %v729, 7
        %v1311 = vrot.slane %v730, 7
        %v1312 = vrot.slane %v731, 7
        %v1313 = vrot.slane %v732, 7
        %v1314 = vrot.slane %v733, 7
        %v1315 = vrot.slane %v734, 7
        %v1316 = vrot.slane %v735, 7
        %vm1317 = vcmp.lt.s32.totalorder %v737, 1
        %v1318 = vsel %vm1317, %v1315, %v1316
        %v1319 = vsel %vm1317, %v1314, %v1315
        %v1320 = vsel %vm1317, %v1313, %v1314
        %v1321 = vsel %vm1317, %v1312, %v1313
        %v1322 = vsel %vm1317, %v1311, %v1312
        %v1323 = vsel %vm1317, %v1310, %v1311
        %v1324 = vsel %vm1317, %v1309, %v1310
        %v1325 = vsel %vm1317, %v1308, %v1309
        %v1326 = vsel %vm1317, %v1307, %v1308
        %v1327 = vsel %vm1317, %v1306, %v1307
        %v1328 = vsel %vm1317, %v1305, %v1306
        %v1329 = vsel %vm1317, %v1304, %v1305
        %v1330 = vsel %vm1317, %v1303, %v1304
        %v1331 = vsel %vm1317, %v1302, %v1303
        %v1332 = vsel %vm1317, %v1301, %v1302
        %v1333 = vsel %vm1317, %v1300, %v1301
        %v1334 = vsel %vm1317, %v1299, %v1300
        %v1335 = vsel %vm1317, %v1298, %v1299
        %v1336 = vsel %vm1317, %v1297, %v1298
        %v1337 = vsel %vm1317, %v1296, %v1297
        %v1338 = vsel %vm1317, %v1295, %v1296
        %v1339 = vsel %vm1317, %v1294, %v1295
        %v1340 = vsel %vm1317, %v1293, %v1294
        %v1341 = vsel %vm1317, %v1292, %v1293
        %v1342 = vsel %vm1317, %v1291, %v1292
        %v1343 = vsel %vm1317, %v1290, %v1291
        %v1344 = vsel %vm1317, %v1289, %v1290
        %v1345 = vsel %vm1317, %v1288, %v1289
        %v1346 = vsel %vm1317, %v1287, %v1288
        %v1347 = vsel %vm1317, %v1286, %v1287
        %v1348 = vsel %vm1317, %v1285, %v1286
        %v1349 = vsel %vm1317, %v1316, %v1285
        %vm1350 = vmand %vm1153, %vm1217
        %vm1351 = vmand %vm1154, %vm1218
        %vm1352 = vmand %vm1155, %vm1219
        %vm1353 = vmand %vm1156, %vm1220
        %vm1354 = vmand %vm1157, %vm1221
        %vm1355 = vmand %vm1158, %vm1222
        %vm1356 = vmand %vm1159, %vm1223
        %vm1357 = vmand %vm1160, %vm1224
        %vm1358 = vmand %vm1161, %vm1225
        %vm1359 = vmand %vm1162, %vm1226
        %vm1360 = vmand %vm1163, %vm1227
        %vm1361 = vmand %vm1164, %vm1228
        %vm1362 = vmand %vm1165, %vm1229
        %vm1363 = vmand %vm1166, %vm1230
        %vm1364 = vmand %vm1167, %vm1231
        %vm1365 = vmand %vm1168, %vm1232
        %vm1366 = vmand %vm1169, %vm1233
        %vm1367 = vmand %vm1170, %vm1234
        %vm1368 = vmand %vm1171, %vm1235
        %vm1369 = vmand %vm1172, %vm1236
        %vm1370 = vmand %vm1173, %vm1237
        %vm1371 = vmand %vm1174, %vm1238
        %vm1372 = vmand %vm1175, %vm1239
        %vm1373 = vmand %vm1176, %vm1240
        %vm1374 = vmand %vm1177, %vm1241
        %vm1375 = vmand %vm1178, %vm1242
        %vm1376 = vmand %vm1179, %vm1243
        %vm1377 = vmand %vm1180, %vm1244
        %vm1378 = vmand %vm1181, %vm1245
        %vm1379 = vmand %vm1182, %vm1246
        %vm1380 = vmand %vm1183, %vm1247
        %vm1381 = vmand %vm1184, %vm1248
        %v1382 = vsel %vm1350, 1, 0
        %v1383 = vsel %vm1351, 1, 0
        %v1384 = vsel %vm1352, 1, 0
        %v1385 = vsel %vm1353, 1, 0
        %v1386 = vsel %vm1354, 1, 0
        %v1387 = vsel %vm1355, 1, 0
        %v1388 = vsel %vm1356, 1, 0
        %v1389 = vsel %vm1357, 1, 0
        %v1390 = vsel %vm1358, 1, 0
        %v1391 = vsel %vm1359, 1, 0
        %v1392 = vsel %vm1360, 1, 0
        %v1393 = vsel %vm1361, 1, 0
        %v1394 = vsel %vm1362, 1, 0
        %v1395 = vsel %vm1363, 1, 0
        %v1396 = vsel %vm1364, 1, 0
        %v1397 = vsel %vm1365, 1, 0
        %v1398 = vsel %vm1366, 1, 0
        %v1399 = vsel %vm1367, 1, 0
        %v1400 = vsel %vm1368, 1, 0
        %v1401 = vsel %vm1369, 1, 0
        %v1402 = vsel %vm1370, 1, 0
        %v1403 = vsel %vm1371, 1, 0
        %v1404 = vsel %vm1372, 1, 0
        %v1405 = vsel %vm1373, 1, 0
        %v1406 = vsel %vm1374, 1, 0
        %v1407 = vsel %vm1375, 1, 0
        %v1408 = vsel %vm1376, 1, 0
        %v1409 = vsel %vm1377, 1, 0
        %v1410 = vsel %vm1378, 1, 0
        %v1411 = vsel %vm1379, 1, 0
        %v1412 = vsel %vm1380, 1, 0
        %v1413 = vsel %vm1381, 1, 0
        %vm1414 = vcmp.eq.s32.totalorder %v1382, 1
        %vm1415 = vcmp.eq.s32.totalorder %v1383, 1
        %vm1416 = vcmp.eq.s32.totalorder %v1384, 1
        %vm1417 = vcmp.eq.s32.totalorder %v1385, 1
        %vm1418 = vcmp.eq.s32.totalorder %v1386, 1
        %vm1419 = vcmp.eq.s32.totalorder %v1387, 1
        %vm1420 = vcmp.eq.s32.totalorder %v1388, 1
        %vm1421 = vcmp.eq.s32.totalorder %v1389, 1
        %vm1422 = vcmp.eq.s32.totalorder %v1390, 1
        %vm1423 = vcmp.eq.s32.totalorder %v1391, 1
        %vm1424 = vcmp.eq.s32.totalorder %v1392, 1
        %vm1425 = vcmp.eq.s32.totalorder %v1393, 1
        %vm1426 = vcmp.eq.s32.totalorder %v1394, 1
        %vm1427 = vcmp.eq.s32.totalorder %v1395, 1
        %vm1428 = vcmp.eq.s32.totalorder %v1396, 1
        %vm1429 = vcmp.eq.s32.totalorder %v1397, 1
        %vm1430 = vcmp.eq.s32.totalorder %v1398, 1
        %vm1431 = vcmp.eq.s32.totalorder %v1399, 1
        %vm1432 = vcmp.eq.s32.totalorder %v1400, 1
        %vm1433 = vcmp.eq.s32.totalorder %v1401, 1
        %vm1434 = vcmp.eq.s32.totalorder %v1402, 1
        %vm1435 = vcmp.eq.s32.totalorder %v1403, 1
        %vm1436 = vcmp.eq.s32.totalorder %v1404, 1
        %vm1437 = vcmp.eq.s32.totalorder %v1405, 1
        %vm1438 = vcmp.eq.s32.totalorder %v1406, 1
        %vm1439 = vcmp.eq.s32.totalorder %v1407, 1
        %vm1440 = vcmp.eq.s32.totalorder %v1408, 1
        %vm1441 = vcmp.eq.s32.totalorder %v1409, 1
        %vm1442 = vcmp.eq.s32.totalorder %v1410, 1
        %vm1443 = vcmp.eq.s32.totalorder %v1411, 1
        %vm1444 = vcmp.eq.s32.totalorder %v1412, 1
        %vm1445 = vcmp.eq.s32.totalorder %v1413, 1
        %v1446 = vsel %vm1414, %v1319, 0.0
        %v1447 = vsel %vm1415, %v1318, 0.0
        %v1448 = vsel %vm1416, %v1349, 0.0
        %v1449 = vsel %vm1417, %v1348, 0.0
        %v1450 = vsel %vm1418, %v1347, 0.0
        %v1451 = vsel %vm1419, %v1346, 0.0
        %v1452 = vsel %vm1420, %v1345, 0.0
        %v1453 = vsel %vm1421, %v1344, 0.0
        %v1454 = vsel %vm1422, %v1343, 0.0
        %v1455 = vsel %vm1423, %v1342, 0.0
        %v1456 = vsel %vm1424, %v1341, 0.0
        %v1457 = vsel %vm1425, %v1340, 0.0
        %v1458 = vsel %vm1426, %v1339, 0.0
        %v1459 = vsel %vm1427, %v1338, 0.0
        %v1460 = vsel %vm1428, %v1337, 0.0
        %v1461 = vsel %vm1429, %v1336, 0.0
        %v1462 = vsel %vm1430, %v1335, 0.0
        %v1463 = vsel %vm1431, %v1334, 0.0
        %v1464 = vsel %vm1432, %v1333, 0.0
        %v1465 = vsel %vm1433, %v1332, 0.0
        %v1466 = vsel %vm1434, %v1331, 0.0
        %v1467 = vsel %vm1435, %v1330, 0.0
        %v1468 = vsel %vm1436, %v1329, 0.0
        %v1469 = vsel %vm1437, %v1328, 0.0
        %v1470 = vsel %vm1438, %v1327, 0.0
        %v1471 = vsel %vm1439, %v1326, 0.0
        %v1472 = vsel %vm1440, %v1325, 0.0
        %v1473 = vsel %vm1441, %v1324, 0.0
        %v1474 = vsel %vm1442, %v1323, 0.0
        %v1475 = vsel %vm1443, %v1322, 0.0
        %v1476 = vsel %vm1444, %v1321, 0.0
        %v1477 = vsel %vm1445, %v1320, 0.0
        %v1478 = vpack.c.bf16 %v1447, %v1446
        %v1479 = vpack.c.bf16 %v1449, %v1448
        %v1480 = vpack.c.bf16 %v1451, %v1450
        %v1481 = vpack.c.bf16 %v1453, %v1452
        %v1482 = vpack.c.bf16 %v1455, %v1454
        %v1483 = vpack.c.bf16 %v1457, %v1456
        %v1484 = vpack.c.bf16 %v1459, %v1458
        %v1485 = vpack.c.bf16 %v1461, %v1460
        %v1486 = vpack.c.bf16 %v1463, %v1462
        %v1487 = vpack.c.bf16 %v1465, %v1464
        %v1488 = vpack.c.bf16 %v1467, %v1466
        %v1489 = vpack.c.bf16 %v1469, %v1468
        %v1490 = vpack.c.bf16 %v1471, %v1470
        %v1491 = vpack.c.bf16 %v1473, %v1472
        %v1492 = vpack.c.bf16 %v1475, %v1474
        %v1493 = vpack.c.bf16 %v1477, %v1476
        %v1494 = vld [vmem:[#allocation7] sm:$0xf]
        %v1495 = vld [vmem:[#allocation7 + $0x4] sm:$0xf]
        %v1496 = vld [vmem:[#allocation7 + $0x8] sm:$0xf]
        %v1497 = vld [vmem:[#allocation7 + $0xc] sm:$0xf]
        %v1498 = vld [vmem:[#allocation7 + $0x10] sm:$0xf]
        %v1499 = vld [vmem:[#allocation7 + $0x14] sm:$0xf]
        %v1500 = vld [vmem:[#allocation7 + $0x18] sm:$0xf]
        %v1501 = vld [vmem:[#allocation7 + $0x1c] sm:$0xf]
        %v1502 = vld [vmem:[#allocation7 + $0x20] sm:$0xf]
        %v1503 = vld [vmem:[#allocation7 + $0x24] sm:$0xf]
        %v1504 = vld [vmem:[#allocation7 + $0x28] sm:$0xf]
        %v1505 = vld [vmem:[#allocation7 + $0x2c] sm:$0xf]
        %v1506 = vld [vmem:[#allocation7 + $0x30] sm:$0xf]
        %v1507 = vld [vmem:[#allocation7 + $0x34] sm:$0xf]
        %v1508 = vld [vmem:[#allocation7 + $0x38] sm:$0xf]
        %v1509 = vld [vmem:[#allocation7 + $0x3c] sm:$0xf]
        %v1526 = vunpack.c.l.b16 %v1494
        %v1527 = vunpack.c.l.b16 %v1495
        %v1528 = vunpack.c.l.b16 %v1496
        %v1529 = vunpack.c.l.b16 %v1497
        %v1530 = vunpack.c.l.b16 %v1498
        %v1531 = vunpack.c.l.b16 %v1499
        %v1532 = vunpack.c.l.b16 %v1500
        %v1533 = vunpack.c.l.b16 %v1501
        %v1534 = vunpack.c.l.b16 %v1502
        %v1535 = vunpack.c.l.b16 %v1503
        %v1536 = vunpack.c.l.b16 %v1504
        %v1537 = vunpack.c.l.b16 %v1505
        %v1538 = vunpack.c.l.b16 %v1506
        %v1539 = vunpack.c.l.b16 %v1507
        %v1540 = vunpack.c.l.b16 %v1508
        %v1541 = vunpack.c.l.b16 %v1509
        %v1542 = vpack.c.b16 %v1527, %v1526
        %v1543 = vpack.c.b16 %v1529, %v1528
        %v1544 = vpack.c.b16 %v1531, %v1530
        %v1545 = vpack.c.b16 %v1533, %v1532
        %v1546 = vpack.c.b16 %v1535, %v1534
        %v1547 = vpack.c.b16 %v1537, %v1536
        %v1548 = vpack.c.b16 %v1539, %v1538
        %v1549 = vpack.c.b16 %v1541, %v1540
        %1558 = vmatpush.bf16.msra.mxu0 %v1549
        %1559 = vmatpush.bf16.msra.mxu0 %v1548
        %1560 = vmatpush.bf16.msra.mxu0 %v1547
        %1561 = vmatpush.bf16.msra.mxu0 %v1546
        %1562 = vmatpush.bf16.msra.mxu0 %v1545
        %1563 = vmatpush.bf16.msra.mxu0 %v1544
        %1564 = vmatpush.bf16.msra.mxu0 %v1543
        %1565 = vmatpush.bf16.msra.mxu0 %v1542
        %1566 = vmatmul.bf16.gmra.mxu0 %v1478
        %v1567 = vpop.f32.mrf.mxu0
        %v1568 = vadd.f32 0.0, %v1567
        %v1569 = vpop.f32.mrf.mxu0
        %v1570 = vadd.f32 0.0, %v1569
        %1571 = vmatmul.bf16.gmra.mxu0 %v1479
        %v1572 = vpop.f32.mrf.mxu0
        %v1573 = vadd.f32 0.0, %v1572
        %v1574 = vpop.f32.mrf.mxu0
        %v1575 = vadd.f32 0.0, %v1574
        %1576 = vmatmul.bf16.gmra.mxu0 %v1480
        %v1577 = vpop.f32.mrf.mxu0
        %v1578 = vadd.f32 0.0, %v1577
        %v1579 = vpop.f32.mrf.mxu0
        %v1580 = vadd.f32 0.0, %v1579
        %1581 = vmatmul.bf16.gmra.mxu0 %v1481
        %v1582 = vpop.f32.mrf.mxu0
        %v1583 = vadd.f32 0.0, %v1582
        %v1584 = vpop.f32.mrf.mxu0
        %v1585 = vadd.f32 0.0, %v1584
        %1586 = vmatmul.bf16.gmra.mxu0 %v1482
        %v1587 = vpop.f32.mrf.mxu0
        %v1588 = vadd.f32 0.0, %v1587
        %v1589 = vpop.f32.mrf.mxu0
        %v1590 = vadd.f32 0.0, %v1589
        %1591 = vmatmul.bf16.gmra.mxu0 %v1483
        %v1592 = vpop.f32.mrf.mxu0
        %v1593 = vadd.f32 0.0, %v1592
        %v1594 = vpop.f32.mrf.mxu0
        %v1595 = vadd.f32 0.0, %v1594
        %1596 = vmatmul.bf16.gmra.mxu0 %v1484
        %v1597 = vpop.f32.mrf.mxu0
        %v1598 = vadd.f32 0.0, %v1597
        %v1599 = vpop.f32.mrf.mxu0
        %v1600 = vadd.f32 0.0, %v1599
        %1601 = vmatmul.bf16.gmra.mxu0 %v1485
        %v1602 = vpop.f32.mrf.mxu0
        %v1603 = vadd.f32 0.0, %v1602
        %v1604 = vpop.f32.mrf.mxu0
        %v1605 = vadd.f32 0.0, %v1604
        %1606 = vmatmul.bf16.gmra.mxu0 %v1486
        %v1607 = vpop.f32.mrf.mxu0
        %v1608 = vadd.f32 0.0, %v1607
        %v1609 = vpop.f32.mrf.mxu0
        %v1610 = vadd.f32 0.0, %v1609
        %1611 = vmatmul.bf16.gmra.mxu0 %v1487
        %v1612 = vpop.f32.mrf.mxu0
        %v1613 = vadd.f32 0.0, %v1612
        %v1614 = vpop.f32.mrf.mxu0
        %v1615 = vadd.f32 0.0, %v1614
        %1616 = vmatmul.bf16.gmra.mxu0 %v1488
        %v1617 = vpop.f32.mrf.mxu0
        %v1618 = vadd.f32 0.0, %v1617
        %v1619 = vpop.f32.mrf.mxu0
        %v1620 = vadd.f32 0.0, %v1619
        %1621 = vmatmul.bf16.gmra.mxu0 %v1489
        %v1622 = vpop.f32.mrf.mxu0
        %v1623 = vadd.f32 0.0, %v1622
        %v1624 = vpop.f32.mrf.mxu0
        %v1625 = vadd.f32 0.0, %v1624
        %1626 = vmatmul.bf16.gmra.mxu0 %v1490
        %v1627 = vpop.f32.mrf.mxu0
        %v1628 = vadd.f32 0.0, %v1627
        %v1629 = vpop.f32.mrf.mxu0
        %v1630 = vadd.f32 0.0, %v1629
        %1631 = vmatmul.bf16.gmra.mxu0 %v1491
        %v1632 = vpop.f32.mrf.mxu0
        %v1633 = vadd.f32 0.0, %v1632
        %v1634 = vpop.f32.mrf.mxu0
        %v1635 = vadd.f32 0.0, %v1634
        %1636 = vmatmul.bf16.gmra.mxu0 %v1492
        %v1637 = vpop.f32.mrf.mxu0
        %v1638 = vadd.f32 0.0, %v1637
        %v1639 = vpop.f32.mrf.mxu0
        %v1640 = vadd.f32 0.0, %v1639
        %1641 = vmatmul.bf16.gmra.mxu0 %v1493
        %v1642 = vpop.f32.mrf.mxu0
        %v1643 = vadd.f32 0.0, %v1642
        %v1644 = vpop.f32.mrf.mxu0
        %v1645 = vadd.f32 0.0, %v1644
        %1646 = vdwg.mxu0
        %v1647 = vadd.f32 %v1283, %v1568
        %v1648 = vadd.f32 %v1283, %v1570
        %v1649 = vadd.f32 %v1283, %v1573
        %v1650 = vadd.f32 %v1283, %v1575
        %v1651 = vadd.f32 %v1283, %v1578
        %v1652 = vadd.f32 %v1283, %v1580
        %v1653 = vadd.f32 %v1283, %v1583
        %v1654 = vadd.f32 %v1283, %v1585
        %v1655 = vadd.f32 %v1283, %v1588
        %v1656 = vadd.f32 %v1283, %v1590
        %v1657 = vadd.f32 %v1283, %v1593
        %v1658 = vadd.f32 %v1283, %v1595
        %v1659 = vadd.f32 %v1283, %v1598
        %v1660 = vadd.f32 %v1283, %v1600
        %v1661 = vadd.f32 %v1283, %v1603
        %v1662 = vadd.f32 %v1283, %v1605
        %v1663 = vadd.f32 %v1283, %v1608
        %v1664 = vadd.f32 %v1283, %v1610
        %v1665 = vadd.f32 %v1283, %v1613
        %v1666 = vadd.f32 %v1283, %v1615
        %v1667 = vadd.f32 %v1283, %v1618
        %v1668 = vadd.f32 %v1283, %v1620
        %v1669 = vadd.f32 %v1283, %v1623
        %v1670 = vadd.f32 %v1283, %v1625
        %v1671 = vadd.f32 %v1283, %v1628
        %v1672 = vadd.f32 %v1283, %v1630
        %v1673 = vadd.f32 %v1283, %v1633
        %v1674 = vadd.f32 %v1283, %v1635
        %v1675 = vadd.f32 %v1283, %v1638
        %v1676 = vadd.f32 %v1283, %v1640
        %v1677 = vadd.f32 %v1283, %v1643
        %v1678 = vadd.f32 %v1283, %v1645
        %v1679 = vsel %vm1153, 1, 0
        %v1680 = vsel %vm1154, 1, 0
        %v1681 = vsel %vm1155, 1, 0
        %v1682 = vsel %vm1156, 1, 0
        %v1683 = vsel %vm1157, 1, 0
        %v1684 = vsel %vm1158, 1, 0
        %v1685 = vsel %vm1159, 1, 0
        %v1686 = vsel %vm1160, 1, 0
        %v1687 = vsel %vm1161, 1, 0
        %v1688 = vsel %vm1162, 1, 0
        %v1689 = vsel %vm1163, 1, 0
        %v1690 = vsel %vm1164, 1, 0
        %v1691 = vsel %vm1165, 1, 0
        %v1692 = vsel %vm1166, 1, 0
        %v1693 = vsel %vm1167, 1, 0
        %v1694 = vsel %vm1168, 1, 0
        %v1695 = vsel %vm1169, 1, 0
        %v1696 = vsel %vm1170, 1, 0
        %v1697 = vsel %vm1171, 1, 0
        %v1698 = vsel %vm1172, 1, 0
        %v1699 = vsel %vm1173, 1, 0
        %v1700 = vsel %vm1174, 1, 0
        %v1701 = vsel %vm1175, 1, 0
        %v1702 = vsel %vm1176, 1, 0
        %v1703 = vsel %vm1177, 1, 0
        %v1704 = vsel %vm1178, 1, 0
        %v1705 = vsel %vm1179, 1, 0
        %v1706 = vsel %vm1180, 1, 0
        %v1707 = vsel %vm1181, 1, 0
        %v1708 = vsel %vm1182, 1, 0
        %v1709 = vsel %vm1183, 1, 0
        %v1710 = vsel %vm1184, 1, 0
        %vm1711 = vcmp.eq.s32.totalorder %v1679, 1
        %vm1712 = vcmp.eq.s32.totalorder %v1680, 1
        %vm1713 = vcmp.eq.s32.totalorder %v1681, 1
        %vm1714 = vcmp.eq.s32.totalorder %v1682, 1
        %vm1715 = vcmp.eq.s32.totalorder %v1683, 1
        %vm1716 = vcmp.eq.s32.totalorder %v1684, 1
        %vm1717 = vcmp.eq.s32.totalorder %v1685, 1
        %vm1718 = vcmp.eq.s32.totalorder %v1686, 1
        %vm1719 = vcmp.eq.s32.totalorder %v1687, 1
        %vm1720 = vcmp.eq.s32.totalorder %v1688, 1
        %vm1721 = vcmp.eq.s32.totalorder %v1689, 1
        %vm1722 = vcmp.eq.s32.totalorder %v1690, 1
        %vm1723 = vcmp.eq.s32.totalorder %v1691, 1
        %vm1724 = vcmp.eq.s32.totalorder %v1692, 1
        %vm1725 = vcmp.eq.s32.totalorder %v1693, 1
        %vm1726 = vcmp.eq.s32.totalorder %v1694, 1
        %vm1727 = vcmp.eq.s32.totalorder %v1695, 1
        %vm1728 = vcmp.eq.s32.totalorder %v1696, 1
        %vm1729 = vcmp.eq.s32.totalorder %v1697, 1
        %vm1730 = vcmp.eq.s32.totalorder %v1698, 1
        %vm1731 = vcmp.eq.s32.totalorder %v1699, 1
        %vm1732 = vcmp.eq.s32.totalorder %v1700, 1
        %vm1733 = vcmp.eq.s32.totalorder %v1701, 1
        %vm1734 = vcmp.eq.s32.totalorder %v1702, 1
        %vm1735 = vcmp.eq.s32.totalorder %v1703, 1
        %vm1736 = vcmp.eq.s32.totalorder %v1704, 1
        %vm1737 = vcmp.eq.s32.totalorder %v1705, 1
        %vm1738 = vcmp.eq.s32.totalorder %v1706, 1
        %vm1739 = vcmp.eq.s32.totalorder %v1707, 1
        %vm1740 = vcmp.eq.s32.totalorder %v1708, 1
        %vm1741 = vcmp.eq.s32.totalorder %v1709, 1
        %vm1742 = vcmp.eq.s32.totalorder %v1710, 1
        %v1743 = vsel %vm1711, %v734, 0.0
        %v1744 = vsel %vm1712, %v735, 0.0
        %v1745 = vsel %vm1713, %v704, 0.0
        %v1746 = vsel %vm1714, %v705, 0.0
        %v1747 = vsel %vm1715, %v706, 0.0
        %v1748 = vsel %vm1716, %v707, 0.0
        %v1749 = vsel %vm1717, %v708, 0.0
        %v1750 = vsel %vm1718, %v709, 0.0
        %v1751 = vsel %vm1719, %v710, 0.0
        %v1752 = vsel %vm1720, %v711, 0.0
        %v1753 = vsel %vm1721, %v712, 0.0
        %v1754 = vsel %vm1722, %v713, 0.0
        %v1755 = vsel %vm1723, %v714, 0.0
        %v1756 = vsel %vm1724, %v715, 0.0
        %v1757 = vsel %vm1725, %v716, 0.0
        %v1758 = vsel %vm1726, %v717, 0.0
        %v1759 = vsel %vm1727, %v718, 0.0
        %v1760 = vsel %vm1728, %v719, 0.0
        %v1761 = vsel %vm1729, %v720, 0.0
        %v1762 = vsel %vm1730, %v721, 0.0
        %v1763 = vsel %vm1731, %v722, 0.0
        %v1764 = vsel %vm1732, %v723, 0.0
        %v1765 = vsel %vm1733, %v724, 0.0
        %v1766 = vsel %vm1734, %v725, 0.0
        %v1767 = vsel %vm1735, %v726, 0.0
        %v1768 = vsel %vm1736, %v727, 0.0
        %v1769 = vsel %vm1737, %v728, 0.0
        %v1770 = vsel %vm1738, %v729, 0.0
        %v1771 = vsel %vm1739, %v730, 0.0
        %v1772 = vsel %vm1740, %v731, 0.0
        %v1773 = vsel %vm1741, %v732, 0.0
        %v1774 = vsel %vm1742, %v733, 0.0
        %v1775 = vpack.c.bf16 %v1744, %v1743
        %v1776 = vpack.c.bf16 %v1746, %v1745
        %v1777 = vpack.c.bf16 %v1748, %v1747
        %v1778 = vpack.c.bf16 %v1750, %v1749
        %v1779 = vpack.c.bf16 %v1752, %v1751
        %v1780 = vpack.c.bf16 %v1754, %v1753
        %v1781 = vpack.c.bf16 %v1756, %v1755
        %v1782 = vpack.c.bf16 %v1758, %v1757
        %v1783 = vpack.c.bf16 %v1760, %v1759
        %v1784 = vpack.c.bf16 %v1762, %v1761
        %v1785 = vpack.c.bf16 %v1764, %v1763
        %v1786 = vpack.c.bf16 %v1766, %v1765
        %v1787 = vpack.c.bf16 %v1768, %v1767
        %v1788 = vpack.c.bf16 %v1770, %v1769
        %v1789 = vpack.c.bf16 %v1772, %v1771
        %v1790 = vpack.c.bf16 %v1774, %v1773
        %s1791 = scalar_lea.vmem [#allocation7], 64
        %v1792 = vld [vmem:[%s1791] sm:$0xf]
        %v1793 = vld [vmem:[%s1791 + $0x4] sm:$0xf]
        %v1794 = vld [vmem:[%s1791 + $0x8] sm:$0xf]
        %v1795 = vld [vmem:[%s1791 + $0xc] sm:$0xf]
        %v1796 = vld [vmem:[%s1791 + $0x10] sm:$0xf]
        %v1797 = vld [vmem:[%s1791 + $0x14] sm:$0xf]
        %v1798 = vld [vmem:[%s1791 + $0x18] sm:$0xf]
        %v1799 = vld [vmem:[%s1791 + $0x1c] sm:$0xf]
        %v1800 = vld [vmem:[%s1791 + $0x20] sm:$0xf]
        %v1801 = vld [vmem:[%s1791 + $0x24] sm:$0xf]
        %v1802 = vld [vmem:[%s1791 + $0x28] sm:$0xf]
        %v1803 = vld [vmem:[%s1791 + $0x2c] sm:$0xf]
        %v1804 = vld [vmem:[%s1791 + $0x30] sm:$0xf]
        %v1805 = vld [vmem:[%s1791 + $0x34] sm:$0xf]
        %v1806 = vld [vmem:[%s1791 + $0x38] sm:$0xf]
        %v1807 = vld [vmem:[%s1791 + $0x3c] sm:$0xf]
        %v1824 = vunpack.c.l.b16 %v1792
        %v1825 = vunpack.c.l.b16 %v1793
        %v1826 = vunpack.c.l.b16 %v1794
        %v1827 = vunpack.c.l.b16 %v1795
        %v1828 = vunpack.c.l.b16 %v1796
        %v1829 = vunpack.c.l.b16 %v1797
        %v1830 = vunpack.c.l.b16 %v1798
        %v1831 = vunpack.c.l.b16 %v1799
        %v1832 = vunpack.c.l.b16 %v1800
        %v1833 = vunpack.c.l.b16 %v1801
        %v1834 = vunpack.c.l.b16 %v1802
        %v1835 = vunpack.c.l.b16 %v1803
        %v1836 = vunpack.c.l.b16 %v1804
        %v1837 = vunpack.c.l.b16 %v1805
        %v1838 = vunpack.c.l.b16 %v1806
        %v1839 = vunpack.c.l.b16 %v1807
        %v1840 = vpack.c.b16 %v1825, %v1824
        %v1841 = vpack.c.b16 %v1827, %v1826
        %v1842 = vpack.c.b16 %v1829, %v1828
        %v1843 = vpack.c.b16 %v1831, %v1830
        %v1844 = vpack.c.b16 %v1833, %v1832
        %v1845 = vpack.c.b16 %v1835, %v1834
        %v1846 = vpack.c.b16 %v1837, %v1836
        %v1847 = vpack.c.b16 %v1839, %v1838
        %1856 = vmatpush.bf16.msra.mxu0 %v1847
        %1857 = vmatpush.bf16.msra.mxu0 %v1846
        %1858 = vmatpush.bf16.msra.mxu0 %v1845
        %1859 = vmatpush.bf16.msra.mxu0 %v1844
        %1860 = vmatpush.bf16.msra.mxu0 %v1843
        %1861 = vmatpush.bf16.msra.mxu0 %v1842
        %1862 = vmatpush.bf16.msra.mxu0 %v1841
        %1863 = vmatpush.bf16.msra.mxu0 %v1840
        %1864 = vmatmul.bf16.gmra.mxu0 %v1775
        %v1865 = vpop.f32.mrf.mxu0
        %v1866 = vadd.f32 0.0, %v1865
        %v1867 = vpop.f32.mrf.mxu0
        %v1868 = vadd.f32 0.0, %v1867
        %1869 = vmatmul.bf16.gmra.mxu0 %v1776
        %v1870 = vpop.f32.mrf.mxu0
        %v1871 = vadd.f32 0.0, %v1870
        %v1872 = vpop.f32.mrf.mxu0
        %v1873 = vadd.f32 0.0, %v1872
        %1874 = vmatmul.bf16.gmra.mxu0 %v1777
        %v1875 = vpop.f32.mrf.mxu0
        %v1876 = vadd.f32 0.0, %v1875
        %v1877 = vpop.f32.mrf.mxu0
        %v1878 = vadd.f32 0.0, %v1877
        %1879 = vmatmul.bf16.gmra.mxu0 %v1778
        %v1880 = vpop.f32.mrf.mxu0
        %v1881 = vadd.f32 0.0, %v1880
        %v1882 = vpop.f32.mrf.mxu0
        %v1883 = vadd.f32 0.0, %v1882
        %1884 = vmatmul.bf16.gmra.mxu0 %v1779
        %v1885 = vpop.f32.mrf.mxu0
        %v1886 = vadd.f32 0.0, %v1885
        %v1887 = vpop.f32.mrf.mxu0
        %v1888 = vadd.f32 0.0, %v1887
        %1889 = vmatmul.bf16.gmra.mxu0 %v1780
        %v1890 = vpop.f32.mrf.mxu0
        %v1891 = vadd.f32 0.0, %v1890
        %v1892 = vpop.f32.mrf.mxu0
        %v1893 = vadd.f32 0.0, %v1892
        %1894 = vmatmul.bf16.gmra.mxu0 %v1781
        %v1895 = vpop.f32.mrf.mxu0
        %v1896 = vadd.f32 0.0, %v1895
        %v1897 = vpop.f32.mrf.mxu0
        %v1898 = vadd.f32 0.0, %v1897
        %1899 = vmatmul.bf16.gmra.mxu0 %v1782
        %v1900 = vpop.f32.mrf.mxu0
        %v1901 = vadd.f32 0.0, %v1900
        %v1902 = vpop.f32.mrf.mxu0
        %v1903 = vadd.f32 0.0, %v1902
        %1904 = vmatmul.bf16.gmra.mxu0 %v1783
        %v1905 = vpop.f32.mrf.mxu0
        %v1906 = vadd.f32 0.0, %v1905
        %v1907 = vpop.f32.mrf.mxu0
        %v1908 = vadd.f32 0.0, %v1907
        %1909 = vmatmul.bf16.gmra.mxu0 %v1784
        %v1910 = vpop.f32.mrf.mxu0
        %v1911 = vadd.f32 0.0, %v1910
        %v1912 = vpop.f32.mrf.mxu0
        %v1913 = vadd.f32 0.0, %v1912
        %1914 = vmatmul.bf16.gmra.mxu0 %v1785
        %v1915 = vpop.f32.mrf.mxu0
        %v1916 = vadd.f32 0.0, %v1915
        %v1917 = vpop.f32.mrf.mxu0
        %v1918 = vadd.f32 0.0, %v1917
        %1919 = vmatmul.bf16.gmra.mxu0 %v1786
        %v1920 = vpop.f32.mrf.mxu0
        %v1921 = vadd.f32 0.0, %v1920
        %v1922 = vpop.f32.mrf.mxu0
        %v1923 = vadd.f32 0.0, %v1922
        %1924 = vmatmul.bf16.gmra.mxu0 %v1787
        %v1925 = vpop.f32.mrf.mxu0
        %v1926 = vadd.f32 0.0, %v1925
        %v1927 = vpop.f32.mrf.mxu0
        %v1928 = vadd.f32 0.0, %v1927
        %1929 = vmatmul.bf16.gmra.mxu0 %v1788
        %v1930 = vpop.f32.mrf.mxu0
        %v1931 = vadd.f32 0.0, %v1930
        %v1932 = vpop.f32.mrf.mxu0
        %v1933 = vadd.f32 0.0, %v1932
        %1934 = vmatmul.bf16.gmra.mxu0 %v1789
        %v1935 = vpop.f32.mrf.mxu0
        %v1936 = vadd.f32 0.0, %v1935
        %v1937 = vpop.f32.mrf.mxu0
        %v1938 = vadd.f32 0.0, %v1937
        %1939 = vmatmul.bf16.gmra.mxu0 %v1790
        %v1940 = vpop.f32.mrf.mxu0
        %v1941 = vadd.f32 0.0, %v1940
        %v1942 = vpop.f32.mrf.mxu0
        %v1943 = vadd.f32 0.0, %v1942
        %1944 = vdwg.mxu0
        %v1945 = vadd.f32 %v1647, %v1866
        %v1946 = vadd.f32 %v1648, %v1868
        %v1947 = vadd.f32 %v1649, %v1871
        %v1948 = vadd.f32 %v1650, %v1873
        %v1949 = vadd.f32 %v1651, %v1876
        %v1950 = vadd.f32 %v1652, %v1878
        %v1951 = vadd.f32 %v1653, %v1881
        %v1952 = vadd.f32 %v1654, %v1883
        %v1953 = vadd.f32 %v1655, %v1886
        %v1954 = vadd.f32 %v1656, %v1888
        %v1955 = vadd.f32 %v1657, %v1891
        %v1956 = vadd.f32 %v1658, %v1893
        %v1957 = vadd.f32 %v1659, %v1896
        %v1958 = vadd.f32 %v1660, %v1898
        %v1959 = vadd.f32 %v1661, %v1901
        %v1960 = vadd.f32 %v1662, %v1903
        %v1961 = vadd.f32 %v1663, %v1906
        %v1962 = vadd.f32 %v1664, %v1908
        %v1963 = vadd.f32 %v1665, %v1911
        %v1964 = vadd.f32 %v1666, %v1913
        %v1965 = vadd.f32 %v1667, %v1916
        %v1966 = vadd.f32 %v1668, %v1918
        %v1967 = vadd.f32 %v1669, %v1921
        %v1968 = vadd.f32 %v1670, %v1923
        %v1969 = vadd.f32 %v1671, %v1926
        %v1970 = vadd.f32 %v1672, %v1928
        %v1971 = vadd.f32 %v1673, %v1931
        %v1972 = vadd.f32 %v1674, %v1933
        %v1973 = vadd.f32 %v1675, %v1936
        %v1974 = vadd.f32 %v1676, %v1938
        %v1975 = vadd.f32 %v1677, %v1941
        %v1976 = vadd.f32 %v1678, %v1943
        %v1977 = vrot.slane %v704, 1
        %v1978 = vrot.slane %v705, 1
        %v1979 = vrot.slane %v706, 1
        %v1980 = vrot.slane %v707, 1
        %v1981 = vrot.slane %v708, 1
        %v1982 = vrot.slane %v709, 1
        %v1983 = vrot.slane %v710, 1
        %v1984 = vrot.slane %v711, 1
        %v1985 = vrot.slane %v712, 1
        %v1986 = vrot.slane %v713, 1
        %v1987 = vrot.slane %v714, 1
        %v1988 = vrot.slane %v715, 1
        %v1989 = vrot.slane %v716, 1
        %v1990 = vrot.slane %v717, 1
        %v1991 = vrot.slane %v718, 1
        %v1992 = vrot.slane %v719, 1
        %v1993 = vrot.slane %v720, 1
        %v1994 = vrot.slane %v721, 1
        %v1995 = vrot.slane %v722, 1
        %v1996 = vrot.slane %v723, 1
        %v1997 = vrot.slane %v724, 1
        %v1998 = vrot.slane %v725, 1
        %v1999 = vrot.slane %v726, 1
        %v2000 = vrot.slane %v727, 1
        %v2001 = vrot.slane %v728, 1
        %v2002 = vrot.slane %v729, 1
        %v2003 = vrot.slane %v730, 1
        %v2004 = vrot.slane %v731, 1
        %v2005 = vrot.slane %v732, 1
        %v2006 = vrot.slane %v733, 1
        %v2007 = vrot.slane %v734, 1
        %v2008 = vrot.slane %v735, 1
        %vm2009 = vcmp.lt.s32.totalorder %v737, 7
        %v2010 = vsel %vm2009, %v2007, %v2008
        %v2011 = vsel %vm2009, %v2006, %v2007
        %v2012 = vsel %vm2009, %v2005, %v2006
        %v2013 = vsel %vm2009, %v2004, %v2005
        %v2014 = vsel %vm2009, %v2003, %v2004
        %v2015 = vsel %vm2009, %v2002, %v2003
        %v2016 = vsel %vm2009, %v2001, %v2002
        %v2017 = vsel %vm2009, %v2000, %v2001
        %v2018 = vsel %vm2009, %v1999, %v2000
        %v2019 = vsel %vm2009, %v1998, %v1999
        %v2020 = vsel %vm2009, %v1997, %v1998
        %v2021 = vsel %vm2009, %v1996, %v1997
        %v2022 = vsel %vm2009, %v1995, %v1996
        %v2023 = vsel %vm2009, %v1994, %v1995
        %v2024 = vsel %vm2009, %v1993, %v1994
        %v2025 = vsel %vm2009, %v1992, %v1993
        %v2026 = vsel %vm2009, %v1991, %v1992
        %v2027 = vsel %vm2009, %v1990, %v1991
        %v2028 = vsel %vm2009, %v1989, %v1990
        %v2029 = vsel %vm2009, %v1988, %v1989
        %v2030 = vsel %vm2009, %v1987, %v1988
        %v2031 = vsel %vm2009, %v1986, %v1987
        %v2032 = vsel %vm2009, %v1985, %v1986
        %v2033 = vsel %vm2009, %v1984, %v1985
        %v2034 = vsel %vm2009, %v1983, %v1984
        %v2035 = vsel %vm2009, %v1982, %v1983
        %v2036 = vsel %vm2009, %v1981, %v1982
        %v2037 = vsel %vm2009, %v1980, %v1981
        %v2038 = vsel %vm2009, %v1979, %v1980
        %v2039 = vsel %vm2009, %v1978, %v1979
        %v2040 = vsel %vm2009, %v1977, %v1978
        %v2041 = vsel %vm2009, %v2008, %v1977
        %vm2042 = vmand %vm1153, %vm1249
        %vm2043 = vmand %vm1154, %vm1250
        %vm2044 = vmand %vm1155, %vm1251
        %vm2045 = vmand %vm1156, %vm1252
        %vm2046 = vmand %vm1157, %vm1253
        %vm2047 = vmand %vm1158, %vm1254
        %vm2048 = vmand %vm1159, %vm1255
        %vm2049 = vmand %vm1160, %vm1256
        %vm2050 = vmand %vm1161, %vm1257
        %vm2051 = vmand %vm1162, %vm1258
        %vm2052 = vmand %vm1163, %vm1259
        %vm2053 = vmand %vm1164, %vm1260
        %vm2054 = vmand %vm1165, %vm1261
        %vm2055 = vmand %vm1166, %vm1262
        %vm2056 = vmand %vm1167, %vm1263
        %vm2057 = vmand %vm1168, %vm1264
        %vm2058 = vmand %vm1169, %vm1265
        %vm2059 = vmand %vm1170, %vm1266
        %vm2060 = vmand %vm1171, %vm1267
        %vm2061 = vmand %vm1172, %vm1268
        %vm2062 = vmand %vm1173, %vm1269
        %vm2063 = vmand %vm1174, %vm1270
        %vm2064 = vmand %vm1175, %vm1271
        %vm2065 = vmand %vm1176, %vm1272
        %vm2066 = vmand %vm1177, %vm1273
        %vm2067 = vmand %vm1178, %vm1274
        %vm2068 = vmand %vm1179, %vm1275
        %vm2069 = vmand %vm1180, %vm1276
        %vm2070 = vmand %vm1181, %vm1277
        %vm2071 = vmand %vm1182, %vm1278
        %vm2072 = vmand %vm1183, %vm1279
        %vm2073 = vmand %vm1184, %vm1280
        %v2074 = vsel %vm2042, 1, 0
        %v2075 = vsel %vm2043, 1, 0
        %v2076 = vsel %vm2044, 1, 0
        %v2077 = vsel %vm2045, 1, 0
        %v2078 = vsel %vm2046, 1, 0
        %v2079 = vsel %vm2047, 1, 0
        %v2080 = vsel %vm2048, 1, 0
        %v2081 = vsel %vm2049, 1, 0
        %v2082 = vsel %vm2050, 1, 0
        %v2083 = vsel %vm2051, 1, 0
        %v2084 = vsel %vm2052, 1, 0
        %v2085 = vsel %vm2053, 1, 0
        %v2086 = vsel %vm2054, 1, 0
        %v2087 = vsel %vm2055, 1, 0
        %v2088 = vsel %vm2056, 1, 0
        %v2089 = vsel %vm2057, 1, 0
        %v2090 = vsel %vm2058, 1, 0
        %v2091 = vsel %vm2059, 1, 0
        %v2092 = vsel %vm2060, 1, 0
        %v2093 = vsel %vm2061, 1, 0
        %v2094 = vsel %vm2062, 1, 0
        %v2095 = vsel %vm2063, 1, 0
        %v2096 = vsel %vm2064, 1, 0
        %v2097 = vsel %vm2065, 1, 0
        %v2098 = vsel %vm2066, 1, 0
        %v2099 = vsel %vm2067, 1, 0
        %v2100 = vsel %vm2068, 1, 0
        %v2101 = vsel %vm2069, 1, 0
        %v2102 = vsel %vm2070, 1, 0
        %v2103 = vsel %vm2071, 1, 0
        %v2104 = vsel %vm2072, 1, 0
        %v2105 = vsel %vm2073, 1, 0
        %vm2106 = vcmp.eq.s32.totalorder %v2074, 1
        %vm2107 = vcmp.eq.s32.totalorder %v2075, 1
        %vm2108 = vcmp.eq.s32.totalorder %v2076, 1
        %vm2109 = vcmp.eq.s32.totalorder %v2077, 1
        %vm2110 = vcmp.eq.s32.totalorder %v2078, 1
        %vm2111 = vcmp.eq.s32.totalorder %v2079, 1
        %vm2112 = vcmp.eq.s32.totalorder %v2080, 1
        %vm2113 = vcmp.eq.s32.totalorder %v2081, 1
        %vm2114 = vcmp.eq.s32.totalorder %v2082, 1
        %vm2115 = vcmp.eq.s32.totalorder %v2083, 1
        %vm2116 = vcmp.eq.s32.totalorder %v2084, 1
        %vm2117 = vcmp.eq.s32.totalorder %v2085, 1
        %vm2118 = vcmp.eq.s32.totalorder %v2086, 1
        %vm2119 = vcmp.eq.s32.totalorder %v2087, 1
        %vm2120 = vcmp.eq.s32.totalorder %v2088, 1
        %vm2121 = vcmp.eq.s32.totalorder %v2089, 1
        %vm2122 = vcmp.eq.s32.totalorder %v2090, 1
        %vm2123 = vcmp.eq.s32.totalorder %v2091, 1
        %vm2124 = vcmp.eq.s32.totalorder %v2092, 1
        %vm2125 = vcmp.eq.s32.totalorder %v2093, 1
        %vm2126 = vcmp.eq.s32.totalorder %v2094, 1
        %vm2127 = vcmp.eq.s32.totalorder %v2095, 1
        %vm2128 = vcmp.eq.s32.totalorder %v2096, 1
        %vm2129 = vcmp.eq.s32.totalorder %v2097, 1
        %vm2130 = vcmp.eq.s32.totalorder %v2098, 1
        %vm2131 = vcmp.eq.s32.totalorder %v2099, 1
        %vm2132 = vcmp.eq.s32.totalorder %v2100, 1
        %vm2133 = vcmp.eq.s32.totalorder %v2101, 1
        %vm2134 = vcmp.eq.s32.totalorder %v2102, 1
        %vm2135 = vcmp.eq.s32.totalorder %v2103, 1
        %vm2136 = vcmp.eq.s32.totalorder %v2104, 1
        %vm2137 = vcmp.eq.s32.totalorder %v2105, 1
        %v2138 = vsel %vm2106, %v2010, 0.0
        %v2139 = vsel %vm2107, %v2041, 0.0
        %v2140 = vsel %vm2108, %v2040, 0.0
        %v2141 = vsel %vm2109, %v2039, 0.0
        %v2142 = vsel %vm2110, %v2038, 0.0
        %v2143 = vsel %vm2111, %v2037, 0.0
        %v2144 = vsel %vm2112, %v2036, 0.0
        %v2145 = vsel %vm2113, %v2035, 0.0
        %v2146 = vsel %vm2114, %v2034, 0.0
        %v2147 = vsel %vm2115, %v2033, 0.0
        %v2148 = vsel %vm2116, %v2032, 0.0
        %v2149 = vsel %vm2117, %v2031, 0.0
        %v2150 = vsel %vm2118, %v2030, 0.0
        %v2151 = vsel %vm2119, %v2029, 0.0
        %v2152 = vsel %vm2120, %v2028, 0.0
        %v2153 = vsel %vm2121, %v2027, 0.0
        %v2154 = vsel %vm2122, %v2026, 0.0
        %v2155 = vsel %vm2123, %v2025, 0.0
        %v2156 = vsel %vm2124, %v2024, 0.0
        %v2157 = vsel %vm2125, %v2023, 0.0
        %v2158 = vsel %vm2126, %v2022, 0.0
        %v2159 = vsel %vm2127, %v2021, 0.0
        %v2160 = vsel %vm2128, %v2020, 0.0
        %v2161 = vsel %vm2129, %v2019, 0.0
        %v2162 = vsel %vm2130, %v2018, 0.0
        %v2163 = vsel %vm2131, %v2017, 0.0
        %v2164 = vsel %vm2132, %v2016, 0.0
        %v2165 = vsel %vm2133, %v2015, 0.0
        %v2166 = vsel %vm2134, %v2014, 0.0
        %v2167 = vsel %vm2135, %v2013, 0.0
        %v2168 = vsel %vm2136, %v2012, 0.0
        %v2169 = vsel %vm2137, %v2011, 0.0
        %v2170 = vpack.c.bf16 %v2139, %v2138
        %v2171 = vpack.c.bf16 %v2141, %v2140
        %v2172 = vpack.c.bf16 %v2143, %v2142
        %v2173 = vpack.c.bf16 %v2145, %v2144
        %v2174 = vpack.c.bf16 %v2147, %v2146
        %v2175 = vpack.c.bf16 %v2149, %v2148
        %v2176 = vpack.c.bf16 %v2151, %v2150
        %v2177 = vpack.c.bf16 %v2153, %v2152
        %v2178 = vpack.c.bf16 %v2155, %v2154
        %v2179 = vpack.c.bf16 %v2157, %v2156
        %v2180 = vpack.c.bf16 %v2159, %v2158
        %v2181 = vpack.c.bf16 %v2161, %v2160
        %v2182 = vpack.c.bf16 %v2163, %v2162
        %v2183 = vpack.c.bf16 %v2165, %v2164
        %v2184 = vpack.c.bf16 %v2167, %v2166
        %v2185 = vpack.c.bf16 %v2169, %v2168
        %s2186 = scalar_lea.vmem [#allocation7], 128
        %v2187 = vld [vmem:[%s2186] sm:$0xf]
        %v2188 = vld [vmem:[%s2186 + $0x4] sm:$0xf]
        %v2189 = vld [vmem:[%s2186 + $0x8] sm:$0xf]
        %v2190 = vld [vmem:[%s2186 + $0xc] sm:$0xf]
        %v2191 = vld [vmem:[%s2186 + $0x10] sm:$0xf]
        %v2192 = vld [vmem:[%s2186 + $0x14] sm:$0xf]
        %v2193 = vld [vmem:[%s2186 + $0x18] sm:$0xf]
        %v2194 = vld [vmem:[%s2186 + $0x1c] sm:$0xf]
        %v2195 = vld [vmem:[%s2186 + $0x20] sm:$0xf]
        %v2196 = vld [vmem:[%s2186 + $0x24] sm:$0xf]
        %v2197 = vld [vmem:[%s2186 + $0x28] sm:$0xf]
        %v2198 = vld [vmem:[%s2186 + $0x2c] sm:$0xf]
        %v2199 = vld [vmem:[%s2186 + $0x30] sm:$0xf]
        %v2200 = vld [vmem:[%s2186 + $0x34] sm:$0xf]
        %v2201 = vld [vmem:[%s2186 + $0x38] sm:$0xf]
        %v2202 = vld [vmem:[%s2186 + $0x3c] sm:$0xf]
        %v2219 = vunpack.c.l.b16 %v2187
        %v2220 = vunpack.c.l.b16 %v2188
        %v2221 = vunpack.c.l.b16 %v2189
        %v2222 = vunpack.c.l.b16 %v2190
        %v2223 = vunpack.c.l.b16 %v2191
        %v2224 = vunpack.c.l.b16 %v2192
        %v2225 = vunpack.c.l.b16 %v2193
        %v2226 = vunpack.c.l.b16 %v2194
        %v2227 = vunpack.c.l.b16 %v2195
        %v2228 = vunpack.c.l.b16 %v2196
        %v2229 = vunpack.c.l.b16 %v2197
        %v2230 = vunpack.c.l.b16 %v2198
        %v2231 = vunpack.c.l.b16 %v2199
        %v2232 = vunpack.c.l.b16 %v2200
        %v2233 = vunpack.c.l.b16 %v2201
        %v2234 = vunpack.c.l.b16 %v2202
        %v2235 = vpack.c.b16 %v2220, %v2219
        %v2236 = vpack.c.b16 %v2222, %v2221
        %v2237 = vpack.c.b16 %v2224, %v2223
        %v2238 = vpack.c.b16 %v2226, %v2225
        %v2239 = vpack.c.b16 %v2228, %v2227
        %v2240 = vpack.c.b16 %v2230, %v2229
        %v2241 = vpack.c.b16 %v2232, %v2231
        %v2242 = vpack.c.b16 %v2234, %v2233
        %2251 = vmatpush.bf16.msra.mxu0 %v2242
        %2252 = vmatpush.bf16.msra.mxu0 %v2241
        %2253 = vmatpush.bf16.msra.mxu0 %v2240
        %2254 = vmatpush.bf16.msra.mxu0 %v2239
        %2255 = vmatpush.bf16.msra.mxu0 %v2238
        %2256 = vmatpush.bf16.msra.mxu0 %v2237
        %2257 = vmatpush.bf16.msra.mxu0 %v2236
        %2258 = vmatpush.bf16.msra.mxu0 %v2235
        %2259 = vmatmul.bf16.gmra.mxu0 %v2170
        %v2260 = vpop.f32.mrf.mxu0
        %v2261 = vadd.f32 0.0, %v2260
        %v2262 = vpop.f32.mrf.mxu0
        %v2263 = vadd.f32 0.0, %v2262
        %2264 = vmatmul.bf16.gmra.mxu0 %v2171
        %v2265 = vpop.f32.mrf.mxu0
        %v2266 = vadd.f32 0.0, %v2265
        %v2267 = vpop.f32.mrf.mxu0
        %v2268 = vadd.f32 0.0, %v2267
        %2269 = vmatmul.bf16.gmra.mxu0 %v2172
        %v2270 = vpop.f32.mrf.mxu0
        %v2271 = vadd.f32 0.0, %v2270
        %v2272 = vpop.f32.mrf.mxu0
        %v2273 = vadd.f32 0.0, %v2272
        %2274 = vmatmul.bf16.gmra.mxu0 %v2173
        %v2275 = vpop.f32.mrf.mxu0
        %v2276 = vadd.f32 0.0, %v2275
        %v2277 = vpop.f32.mrf.mxu0
        %v2278 = vadd.f32 0.0, %v2277
        %2279 = vmatmul.bf16.gmra.mxu0 %v2174
        %v2280 = vpop.f32.mrf.mxu0
        %v2281 = vadd.f32 0.0, %v2280
        %v2282 = vpop.f32.mrf.mxu0
        %v2283 = vadd.f32 0.0, %v2282
        %2284 = vmatmul.bf16.gmra.mxu0 %v2175
        %v2285 = vpop.f32.mrf.mxu0
        %v2286 = vadd.f32 0.0, %v2285
        %v2287 = vpop.f32.mrf.mxu0
        %v2288 = vadd.f32 0.0, %v2287
        %2289 = vmatmul.bf16.gmra.mxu0 %v2176
        %v2290 = vpop.f32.mrf.mxu0
        %v2291 = vadd.f32 0.0, %v2290
        %v2292 = vpop.f32.mrf.mxu0
        %v2293 = vadd.f32 0.0, %v2292
        %2294 = vmatmul.bf16.gmra.mxu0 %v2177
        %v2295 = vpop.f32.mrf.mxu0
        %v2296 = vadd.f32 0.0, %v2295
        %v2297 = vpop.f32.mrf.mxu0
        %v2298 = vadd.f32 0.0, %v2297
        %2299 = vmatmul.bf16.gmra.mxu0 %v2178
        %v2300 = vpop.f32.mrf.mxu0
        %v2301 = vadd.f32 0.0, %v2300
        %v2302 = vpop.f32.mrf.mxu0
        %v2303 = vadd.f32 0.0, %v2302
        %2304 = vmatmul.bf16.gmra.mxu0 %v2179
        %v2305 = vpop.f32.mrf.mxu0
        %v2306 = vadd.f32 0.0, %v2305
        %v2307 = vpop.f32.mrf.mxu0
        %v2308 = vadd.f32 0.0, %v2307
        %2309 = vmatmul.bf16.gmra.mxu0 %v2180
        %v2310 = vpop.f32.mrf.mxu0
        %v2311 = vadd.f32 0.0, %v2310
        %v2312 = vpop.f32.mrf.mxu0
        %v2313 = vadd.f32 0.0, %v2312
        %2314 = vmatmul.bf16.gmra.mxu0 %v2181
        %v2315 = vpop.f32.mrf.mxu0
        %v2316 = vadd.f32 0.0, %v2315
        %v2317 = vpop.f32.mrf.mxu0
        %v2318 = vadd.f32 0.0, %v2317
        %2319 = vmatmul.bf16.gmra.mxu0 %v2182
        %v2320 = vpop.f32.mrf.mxu0
        %v2321 = vadd.f32 0.0, %v2320
        %v2322 = vpop.f32.mrf.mxu0
        %v2323 = vadd.f32 0.0, %v2322
        %2324 = vmatmul.bf16.gmra.mxu0 %v2183
        %v2325 = vpop.f32.mrf.mxu0
        %v2326 = vadd.f32 0.0, %v2325
        %v2327 = vpop.f32.mrf.mxu0
        %v2328 = vadd.f32 0.0, %v2327
        %2329 = vmatmul.bf16.gmra.mxu0 %v2184
        %v2330 = vpop.f32.mrf.mxu0
        %v2331 = vadd.f32 0.0, %v2330
        %v2332 = vpop.f32.mrf.mxu0
        %v2333 = vadd.f32 0.0, %v2332
        %2334 = vmatmul.bf16.gmra.mxu0 %v2185
        %v2335 = vpop.f32.mrf.mxu0
        %v2336 = vadd.f32 0.0, %v2335
        %v2337 = vpop.f32.mrf.mxu0
        %v2338 = vadd.f32 0.0, %v2337
        %2339 = vdwg.mxu0
        %v2340 = vadd.f32 %v1945, %v2261
        %v2341 = vadd.f32 %v1946, %v2263
        %v2342 = vadd.f32 %v1947, %v2266
        %v2343 = vadd.f32 %v1948, %v2268
        %v2344 = vadd.f32 %v1949, %v2271
        %v2345 = vadd.f32 %v1950, %v2273
        %v2346 = vadd.f32 %v1951, %v2276
        %v2347 = vadd.f32 %v1952, %v2278
        %v2348 = vadd.f32 %v1953, %v2281
        %v2349 = vadd.f32 %v1954, %v2283
        %v2350 = vadd.f32 %v1955, %v2286
        %v2351 = vadd.f32 %v1956, %v2288
        %v2352 = vadd.f32 %v1957, %v2291
        %v2353 = vadd.f32 %v1958, %v2293
        %v2354 = vadd.f32 %v1959, %v2296
        %v2355 = vadd.f32 %v1960, %v2298
        %v2356 = vadd.f32 %v1961, %v2301
        %v2357 = vadd.f32 %v1962, %v2303
        %v2358 = vadd.f32 %v1963, %v2306
        %v2359 = vadd.f32 %v1964, %v2308
        %v2360 = vadd.f32 %v1965, %v2311
        %v2361 = vadd.f32 %v1966, %v2313
        %v2362 = vadd.f32 %v1967, %v2316
        %v2363 = vadd.f32 %v1968, %v2318
        %v2364 = vadd.f32 %v1969, %v2321
        %v2365 = vadd.f32 %v1970, %v2323
        %v2366 = vadd.f32 %v1971, %v2326
        %v2367 = vadd.f32 %v1972, %v2328
        %v2368 = vadd.f32 %v1973, %v2331
        %v2369 = vadd.f32 %v1974, %v2333
        %v2370 = vadd.f32 %v1975, %v2336
        %v2371 = vadd.f32 %v1976, %v2338
        %v2372 = vsel %vm1217, 1, 0
        %v2373 = vsel %vm1218, 1, 0
        %v2374 = vsel %vm1219, 1, 0
        %v2375 = vsel %vm1220, 1, 0
        %v2376 = vsel %vm1221, 1, 0
        %v2377 = vsel %vm1222, 1, 0
        %v2378 = vsel %vm1223, 1, 0
        %v2379 = vsel %vm1224, 1, 0
        %v2380 = vsel %vm1225, 1, 0
        %v2381 = vsel %vm1226, 1, 0
        %v2382 = vsel %vm1227, 1, 0
        %v2383 = vsel %vm1228, 1, 0
        %v2384 = vsel %vm1229, 1, 0
        %v2385 = vsel %vm1230, 1, 0
        %v2386 = vsel %vm1231, 1, 0
        %v2387 = vsel %vm1232, 1, 0
        %v2388 = vsel %vm1233, 1, 0
        %v2389 = vsel %vm1234, 1, 0
        %v2390 = vsel %vm1235, 1, 0
        %v2391 = vsel %vm1236, 1, 0
        %v2392 = vsel %vm1237, 1, 0
        %v2393 = vsel %vm1238, 1, 0
        %v2394 = vsel %vm1239, 1, 0
        %v2395 = vsel %vm1240, 1, 0
        %v2396 = vsel %vm1241, 1, 0
        %v2397 = vsel %vm1242, 1, 0
        %v2398 = vsel %vm1243, 1, 0
        %v2399 = vsel %vm1244, 1, 0
        %v2400 = vsel %vm1245, 1, 0
        %v2401 = vsel %vm1246, 1, 0
        %v2402 = vsel %vm1247, 1, 0
        %v2403 = vsel %vm1248, 1, 0
        %vm2404 = vcmp.eq.s32.totalorder %v2372, 1
        %vm2405 = vcmp.eq.s32.totalorder %v2373, 1
        %vm2406 = vcmp.eq.s32.totalorder %v2374, 1
        %vm2407 = vcmp.eq.s32.totalorder %v2375, 1
        %vm2408 = vcmp.eq.s32.totalorder %v2376, 1
        %vm2409 = vcmp.eq.s32.totalorder %v2377, 1
        %vm2410 = vcmp.eq.s32.totalorder %v2378, 1
        %vm2411 = vcmp.eq.s32.totalorder %v2379, 1
        %vm2412 = vcmp.eq.s32.totalorder %v2380, 1
        %vm2413 = vcmp.eq.s32.totalorder %v2381, 1
        %vm2414 = vcmp.eq.s32.totalorder %v2382, 1
        %vm2415 = vcmp.eq.s32.totalorder %v2383, 1
        %vm2416 = vcmp.eq.s32.totalorder %v2384, 1
        %vm2417 = vcmp.eq.s32.totalorder %v2385, 1
        %vm2418 = vcmp.eq.s32.totalorder %v2386, 1
        %vm2419 = vcmp.eq.s32.totalorder %v2387, 1
        %vm2420 = vcmp.eq.s32.totalorder %v2388, 1
        %vm2421 = vcmp.eq.s32.totalorder %v2389, 1
        %vm2422 = vcmp.eq.s32.totalorder %v2390, 1
        %vm2423 = vcmp.eq.s32.totalorder %v2391, 1
        %vm2424 = vcmp.eq.s32.totalorder %v2392, 1
        %vm2425 = vcmp.eq.s32.totalorder %v2393, 1
        %vm2426 = vcmp.eq.s32.totalorder %v2394, 1
        %vm2427 = vcmp.eq.s32.totalorder %v2395, 1
        %vm2428 = vcmp.eq.s32.totalorder %v2396, 1
        %vm2429 = vcmp.eq.s32.totalorder %v2397, 1
        %vm2430 = vcmp.eq.s32.totalorder %v2398, 1
        %vm2431 = vcmp.eq.s32.totalorder %v2399, 1
        %vm2432 = vcmp.eq.s32.totalorder %v2400, 1
        %vm2433 = vcmp.eq.s32.totalorder %v2401, 1
        %vm2434 = vcmp.eq.s32.totalorder %v2402, 1
        %vm2435 = vcmp.eq.s32.totalorder %v2403, 1
        %v2436 = vsel %vm2404, %v1349, 0.0
        %v2437 = vsel %vm2405, %v1348, 0.0
        %v2438 = vsel %vm2406, %v1347, 0.0
        %v2439 = vsel %vm2407, %v1346, 0.0
        %v2440 = vsel %vm2408, %v1345, 0.0
        %v2441 = vsel %vm2409, %v1344, 0.0
        %v2442 = vsel %vm2410, %v1343, 0.0
        %v2443 = vsel %vm2411, %v1342, 0.0
        %v2444 = vsel %vm2412, %v1341, 0.0
        %v2445 = vsel %vm2413, %v1340, 0.0
        %v2446 = vsel %vm2414, %v1339, 0.0
        %v2447 = vsel %vm2415, %v1338, 0.0
        %v2448 = vsel %vm2416, %v1337, 0.0
        %v2449 = vsel %vm2417, %v1336, 0.0
        %v2450 = vsel %vm2418, %v1335, 0.0
        %v2451 = vsel %vm2419, %v1334, 0.0
        %v2452 = vsel %vm2420, %v1333, 0.0
        %v2453 = vsel %vm2421, %v1332, 0.0
        %v2454 = vsel %vm2422, %v1331, 0.0
        %v2455 = vsel %vm2423, %v1330, 0.0
        %v2456 = vsel %vm2424, %v1329, 0.0
        %v2457 = vsel %vm2425, %v1328, 0.0
        %v2458 = vsel %vm2426, %v1327, 0.0
        %v2459 = vsel %vm2427, %v1326, 0.0
        %v2460 = vsel %vm2428, %v1325, 0.0
        %v2461 = vsel %vm2429, %v1324, 0.0
        %v2462 = vsel %vm2430, %v1323, 0.0
        %v2463 = vsel %vm2431, %v1322, 0.0
        %v2464 = vsel %vm2432, %v1321, 0.0
        %v2465 = vsel %vm2433, %v1320, 0.0
        %v2466 = vsel %vm2434, %v1319, 0.0
        %v2467 = vsel %vm2435, %v1318, 0.0
        %v2468 = vpack.c.bf16 %v2437, %v2436
        %v2469 = vpack.c.bf16 %v2439, %v2438
        %v2470 = vpack.c.bf16 %v2441, %v2440
        %v2471 = vpack.c.bf16 %v2443, %v2442
        %v2472 = vpack.c.bf16 %v2445, %v2444
        %v2473 = vpack.c.bf16 %v2447, %v2446
        %v2474 = vpack.c.bf16 %v2449, %v2448
        %v2475 = vpack.c.bf16 %v2451, %v2450
        %v2476 = vpack.c.bf16 %v2453, %v2452
        %v2477 = vpack.c.bf16 %v2455, %v2454
        %v2478 = vpack.c.bf16 %v2457, %v2456
        %v2479 = vpack.c.bf16 %v2459, %v2458
        %v2480 = vpack.c.bf16 %v2461, %v2460
        %v2481 = vpack.c.bf16 %v2463, %v2462
        %v2482 = vpack.c.bf16 %v2465, %v2464
        %v2483 = vpack.c.bf16 %v2467, %v2466
        %s2484 = scalar_lea.vmem [#allocation7], 192
        %v2485 = vld [vmem:[%s2484] sm:$0xf]
        %v2486 = vld [vmem:[%s2484 + $0x4] sm:$0xf]
        %v2487 = vld [vmem:[%s2484 + $0x8] sm:$0xf]
        %v2488 = vld [vmem:[%s2484 + $0xc] sm:$0xf]
        %v2489 = vld [vmem:[%s2484 + $0x10] sm:$0xf]
        %v2490 = vld [vmem:[%s2484 + $0x14] sm:$0xf]
        %v2491 = vld [vmem:[%s2484 + $0x18] sm:$0xf]
        %v2492 = vld [vmem:[%s2484 + $0x1c] sm:$0xf]
        %v2493 = vld [vmem:[%s2484 + $0x20] sm:$0xf]
        %v2494 = vld [vmem:[%s2484 + $0x24] sm:$0xf]
        %v2495 = vld [vmem:[%s2484 + $0x28] sm:$0xf]
        %v2496 = vld [vmem:[%s2484 + $0x2c] sm:$0xf]
        %v2497 = vld [vmem:[%s2484 + $0x30] sm:$0xf]
        %v2498 = vld [vmem:[%s2484 + $0x34] sm:$0xf]
        %v2499 = vld [vmem:[%s2484 + $0x38] sm:$0xf]
        %v2500 = vld [vmem:[%s2484 + $0x3c] sm:$0xf]
        %v2517 = vunpack.c.l.b16 %v2485
        %v2518 = vunpack.c.l.b16 %v2486
        %v2519 = vunpack.c.l.b16 %v2487
        %v2520 = vunpack.c.l.b16 %v2488
        %v2521 = vunpack.c.l.b16 %v2489
        %v2522 = vunpack.c.l.b16 %v2490
        %v2523 = vunpack.c.l.b16 %v2491
        %v2524 = vunpack.c.l.b16 %v2492
        %v2525 = vunpack.c.l.b16 %v2493
        %v2526 = vunpack.c.l.b16 %v2494
        %v2527 = vunpack.c.l.b16 %v2495
        %v2528 = vunpack.c.l.b16 %v2496
        %v2529 = vunpack.c.l.b16 %v2497
        %v2530 = vunpack.c.l.b16 %v2498
        %v2531 = vunpack.c.l.b16 %v2499
        %v2532 = vunpack.c.l.b16 %v2500
        %v2533 = vpack.c.b16 %v2518, %v2517
        %v2534 = vpack.c.b16 %v2520, %v2519
        %v2535 = vpack.c.b16 %v2522, %v2521
        %v2536 = vpack.c.b16 %v2524, %v2523
        %v2537 = vpack.c.b16 %v2526, %v2525
        %v2538 = vpack.c.b16 %v2528, %v2527
        %v2539 = vpack.c.b16 %v2530, %v2529
        %v2540 = vpack.c.b16 %v2532, %v2531
        %2549 = vmatpush.bf16.msra.mxu0 %v2540
        %2550 = vmatpush.bf16.msra.mxu0 %v2539
        %2551 = vmatpush.bf16.msra.mxu0 %v2538
        %2552 = vmatpush.bf16.msra.mxu0 %v2537
        %2553 = vmatpush.bf16.msra.mxu0 %v2536
        %2554 = vmatpush.bf16.msra.mxu0 %v2535
        %2555 = vmatpush.bf16.msra.mxu0 %v2534
        %2556 = vmatpush.bf16.msra.mxu0 %v2533
        %2557 = vmatmul.bf16.gmra.mxu0 %v2468
        %v2558 = vpop.f32.mrf.mxu0
        %v2559 = vadd.f32 0.0, %v2558
        %v2560 = vpop.f32.mrf.mxu0
        %v2561 = vadd.f32 0.0, %v2560
        %2562 = vmatmul.bf16.gmra.mxu0 %v2469
        %v2563 = vpop.f32.mrf.mxu0
        %v2564 = vadd.f32 0.0, %v2563
        %v2565 = vpop.f32.mrf.mxu0
        %v2566 = vadd.f32 0.0, %v2565
        %2567 = vmatmul.bf16.gmra.mxu0 %v2470
        %v2568 = vpop.f32.mrf.mxu0
        %v2569 = vadd.f32 0.0, %v2568
        %v2570 = vpop.f32.mrf.mxu0
        %v2571 = vadd.f32 0.0, %v2570
        %2572 = vmatmul.bf16.gmra.mxu0 %v2471
        %v2573 = vpop.f32.mrf.mxu0
        %v2574 = vadd.f32 0.0, %v2573
        %v2575 = vpop.f32.mrf.mxu0
        %v2576 = vadd.f32 0.0, %v2575
        %2577 = vmatmul.bf16.gmra.mxu0 %v2472
        %v2578 = vpop.f32.mrf.mxu0
        %v2579 = vadd.f32 0.0, %v2578
        %v2580 = vpop.f32.mrf.mxu0
        %v2581 = vadd.f32 0.0, %v2580
        %2582 = vmatmul.bf16.gmra.mxu0 %v2473
        %v2583 = vpop.f32.mrf.mxu0
        %v2584 = vadd.f32 0.0, %v2583
        %v2585 = vpop.f32.mrf.mxu0
        %v2586 = vadd.f32 0.0, %v2585
        %2587 = vmatmul.bf16.gmra.mxu0 %v2474
        %v2588 = vpop.f32.mrf.mxu0
        %v2589 = vadd.f32 0.0, %v2588
        %v2590 = vpop.f32.mrf.mxu0
        %v2591 = vadd.f32 0.0, %v2590
        %2592 = vmatmul.bf16.gmra.mxu0 %v2475
        %v2593 = vpop.f32.mrf.mxu0
        %v2594 = vadd.f32 0.0, %v2593
        %v2595 = vpop.f32.mrf.mxu0
        %v2596 = vadd.f32 0.0, %v2595
        %2597 = vmatmul.bf16.gmra.mxu0 %v2476
        %v2598 = vpop.f32.mrf.mxu0
        %v2599 = vadd.f32 0.0, %v2598
        %v2600 = vpop.f32.mrf.mxu0
        %v2601 = vadd.f32 0.0, %v2600
        %2602 = vmatmul.bf16.gmra.mxu0 %v2477
        %v2603 = vpop.f32.mrf.mxu0
        %v2604 = vadd.f32 0.0, %v2603
        %v2605 = vpop.f32.mrf.mxu0
        %v2606 = vadd.f32 0.0, %v2605
        %2607 = vmatmul.bf16.gmra.mxu0 %v2478
        %v2608 = vpop.f32.mrf.mxu0
        %v2609 = vadd.f32 0.0, %v2608
        %v2610 = vpop.f32.mrf.mxu0
        %v2611 = vadd.f32 0.0, %v2610
        %2612 = vmatmul.bf16.gmra.mxu0 %v2479
        %v2613 = vpop.f32.mrf.mxu0
        %v2614 = vadd.f32 0.0, %v2613
        %v2615 = vpop.f32.mrf.mxu0
        %v2616 = vadd.f32 0.0, %v2615
        %2617 = vmatmul.bf16.gmra.mxu0 %v2480
        %v2618 = vpop.f32.mrf.mxu0
        %v2619 = vadd.f32 0.0, %v2618
        %v2620 = vpop.f32.mrf.mxu0
        %v2621 = vadd.f32 0.0, %v2620
        %2622 = vmatmul.bf16.gmra.mxu0 %v2481
        %v2623 = vpop.f32.mrf.mxu0
        %v2624 = vadd.f32 0.0, %v2623
        %v2625 = vpop.f32.mrf.mxu0
        %v2626 = vadd.f32 0.0, %v2625
        %2627 = vmatmul.bf16.gmra.mxu0 %v2482
        %v2628 = vpop.f32.mrf.mxu0
        %v2629 = vadd.f32 0.0, %v2628
        %v2630 = vpop.f32.mrf.mxu0
        %v2631 = vadd.f32 0.0, %v2630
        %2632 = vmatmul.bf16.gmra.mxu0 %v2483
        %v2633 = vpop.f32.mrf.mxu0
        %v2634 = vadd.f32 0.0, %v2633
        %v2635 = vpop.f32.mrf.mxu0
        %v2636 = vadd.f32 0.0, %v2635
        %2637 = vdwg.mxu0
        %v2638 = vadd.f32 %v2340, %v2559
        %v2639 = vadd.f32 %v2341, %v2561
        %v2640 = vadd.f32 %v2342, %v2564
        %v2641 = vadd.f32 %v2343, %v2566
        %v2642 = vadd.f32 %v2344, %v2569
        %v2643 = vadd.f32 %v2345, %v2571
        %v2644 = vadd.f32 %v2346, %v2574
        %v2645 = vadd.f32 %v2347, %v2576
        %v2646 = vadd.f32 %v2348, %v2579
        %v2647 = vadd.f32 %v2349, %v2581
        %v2648 = vadd.f32 %v2350, %v2584
        %v2649 = vadd.f32 %v2351, %v2586
        %v2650 = vadd.f32 %v2352, %v2589
        %v2651 = vadd.f32 %v2353, %v2591
        %v2652 = vadd.f32 %v2354, %v2594
        %v2653 = vadd.f32 %v2355, %v2596
        %v2654 = vadd.f32 %v2356, %v2599
        %v2655 = vadd.f32 %v2357, %v2601
        %v2656 = vadd.f32 %v2358, %v2604
        %v2657 = vadd.f32 %v2359, %v2606
        %v2658 = vadd.f32 %v2360, %v2609
        %v2659 = vadd.f32 %v2361, %v2611
        %v2660 = vadd.f32 %v2362, %v2614
        %v2661 = vadd.f32 %v2363, %v2616
        %v2662 = vadd.f32 %v2364, %v2619
        %v2663 = vadd.f32 %v2365, %v2621
        %v2664 = vadd.f32 %v2366, %v2624
        %v2665 = vadd.f32 %v2367, %v2626
        %v2666 = vadd.f32 %v2368, %v2629
        %v2667 = vadd.f32 %v2369, %v2631
        %v2668 = vadd.f32 %v2370, %v2634
        %v2669 = vadd.f32 %v2371, %v2636
        %v2670 = vpack.c.bf16 %v705, %v704
        %v2671 = vpack.c.bf16 %v707, %v706
        %v2672 = vpack.c.bf16 %v709, %v708
        %v2673 = vpack.c.bf16 %v711, %v710
        %v2674 = vpack.c.bf16 %v713, %v712
        %v2675 = vpack.c.bf16 %v715, %v714
        %v2676 = vpack.c.bf16 %v717, %v716
        %v2677 = vpack.c.bf16 %v719, %v718
        %v2678 = vpack.c.bf16 %v721, %v720
        %v2679 = vpack.c.bf16 %v723, %v722
        %v2680 = vpack.c.bf16 %v725, %v724
        %v2681 = vpack.c.bf16 %v727, %v726
        %v2682 = vpack.c.bf16 %v729, %v728
        %v2683 = vpack.c.bf16 %v731, %v730
        %v2684 = vpack.c.bf16 %v733, %v732
        %v2685 = vpack.c.bf16 %v735, %v734
        %s2686 = scalar_lea.vmem [#allocation7], 256
        %v2687 = vld [vmem:[%s2686] sm:$0xf]
        %v2688 = vld [vmem:[%s2686 + $0x4] sm:$0xf]
        %v2689 = vld [vmem:[%s2686 + $0x8] sm:$0xf]
        %v2690 = vld [vmem:[%s2686 + $0xc] sm:$0xf]
        %v2691 = vld [vmem:[%s2686 + $0x10] sm:$0xf]
        %v2692 = vld [vmem:[%s2686 + $0x14] sm:$0xf]
        %v2693 = vld [vmem:[%s2686 + $0x18] sm:$0xf]
        %v2694 = vld [vmem:[%s2686 + $0x1c] sm:$0xf]
        %v2695 = vld [vmem:[%s2686 + $0x20] sm:$0xf]
        %v2696 = vld [vmem:[%s2686 + $0x24] sm:$0xf]
        %v2697 = vld [vmem:[%s2686 + $0x28] sm:$0xf]
        %v2698 = vld [vmem:[%s2686 + $0x2c] sm:$0xf]
        %v2699 = vld [vmem:[%s2686 + $0x30] sm:$0xf]
        %v2700 = vld [vmem:[%s2686 + $0x34] sm:$0xf]
        %v2701 = vld [vmem:[%s2686 + $0x38] sm:$0xf]
        %v2702 = vld [vmem:[%s2686 + $0x3c] sm:$0xf]
        %v2719 = vunpack.c.l.b16 %v2687
        %v2720 = vunpack.c.l.b16 %v2688
        %v2721 = vunpack.c.l.b16 %v2689
        %v2722 = vunpack.c.l.b16 %v2690
        %v2723 = vunpack.c.l.b16 %v2691
        %v2724 = vunpack.c.l.b16 %v2692
        %v2725 = vunpack.c.l.b16 %v2693
        %v2726 = vunpack.c.l.b16 %v2694
        %v2727 = vunpack.c.l.b16 %v2695
        %v2728 = vunpack.c.l.b16 %v2696
        %v2729 = vunpack.c.l.b16 %v2697
        %v2730 = vunpack.c.l.b16 %v2698
        %v2731 = vunpack.c.l.b16 %v2699
        %v2732 = vunpack.c.l.b16 %v2700
        %v2733 = vunpack.c.l.b16 %v2701
        %v2734 = vunpack.c.l.b16 %v2702
        %v2735 = vpack.c.b16 %v2720, %v2719
        %v2736 = vpack.c.b16 %v2722, %v2721
        %v2737 = vpack.c.b16 %v2724, %v2723
        %v2738 = vpack.c.b16 %v2726, %v2725
        %v2739 = vpack.c.b16 %v2728, %v2727
        %v2740 = vpack.c.b16 %v2730, %v2729
        %v2741 = vpack.c.b16 %v2732, %v2731
        %v2742 = vpack.c.b16 %v2734, %v2733
        %2751 = vmatpush.bf16.msra.mxu0 %v2742
        %2752 = vmatpush.bf16.msra.mxu0 %v2741
        %2753 = vmatpush.bf16.msra.mxu0 %v2740
        %2754 = vmatpush.bf16.msra.mxu0 %v2739
        %2755 = vmatpush.bf16.msra.mxu0 %v2738
        %2756 = vmatpush.bf16.msra.mxu0 %v2737
        %2757 = vmatpush.bf16.msra.mxu0 %v2736
        %2758 = vmatpush.bf16.msra.mxu0 %v2735
        %2759 = vmatmul.bf16.gmra.mxu0 %v2670
        %v2760 = vpop.f32.mrf.mxu0
        %v2761 = vadd.f32 0.0, %v2760
        %v2762 = vpop.f32.mrf.mxu0
        %v2763 = vadd.f32 0.0, %v2762
        %2764 = vmatmul.bf16.gmra.mxu0 %v2671
        %v2765 = vpop.f32.mrf.mxu0
        %v2766 = vadd.f32 0.0, %v2765
        %v2767 = vpop.f32.mrf.mxu0
        %v2768 = vadd.f32 0.0, %v2767
        %2769 = vmatmul.bf16.gmra.mxu0 %v2672
        %v2770 = vpop.f32.mrf.mxu0
        %v2771 = vadd.f32 0.0, %v2770
        %v2772 = vpop.f32.mrf.mxu0
        %v2773 = vadd.f32 0.0, %v2772
        %2774 = vmatmul.bf16.gmra.mxu0 %v2673
        %v2775 = vpop.f32.mrf.mxu0
        %v2776 = vadd.f32 0.0, %v2775
        %v2777 = vpop.f32.mrf.mxu0
        %v2778 = vadd.f32 0.0, %v2777
        %2779 = vmatmul.bf16.gmra.mxu0 %v2674
        %v2780 = vpop.f32.mrf.mxu0
        %v2781 = vadd.f32 0.0, %v2780
        %v2782 = vpop.f32.mrf.mxu0
        %v2783 = vadd.f32 0.0, %v2782
        %2784 = vmatmul.bf16.gmra.mxu0 %v2675
        %v2785 = vpop.f32.mrf.mxu0
        %v2786 = vadd.f32 0.0, %v2785
        %v2787 = vpop.f32.mrf.mxu0
        %v2788 = vadd.f32 0.0, %v2787
        %2789 = vmatmul.bf16.gmra.mxu0 %v2676
        %v2790 = vpop.f32.mrf.mxu0
        %v2791 = vadd.f32 0.0, %v2790
        %v2792 = vpop.f32.mrf.mxu0
        %v2793 = vadd.f32 0.0, %v2792
        %2794 = vmatmul.bf16.gmra.mxu0 %v2677
        %v2795 = vpop.f32.mrf.mxu0
        %v2796 = vadd.f32 0.0, %v2795
        %v2797 = vpop.f32.mrf.mxu0
        %v2798 = vadd.f32 0.0, %v2797
        %2799 = vmatmul.bf16.gmra.mxu0 %v2678
        %v2800 = vpop.f32.mrf.mxu0
        %v2801 = vadd.f32 0.0, %v2800
        %v2802 = vpop.f32.mrf.mxu0
        %v2803 = vadd.f32 0.0, %v2802
        %2804 = vmatmul.bf16.gmra.mxu0 %v2679
        %v2805 = vpop.f32.mrf.mxu0
        %v2806 = vadd.f32 0.0, %v2805
        %v2807 = vpop.f32.mrf.mxu0
        %v2808 = vadd.f32 0.0, %v2807
        %2809 = vmatmul.bf16.gmra.mxu0 %v2680
        %v2810 = vpop.f32.mrf.mxu0
        %v2811 = vadd.f32 0.0, %v2810
        %v2812 = vpop.f32.mrf.mxu0
        %v2813 = vadd.f32 0.0, %v2812
        %2814 = vmatmul.bf16.gmra.mxu0 %v2681
        %v2815 = vpop.f32.mrf.mxu0
        %v2816 = vadd.f32 0.0, %v2815
        %v2817 = vpop.f32.mrf.mxu0
        %v2818 = vadd.f32 0.0, %v2817
        %2819 = vmatmul.bf16.gmra.mxu0 %v2682
        %v2820 = vpop.f32.mrf.mxu0
        %v2821 = vadd.f32 0.0, %v2820
        %v2822 = vpop.f32.mrf.mxu0
        %v2823 = vadd.f32 0.0, %v2822
        %2824 = vmatmul.bf16.gmra.mxu0 %v2683
        %v2825 = vpop.f32.mrf.mxu0
        %v2826 = vadd.f32 0.0, %v2825
        %v2827 = vpop.f32.mrf.mxu0
        %v2828 = vadd.f32 0.0, %v2827
        %2829 = vmatmul.bf16.gmra.mxu0 %v2684
        %v2830 = vpop.f32.mrf.mxu0
        %v2831 = vadd.f32 0.0, %v2830
        %v2832 = vpop.f32.mrf.mxu0
        %v2833 = vadd.f32 0.0, %v2832
        %2834 = vmatmul.bf16.gmra.mxu0 %v2685
        %v2835 = vpop.f32.mrf.mxu0
        %v2836 = vadd.f32 0.0, %v2835
        %v2837 = vpop.f32.mrf.mxu0
        %v2838 = vadd.f32 0.0, %v2837
        %2839 = vdwg.mxu0
        %v2840 = vadd.f32 %v2638, %v2761
        %v2841 = vadd.f32 %v2639, %v2763
        %v2842 = vadd.f32 %v2640, %v2766
        %v2843 = vadd.f32 %v2641, %v2768
        %v2844 = vadd.f32 %v2642, %v2771
        %v2845 = vadd.f32 %v2643, %v2773
        %v2846 = vadd.f32 %v2644, %v2776
        %v2847 = vadd.f32 %v2645, %v2778
        %v2848 = vadd.f32 %v2646, %v2781
        %v2849 = vadd.f32 %v2647, %v2783
        %v2850 = vadd.f32 %v2648, %v2786
        %v2851 = vadd.f32 %v2649, %v2788
        %v2852 = vadd.f32 %v2650, %v2791
        %v2853 = vadd.f32 %v2651, %v2793
        %v2854 = vadd.f32 %v2652, %v2796
        %v2855 = vadd.f32 %v2653, %v2798
        %v2856 = vadd.f32 %v2654, %v2801
        %v2857 = vadd.f32 %v2655, %v2803
        %v2858 = vadd.f32 %v2656, %v2806
        %v2859 = vadd.f32 %v2657, %v2808
        %v2860 = vadd.f32 %v2658, %v2811
        %v2861 = vadd.f32 %v2659, %v2813
        %v2862 = vadd.f32 %v2660, %v2816
        %v2863 = vadd.f32 %v2661, %v2818
        %v2864 = vadd.f32 %v2662, %v2821
        %v2865 = vadd.f32 %v2663, %v2823
        %v2866 = vadd.f32 %v2664, %v2826
        %v2867 = vadd.f32 %v2665, %v2828
        %v2868 = vadd.f32 %v2666, %v2831
        %v2869 = vadd.f32 %v2667, %v2833
        %v2870 = vadd.f32 %v2668, %v2836
        %v2871 = vadd.f32 %v2669, %v2838
        %v2872 = vsel %vm1249, 1, 0
        %v2873 = vsel %vm1250, 1, 0
        %v2874 = vsel %vm1251, 1, 0
        %v2875 = vsel %vm1252, 1, 0
        %v2876 = vsel %vm1253, 1, 0
        %v2877 = vsel %vm1254, 1, 0
        %v2878 = vsel %vm1255, 1, 0
        %v2879 = vsel %vm1256, 1, 0
        %v2880 = vsel %vm1257, 1, 0
        %v2881 = vsel %vm1258, 1, 0
        %v2882 = vsel %vm1259, 1, 0
        %v2883 = vsel %vm1260, 1, 0
        %v2884 = vsel %vm1261, 1, 0
        %v2885 = vsel %vm1262, 1, 0
        %v2886 = vsel %vm1263, 1, 0
        %v2887 = vsel %vm1264, 1, 0
        %v2888 = vsel %vm1265, 1, 0
        %v2889 = vsel %vm1266, 1, 0
        %v2890 = vsel %vm1267, 1, 0
        %v2891 = vsel %vm1268, 1, 0
        %v2892 = vsel %vm1269, 1, 0
        %v2893 = vsel %vm1270, 1, 0
        %v2894 = vsel %vm1271, 1, 0
        %v2895 = vsel %vm1272, 1, 0
        %v2896 = vsel %vm1273, 1, 0
        %v2897 = vsel %vm1274, 1, 0
        %v2898 = vsel %vm1275, 1, 0
        %v2899 = vsel %vm1276, 1, 0
        %v2900 = vsel %vm1277, 1, 0
        %v2901 = vsel %vm1278, 1, 0
        %v2902 = vsel %vm1279, 1, 0
        %v2903 = vsel %vm1280, 1, 0
        %vm2904 = vcmp.eq.s32.totalorder %v2872, 1
        %vm2905 = vcmp.eq.s32.totalorder %v2873, 1
        %vm2906 = vcmp.eq.s32.totalorder %v2874, 1
        %vm2907 = vcmp.eq.s32.totalorder %v2875, 1
        %vm2908 = vcmp.eq.s32.totalorder %v2876, 1
        %vm2909 = vcmp.eq.s32.totalorder %v2877, 1
        %vm2910 = vcmp.eq.s32.totalorder %v2878, 1
        %vm2911 = vcmp.eq.s32.totalorder %v2879, 1
        %vm2912 = vcmp.eq.s32.totalorder %v2880, 1
        %vm2913 = vcmp.eq.s32.totalorder %v2881, 1
        %vm2914 = vcmp.eq.s32.totalorder %v2882, 1
        %vm2915 = vcmp.eq.s32.totalorder %v2883, 1
        %vm2916 = vcmp.eq.s32.totalorder %v2884, 1
        %vm2917 = vcmp.eq.s32.totalorder %v2885, 1
        %vm2918 = vcmp.eq.s32.totalorder %v2886, 1
        %vm2919 = vcmp.eq.s32.totalorder %v2887, 1
        %vm2920 = vcmp.eq.s32.totalorder %v2888, 1
        %vm2921 = vcmp.eq.s32.totalorder %v2889, 1
        %vm2922 = vcmp.eq.s32.totalorder %v2890, 1
        %vm2923 = vcmp.eq.s32.totalorder %v2891, 1
        %vm2924 = vcmp.eq.s32.totalorder %v2892, 1
        %vm2925 = vcmp.eq.s32.totalorder %v2893, 1
        %vm2926 = vcmp.eq.s32.totalorder %v2894, 1
        %vm2927 = vcmp.eq.s32.totalorder %v2895, 1
        %vm2928 = vcmp.eq.s32.totalorder %v2896, 1
        %vm2929 = vcmp.eq.s32.totalorder %v2897, 1
        %vm2930 = vcmp.eq.s32.totalorder %v2898, 1
        %vm2931 = vcmp.eq.s32.totalorder %v2899, 1
        %vm2932 = vcmp.eq.s32.totalorder %v2900, 1
        %vm2933 = vcmp.eq.s32.totalorder %v2901, 1
        %vm2934 = vcmp.eq.s32.totalorder %v2902, 1
        %vm2935 = vcmp.eq.s32.totalorder %v2903, 1
        %v2936 = vsel %vm2904, %v2040, 0.0
        %v2937 = vsel %vm2905, %v2039, 0.0
        %v2938 = vsel %vm2906, %v2038, 0.0
        %v2939 = vsel %vm2907, %v2037, 0.0
        %v2940 = vsel %vm2908, %v2036, 0.0
        %v2941 = vsel %vm2909, %v2035, 0.0
        %v2942 = vsel %vm2910, %v2034, 0.0
        %v2943 = vsel %vm2911, %v2033, 0.0
        %v2944 = vsel %vm2912, %v2032, 0.0
        %v2945 = vsel %vm2913, %v2031, 0.0
        %v2946 = vsel %vm2914, %v2030, 0.0
        %v2947 = vsel %vm2915, %v2029, 0.0
        %v2948 = vsel %vm2916, %v2028, 0.0
        %v2949 = vsel %vm2917, %v2027, 0.0
        %v2950 = vsel %vm2918, %v2026, 0.0
        %v2951 = vsel %vm2919, %v2025, 0.0
        %v2952 = vsel %vm2920, %v2024, 0.0
        %v2953 = vsel %vm2921, %v2023, 0.0
        %v2954 = vsel %vm2922, %v2022, 0.0
        %v2955 = vsel %vm2923, %v2021, 0.0
        %v2956 = vsel %vm2924, %v2020, 0.0
        %v2957 = vsel %vm2925, %v2019, 0.0
        %v2958 = vsel %vm2926, %v2018, 0.0
        %v2959 = vsel %vm2927, %v2017, 0.0
        %v2960 = vsel %vm2928, %v2016, 0.0
        %v2961 = vsel %vm2929, %v2015, 0.0
        %v2962 = vsel %vm2930, %v2014, 0.0
        %v2963 = vsel %vm2931, %v2013, 0.0
        %v2964 = vsel %vm2932, %v2012, 0.0
        %v2965 = vsel %vm2933, %v2011, 0.0
        %v2966 = vsel %vm2934, %v2010, 0.0
        %v2967 = vsel %vm2935, %v2041, 0.0
        %v2968 = vpack.c.bf16 %v2937, %v2936
        %v2969 = vpack.c.bf16 %v2939, %v2938
        %v2970 = vpack.c.bf16 %v2941, %v2940
        %v2971 = vpack.c.bf16 %v2943, %v2942
        %v2972 = vpack.c.bf16 %v2945, %v2944
        %v2973 = vpack.c.bf16 %v2947, %v2946
        %v2974 = vpack.c.bf16 %v2949, %v2948
        %v2975 = vpack.c.bf16 %v2951, %v2950
        %v2976 = vpack.c.bf16 %v2953, %v2952
        %v2977 = vpack.c.bf16 %v2955, %v2954
        %v2978 = vpack.c.bf16 %v2957, %v2956
        %v2979 = vpack.c.bf16 %v2959, %v2958
        %v2980 = vpack.c.bf16 %v2961, %v2960
        %v2981 = vpack.c.bf16 %v2963, %v2962
        %v2982 = vpack.c.bf16 %v2965, %v2964
        %v2983 = vpack.c.bf16 %v2967, %v2966
        %s2984 = scalar_lea.vmem [#allocation7], 320
        %v2985 = vld [vmem:[%s2984] sm:$0xf]
        %v2986 = vld [vmem:[%s2984 + $0x4] sm:$0xf]
        %v2987 = vld [vmem:[%s2984 + $0x8] sm:$0xf]
        %v2988 = vld [vmem:[%s2984 + $0xc] sm:$0xf]
        %v2989 = vld [vmem:[%s2984 + $0x10] sm:$0xf]
        %v2990 = vld [vmem:[%s2984 + $0x14] sm:$0xf]
        %v2991 = vld [vmem:[%s2984 + $0x18] sm:$0xf]
        %v2992 = vld [vmem:[%s2984 + $0x1c] sm:$0xf]
        %v2993 = vld [vmem:[%s2984 + $0x20] sm:$0xf]
        %v2994 = vld [vmem:[%s2984 + $0x24] sm:$0xf]
        %v2995 = vld [vmem:[%s2984 + $0x28] sm:$0xf]
        %v2996 = vld [vmem:[%s2984 + $0x2c] sm:$0xf]
        %v2997 = vld [vmem:[%s2984 + $0x30] sm:$0xf]
        %v2998 = vld [vmem:[%s2984 + $0x34] sm:$0xf]
        %v2999 = vld [vmem:[%s2984 + $0x38] sm:$0xf]
        %v3000 = vld [vmem:[%s2984 + $0x3c] sm:$0xf]
        %v3017 = vunpack.c.l.b16 %v2985
        %v3018 = vunpack.c.l.b16 %v2986
        %v3019 = vunpack.c.l.b16 %v2987
        %v3020 = vunpack.c.l.b16 %v2988
        %v3021 = vunpack.c.l.b16 %v2989
        %v3022 = vunpack.c.l.b16 %v2990
        %v3023 = vunpack.c.l.b16 %v2991
        %v3024 = vunpack.c.l.b16 %v2992
        %v3025 = vunpack.c.l.b16 %v2993
        %v3026 = vunpack.c.l.b16 %v2994
        %v3027 = vunpack.c.l.b16 %v2995
        %v3028 = vunpack.c.l.b16 %v2996
        %v3029 = vunpack.c.l.b16 %v2997
        %v3030 = vunpack.c.l.b16 %v2998
        %v3031 = vunpack.c.l.b16 %v2999
        %v3032 = vunpack.c.l.b16 %v3000
        %v3033 = vpack.c.b16 %v3018, %v3017
        %v3034 = vpack.c.b16 %v3020, %v3019
        %v3035 = vpack.c.b16 %v3022, %v3021
        %v3036 = vpack.c.b16 %v3024, %v3023
        %v3037 = vpack.c.b16 %v3026, %v3025
        %v3038 = vpack.c.b16 %v3028, %v3027
        %v3039 = vpack.c.b16 %v3030, %v3029
        %v3040 = vpack.c.b16 %v3032, %v3031
        %3049 = vmatpush.bf16.msra.mxu0 %v3040
        %3050 = vmatpush.bf16.msra.mxu0 %v3039
        %3051 = vmatpush.bf16.msra.mxu0 %v3038
        %3052 = vmatpush.bf16.msra.mxu0 %v3037
        %3053 = vmatpush.bf16.msra.mxu0 %v3036
        %3054 = vmatpush.bf16.msra.mxu0 %v3035
        %3055 = vmatpush.bf16.msra.mxu0 %v3034
        %3056 = vmatpush.bf16.msra.mxu0 %v3033
        %3057 = vmatmul.bf16.gmra.mxu0 %v2968
        %v3058 = vpop.f32.mrf.mxu0
        %v3059 = vadd.f32 0.0, %v3058
        %v3060 = vpop.f32.mrf.mxu0
        %v3061 = vadd.f32 0.0, %v3060
        %3062 = vmatmul.bf16.gmra.mxu0 %v2969
        %v3063 = vpop.f32.mrf.mxu0
        %v3064 = vadd.f32 0.0, %v3063
        %v3065 = vpop.f32.mrf.mxu0
        %v3066 = vadd.f32 0.0, %v3065
        %3067 = vmatmul.bf16.gmra.mxu0 %v2970
        %v3068 = vpop.f32.mrf.mxu0
        %v3069 = vadd.f32 0.0, %v3068
        %v3070 = vpop.f32.mrf.mxu0
        %v3071 = vadd.f32 0.0, %v3070
        %3072 = vmatmul.bf16.gmra.mxu0 %v2971
        %v3073 = vpop.f32.mrf.mxu0
        %v3074 = vadd.f32 0.0, %v3073
        %v3075 = vpop.f32.mrf.mxu0
        %v3076 = vadd.f32 0.0, %v3075
        %3077 = vmatmul.bf16.gmra.mxu0 %v2972
        %v3078 = vpop.f32.mrf.mxu0
        %v3079 = vadd.f32 0.0, %v3078
        %v3080 = vpop.f32.mrf.mxu0
        %v3081 = vadd.f32 0.0, %v3080
        %3082 = vmatmul.bf16.gmra.mxu0 %v2973
        %v3083 = vpop.f32.mrf.mxu0
        %v3084 = vadd.f32 0.0, %v3083
        %v3085 = vpop.f32.mrf.mxu0
        %v3086 = vadd.f32 0.0, %v3085
        %3087 = vmatmul.bf16.gmra.mxu0 %v2974
        %v3088 = vpop.f32.mrf.mxu0
        %v3089 = vadd.f32 0.0, %v3088
        %v3090 = vpop.f32.mrf.mxu0
        %v3091 = vadd.f32 0.0, %v3090
        %3092 = vmatmul.bf16.gmra.mxu0 %v2975
        %v3093 = vpop.f32.mrf.mxu0
        %v3094 = vadd.f32 0.0, %v3093
        %v3095 = vpop.f32.mrf.mxu0
        %v3096 = vadd.f32 0.0, %v3095
        %3097 = vmatmul.bf16.gmra.mxu0 %v2976
        %v3098 = vpop.f32.mrf.mxu0
        %v3099 = vadd.f32 0.0, %v3098
        %v3100 = vpop.f32.mrf.mxu0
        %v3101 = vadd.f32 0.0, %v3100
        %3102 = vmatmul.bf16.gmra.mxu0 %v2977
        %v3103 = vpop.f32.mrf.mxu0
        %v3104 = vadd.f32 0.0, %v3103
        %v3105 = vpop.f32.mrf.mxu0
        %v3106 = vadd.f32 0.0, %v3105
        %3107 = vmatmul.bf16.gmra.mxu0 %v2978
        %v3108 = vpop.f32.mrf.mxu0
        %v3109 = vadd.f32 0.0, %v3108
        %v3110 = vpop.f32.mrf.mxu0
        %v3111 = vadd.f32 0.0, %v3110
        %3112 = vmatmul.bf16.gmra.mxu0 %v2979
        %v3113 = vpop.f32.mrf.mxu0
        %v3114 = vadd.f32 0.0, %v3113
        %v3115 = vpop.f32.mrf.mxu0
        %v3116 = vadd.f32 0.0, %v3115
        %3117 = vmatmul.bf16.gmra.mxu0 %v2980
        %v3118 = vpop.f32.mrf.mxu0
        %v3119 = vadd.f32 0.0, %v3118
        %v3120 = vpop.f32.mrf.mxu0
        %v3121 = vadd.f32 0.0, %v3120
        %3122 = vmatmul.bf16.gmra.mxu0 %v2981
        %v3123 = vpop.f32.mrf.mxu0
        %v3124 = vadd.f32 0.0, %v3123
        %v3125 = vpop.f32.mrf.mxu0
        %v3126 = vadd.f32 0.0, %v3125
        %3127 = vmatmul.bf16.gmra.mxu0 %v2982
        %v3128 = vpop.f32.mrf.mxu0
        %v3129 = vadd.f32 0.0, %v3128
        %v3130 = vpop.f32.mrf.mxu0
        %v3131 = vadd.f32 0.0, %v3130
        %3132 = vmatmul.bf16.gmra.mxu0 %v2983
        %v3133 = vpop.f32.mrf.mxu0
        %v3134 = vadd.f32 0.0, %v3133
        %v3135 = vpop.f32.mrf.mxu0
        %v3136 = vadd.f32 0.0, %v3135
        %3137 = vdwg.mxu0
        %v3138 = vadd.f32 %v2840, %v3059
        %v3139 = vadd.f32 %v2841, %v3061
        %v3140 = vadd.f32 %v2842, %v3064
        %v3141 = vadd.f32 %v2843, %v3066
        %v3142 = vadd.f32 %v2844, %v3069
        %v3143 = vadd.f32 %v2845, %v3071
        %v3144 = vadd.f32 %v2846, %v3074
        %v3145 = vadd.f32 %v2847, %v3076
        %v3146 = vadd.f32 %v2848, %v3079
        %v3147 = vadd.f32 %v2849, %v3081
        %v3148 = vadd.f32 %v2850, %v3084
        %v3149 = vadd.f32 %v2851, %v3086
        %v3150 = vadd.f32 %v2852, %v3089
        %v3151 = vadd.f32 %v2853, %v3091
        %v3152 = vadd.f32 %v2854, %v3094
        %v3153 = vadd.f32 %v2855, %v3096
        %v3154 = vadd.f32 %v2856, %v3099
        %v3155 = vadd.f32 %v2857, %v3101
        %v3156 = vadd.f32 %v2858, %v3104
        %v3157 = vadd.f32 %v2859, %v3106
        %v3158 = vadd.f32 %v2860, %v3109
        %v3159 = vadd.f32 %v2861, %v3111
        %v3160 = vadd.f32 %v2862, %v3114
        %v3161 = vadd.f32 %v2863, %v3116
        %v3162 = vadd.f32 %v2864, %v3119
        %v3163 = vadd.f32 %v2865, %v3121
        %v3164 = vadd.f32 %v2866, %v3124
        %v3165 = vadd.f32 %v2867, %v3126
        %v3166 = vadd.f32 %v2868, %v3129
        %v3167 = vadd.f32 %v2869, %v3131
        %v3168 = vadd.f32 %v2870, %v3134
        %v3169 = vadd.f32 %v2871, %v3136
        %vm3170 = vmand %vm1185, %vm1217
        %vm3171 = vmand %vm1186, %vm1218
        %vm3172 = vmand %vm1187, %vm1219
        %vm3173 = vmand %vm1188, %vm1220
        %vm3174 = vmand %vm1189, %vm1221
        %vm3175 = vmand %vm1190, %vm1222
        %vm3176 = vmand %vm1191, %vm1223
        %vm3177 = vmand %vm1192, %vm1224
        %vm3178 = vmand %vm1193, %vm1225
        %vm3179 = vmand %vm1194, %vm1226
        %vm3180 = vmand %vm1195, %vm1227
        %vm3181 = vmand %vm1196, %vm1228
        %vm3182 = vmand %vm1197, %vm1229
        %vm3183 = vmand %vm1198, %vm1230
        %vm3184 = vmand %vm1199, %vm1231
        %vm3185 = vmand %vm1200, %vm1232
        %vm3186 = vmand %vm1201, %vm1233
        %vm3187 = vmand %vm1202, %vm1234
        %vm3188 = vmand %vm1203, %vm1235
        %vm3189 = vmand %vm1204, %vm1236
        %vm3190 = vmand %vm1205, %vm1237
        %vm3191 = vmand %vm1206, %vm1238
        %vm3192 = vmand %vm1207, %vm1239
        %vm3193 = vmand %vm1208, %vm1240
        %vm3194 = vmand %vm1209, %vm1241
        %vm3195 = vmand %vm1210, %vm1242
        %vm3196 = vmand %vm1211, %vm1243
        %vm3197 = vmand %vm1212, %vm1244
        %vm3198 = vmand %vm1213, %vm1245
        %vm3199 = vmand %vm1214, %vm1246
        %vm3200 = vmand %vm1215, %vm1247
        %vm3201 = vmand %vm1216, %vm1248
        %v3202 = vsel %vm3170, 1, 0
        %v3203 = vsel %vm3171, 1, 0
        %v3204 = vsel %vm3172, 1, 0
        %v3205 = vsel %vm3173, 1, 0
        %v3206 = vsel %vm3174, 1, 0
        %v3207 = vsel %vm3175, 1, 0
        %v3208 = vsel %vm3176, 1, 0
        %v3209 = vsel %vm3177, 1, 0
        %v3210 = vsel %vm3178, 1, 0
        %v3211 = vsel %vm3179, 1, 0
        %v3212 = vsel %vm3180, 1, 0
        %v3213 = vsel %vm3181, 1, 0
        %v3214 = vsel %vm3182, 1, 0
        %v3215 = vsel %vm3183, 1, 0
        %v3216 = vsel %vm3184, 1, 0
        %v3217 = vsel %vm3185, 1, 0
        %v3218 = vsel %vm3186, 1, 0
        %v3219 = vsel %vm3187, 1, 0
        %v3220 = vsel %vm3188, 1, 0
        %v3221 = vsel %vm3189, 1, 0
        %v3222 = vsel %vm3190, 1, 0
        %v3223 = vsel %vm3191, 1, 0
        %v3224 = vsel %vm3192, 1, 0
        %v3225 = vsel %vm3193, 1, 0
        %v3226 = vsel %vm3194, 1, 0
        %v3227 = vsel %vm3195, 1, 0
        %v3228 = vsel %vm3196, 1, 0
        %v3229 = vsel %vm3197, 1, 0
        %v3230 = vsel %vm3198, 1, 0
        %v3231 = vsel %vm3199, 1, 0
        %v3232 = vsel %vm3200, 1, 0
        %v3233 = vsel %vm3201, 1, 0
        %vm3234 = vcmp.eq.s32.totalorder %v3202, 1
        %vm3235 = vcmp.eq.s32.totalorder %v3203, 1
        %vm3236 = vcmp.eq.s32.totalorder %v3204, 1
        %vm3237 = vcmp.eq.s32.totalorder %v3205, 1
        %vm3238 = vcmp.eq.s32.totalorder %v3206, 1
        %vm3239 = vcmp.eq.s32.totalorder %v3207, 1
        %vm3240 = vcmp.eq.s32.totalorder %v3208, 1
        %vm3241 = vcmp.eq.s32.totalorder %v3209, 1
        %vm3242 = vcmp.eq.s32.totalorder %v3210, 1
        %vm3243 = vcmp.eq.s32.totalorder %v3211, 1
        %vm3244 = vcmp.eq.s32.totalorder %v3212, 1
        %vm3245 = vcmp.eq.s32.totalorder %v3213, 1
        %vm3246 = vcmp.eq.s32.totalorder %v3214, 1
        %vm3247 = vcmp.eq.s32.totalorder %v3215, 1
        %vm3248 = vcmp.eq.s32.totalorder %v3216, 1
        %vm3249 = vcmp.eq.s32.totalorder %v3217, 1
        %vm3250 = vcmp.eq.s32.totalorder %v3218, 1
        %vm3251 = vcmp.eq.s32.totalorder %v3219, 1
        %vm3252 = vcmp.eq.s32.totalorder %v3220, 1
        %vm3253 = vcmp.eq.s32.totalorder %v3221, 1
        %vm3254 = vcmp.eq.s32.totalorder %v3222, 1
        %vm3255 = vcmp.eq.s32.totalorder %v3223, 1
        %vm3256 = vcmp.eq.s32.totalorder %v3224, 1
        %vm3257 = vcmp.eq.s32.totalorder %v3225, 1
        %vm3258 = vcmp.eq.s32.totalorder %v3226, 1
        %vm3259 = vcmp.eq.s32.totalorder %v3227, 1
        %vm3260 = vcmp.eq.s32.totalorder %v3228, 1
        %vm3261 = vcmp.eq.s32.totalorder %v3229, 1
        %vm3262 = vcmp.eq.s32.totalorder %v3230, 1
        %vm3263 = vcmp.eq.s32.totalorder %v3231, 1
        %vm3264 = vcmp.eq.s32.totalorder %v3232, 1
        %vm3265 = vcmp.eq.s32.totalorder %v3233, 1
        %v3266 = vsel %vm3234, %v1347, 0.0
        %v3267 = vsel %vm3235, %v1346, 0.0
        %v3268 = vsel %vm3236, %v1345, 0.0
        %v3269 = vsel %vm3237, %v1344, 0.0
        %v3270 = vsel %vm3238, %v1343, 0.0
        %v3271 = vsel %vm3239, %v1342, 0.0
        %v3272 = vsel %vm3240, %v1341, 0.0
        %v3273 = vsel %vm3241, %v1340, 0.0
        %v3274 = vsel %vm3242, %v1339, 0.0
        %v3275 = vsel %vm3243, %v1338, 0.0
        %v3276 = vsel %vm3244, %v1337, 0.0
        %v3277 = vsel %vm3245, %v1336, 0.0
        %v3278 = vsel %vm3246, %v1335, 0.0
        %v3279 = vsel %vm3247, %v1334, 0.0
        %v3280 = vsel %vm3248, %v1333, 0.0
        %v3281 = vsel %vm3249, %v1332, 0.0
        %v3282 = vsel %vm3250, %v1331, 0.0
        %v3283 = vsel %vm3251, %v1330, 0.0
        %v3284 = vsel %vm3252, %v1329, 0.0
        %v3285 = vsel %vm3253, %v1328, 0.0
        %v3286 = vsel %vm3254, %v1327, 0.0
        %v3287 = vsel %vm3255, %v1326, 0.0
        %v3288 = vsel %vm3256, %v1325, 0.0
        %v3289 = vsel %vm3257, %v1324, 0.0
        %v3290 = vsel %vm3258, %v1323, 0.0
        %v3291 = vsel %vm3259, %v1322, 0.0
        %v3292 = vsel %vm3260, %v1321, 0.0
        %v3293 = vsel %vm3261, %v1320, 0.0
        %v3294 = vsel %vm3262, %v1319, 0.0
        %v3295 = vsel %vm3263, %v1318, 0.0
        %v3296 = vsel %vm3264, %v1349, 0.0
        %v3297 = vsel %vm3265, %v1348, 0.0
        %v3298 = vpack.c.bf16 %v3267, %v3266
        %v3299 = vpack.c.bf16 %v3269, %v3268
        %v3300 = vpack.c.bf16 %v3271, %v3270
        %v3301 = vpack.c.bf16 %v3273, %v3272
        %v3302 = vpack.c.bf16 %v3275, %v3274
        %v3303 = vpack.c.bf16 %v3277, %v3276
        %v3304 = vpack.c.bf16 %v3279, %v3278
        %v3305 = vpack.c.bf16 %v3281, %v3280
        %v3306 = vpack.c.bf16 %v3283, %v3282
        %v3307 = vpack.c.bf16 %v3285, %v3284
        %v3308 = vpack.c.bf16 %v3287, %v3286
        %v3309 = vpack.c.bf16 %v3289, %v3288
        %v3310 = vpack.c.bf16 %v3291, %v3290
        %v3311 = vpack.c.bf16 %v3293, %v3292
        %v3312 = vpack.c.bf16 %v3295, %v3294
        %v3313 = vpack.c.bf16 %v3297, %v3296
        %s3314 = scalar_lea.vmem [#allocation7], 384
        %v3315 = vld [vmem:[%s3314] sm:$0xf]
        %v3316 = vld [vmem:[%s3314 + $0x4] sm:$0xf]
        %v3317 = vld [vmem:[%s3314 + $0x8] sm:$0xf]
        %v3318 = vld [vmem:[%s3314 + $0xc] sm:$0xf]
        %v3319 = vld [vmem:[%s3314 + $0x10] sm:$0xf]
        %v3320 = vld [vmem:[%s3314 + $0x14] sm:$0xf]
        %v3321 = vld [vmem:[%s3314 + $0x18] sm:$0xf]
        %v3322 = vld [vmem:[%s3314 + $0x1c] sm:$0xf]
        %v3323 = vld [vmem:[%s3314 + $0x20] sm:$0xf]
        %v3324 = vld [vmem:[%s3314 + $0x24] sm:$0xf]
        %v3325 = vld [vmem:[%s3314 + $0x28] sm:$0xf]
        %v3326 = vld [vmem:[%s3314 + $0x2c] sm:$0xf]
        %v3327 = vld [vmem:[%s3314 + $0x30] sm:$0xf]
        %v3328 = vld [vmem:[%s3314 + $0x34] sm:$0xf]
        %v3329 = vld [vmem:[%s3314 + $0x38] sm:$0xf]
        %v3330 = vld [vmem:[%s3314 + $0x3c] sm:$0xf]
        %v3347 = vunpack.c.l.b16 %v3315
        %v3348 = vunpack.c.l.b16 %v3316
        %v3349 = vunpack.c.l.b16 %v3317
        %v3350 = vunpack.c.l.b16 %v3318
        %v3351 = vunpack.c.l.b16 %v3319
        %v3352 = vunpack.c.l.b16 %v3320
        %v3353 = vunpack.c.l.b16 %v3321
        %v3354 = vunpack.c.l.b16 %v3322
        %v3355 = vunpack.c.l.b16 %v3323
        %v3356 = vunpack.c.l.b16 %v3324
        %v3357 = vunpack.c.l.b16 %v3325
        %v3358 = vunpack.c.l.b16 %v3326
        %v3359 = vunpack.c.l.b16 %v3327
        %v3360 = vunpack.c.l.b16 %v3328
        %v3361 = vunpack.c.l.b16 %v3329
        %v3362 = vunpack.c.l.b16 %v3330
        %v3363 = vpack.c.b16 %v3348, %v3347
        %v3364 = vpack.c.b16 %v3350, %v3349
        %v3365 = vpack.c.b16 %v3352, %v3351
        %v3366 = vpack.c.b16 %v3354, %v3353
        %v3367 = vpack.c.b16 %v3356, %v3355
        %v3368 = vpack.c.b16 %v3358, %v3357
        %v3369 = vpack.c.b16 %v3360, %v3359
        %v3370 = vpack.c.b16 %v3362, %v3361
        %3379 = vmatpush.bf16.msra.mxu0 %v3370
        %3380 = vmatpush.bf16.msra.mxu0 %v3369
        %3381 = vmatpush.bf16.msra.mxu0 %v3368
        %3382 = vmatpush.bf16.msra.mxu0 %v3367
        %3383 = vmatpush.bf16.msra.mxu0 %v3366
        %3384 = vmatpush.bf16.msra.mxu0 %v3365
        %3385 = vmatpush.bf16.msra.mxu0 %v3364
        %3386 = vmatpush.bf16.msra.mxu0 %v3363
        %3387 = vmatmul.bf16.gmra.mxu0 %v3298
        %v3388 = vpop.f32.mrf.mxu0
        %v3389 = vadd.f32 0.0, %v3388
        %v3390 = vpop.f32.mrf.mxu0
        %v3391 = vadd.f32 0.0, %v3390
        %3392 = vmatmul.bf16.gmra.mxu0 %v3299
        %v3393 = vpop.f32.mrf.mxu0
        %v3394 = vadd.f32 0.0, %v3393
        %v3395 = vpop.f32.mrf.mxu0
        %v3396 = vadd.f32 0.0, %v3395
        %3397 = vmatmul.bf16.gmra.mxu0 %v3300
        %v3398 = vpop.f32.mrf.mxu0
        %v3399 = vadd.f32 0.0, %v3398
        %v3400 = vpop.f32.mrf.mxu0
        %v3401 = vadd.f32 0.0, %v3400
        %3402 = vmatmul.bf16.gmra.mxu0 %v3301
        %v3403 = vpop.f32.mrf.mxu0
        %v3404 = vadd.f32 0.0, %v3403
        %v3405 = vpop.f32.mrf.mxu0
        %v3406 = vadd.f32 0.0, %v3405
        %3407 = vmatmul.bf16.gmra.mxu0 %v3302
        %v3408 = vpop.f32.mrf.mxu0
        %v3409 = vadd.f32 0.0, %v3408
        %v3410 = vpop.f32.mrf.mxu0
        %v3411 = vadd.f32 0.0, %v3410
        %3412 = vmatmul.bf16.gmra.mxu0 %v3303
        %v3413 = vpop.f32.mrf.mxu0
        %v3414 = vadd.f32 0.0, %v3413
        %v3415 = vpop.f32.mrf.mxu0
        %v3416 = vadd.f32 0.0, %v3415
        %3417 = vmatmul.bf16.gmra.mxu0 %v3304
        %v3418 = vpop.f32.mrf.mxu0
        %v3419 = vadd.f32 0.0, %v3418
        %v3420 = vpop.f32.mrf.mxu0
        %v3421 = vadd.f32 0.0, %v3420
        %3422 = vmatmul.bf16.gmra.mxu0 %v3305
        %v3423 = vpop.f32.mrf.mxu0
        %v3424 = vadd.f32 0.0, %v3423
        %v3425 = vpop.f32.mrf.mxu0
        %v3426 = vadd.f32 0.0, %v3425
        %3427 = vmatmul.bf16.gmra.mxu0 %v3306
        %v3428 = vpop.f32.mrf.mxu0
        %v3429 = vadd.f32 0.0, %v3428
        %v3430 = vpop.f32.mrf.mxu0
        %v3431 = vadd.f32 0.0, %v3430
        %3432 = vmatmul.bf16.gmra.mxu0 %v3307
        %v3433 = vpop.f32.mrf.mxu0
        %v3434 = vadd.f32 0.0, %v3433
        %v3435 = vpop.f32.mrf.mxu0
        %v3436 = vadd.f32 0.0, %v3435
        %3437 = vmatmul.bf16.gmra.mxu0 %v3308
        %v3438 = vpop.f32.mrf.mxu0
        %v3439 = vadd.f32 0.0, %v3438
        %v3440 = vpop.f32.mrf.mxu0
        %v3441 = vadd.f32 0.0, %v3440
        %3442 = vmatmul.bf16.gmra.mxu0 %v3309
        %v3443 = vpop.f32.mrf.mxu0
        %v3444 = vadd.f32 0.0, %v3443
        %v3445 = vpop.f32.mrf.mxu0
        %v3446 = vadd.f32 0.0, %v3445
        %3447 = vmatmul.bf16.gmra.mxu0 %v3310
        %v3448 = vpop.f32.mrf.mxu0
        %v3449 = vadd.f32 0.0, %v3448
        %v3450 = vpop.f32.mrf.mxu0
        %v3451 = vadd.f32 0.0, %v3450
        %3452 = vmatmul.bf16.gmra.mxu0 %v3311
        %v3453 = vpop.f32.mrf.mxu0
        %v3454 = vadd.f32 0.0, %v3453
        %v3455 = vpop.f32.mrf.mxu0
        %v3456 = vadd.f32 0.0, %v3455
        %3457 = vmatmul.bf16.gmra.mxu0 %v3312
        %v3458 = vpop.f32.mrf.mxu0
        %v3459 = vadd.f32 0.0, %v3458
        %v3460 = vpop.f32.mrf.mxu0
        %v3461 = vadd.f32 0.0, %v3460
        %3462 = vmatmul.bf16.gmra.mxu0 %v3313
        %v3463 = vpop.f32.mrf.mxu0
        %v3464 = vadd.f32 0.0, %v3463
        %v3465 = vpop.f32.mrf.mxu0
        %v3466 = vadd.f32 0.0, %v3465
        %3467 = vdwg.mxu0
        %v3468 = vadd.f32 %v3138, %v3389
        %v3469 = vadd.f32 %v3139, %v3391
        %v3470 = vadd.f32 %v3140, %v3394
        %v3471 = vadd.f32 %v3141, %v3396
        %v3472 = vadd.f32 %v3142, %v3399
        %v3473 = vadd.f32 %v3143, %v3401
        %v3474 = vadd.f32 %v3144, %v3404
        %v3475 = vadd.f32 %v3145, %v3406
        %v3476 = vadd.f32 %v3146, %v3409
        %v3477 = vadd.f32 %v3147, %v3411
        %v3478 = vadd.f32 %v3148, %v3414
        %v3479 = vadd.f32 %v3149, %v3416
        %v3480 = vadd.f32 %v3150, %v3419
        %v3481 = vadd.f32 %v3151, %v3421
        %v3482 = vadd.f32 %v3152, %v3424
        %v3483 = vadd.f32 %v3153, %v3426
        %v3484 = vadd.f32 %v3154, %v3429
        %v3485 = vadd.f32 %v3155, %v3431
        %v3486 = vadd.f32 %v3156, %v3434
        %v3487 = vadd.f32 %v3157, %v3436
        %v3488 = vadd.f32 %v3158, %v3439
        %v3489 = vadd.f32 %v3159, %v3441
        %v3490 = vadd.f32 %v3160, %v3444
        %v3491 = vadd.f32 %v3161, %v3446
        %v3492 = vadd.f32 %v3162, %v3449
        %v3493 = vadd.f32 %v3163, %v3451
        %v3494 = vadd.f32 %v3164, %v3454
        %v3495 = vadd.f32 %v3165, %v3456
        %v3496 = vadd.f32 %v3166, %v3459
        %v3497 = vadd.f32 %v3167, %v3461
        %v3498 = vadd.f32 %v3168, %v3464
        %v3499 = vadd.f32 %v3169, %v3466
        %v3500 = vsel %vm1185, 1, 0
        %v3501 = vsel %vm1186, 1, 0
        %v3502 = vsel %vm1187, 1, 0
        %v3503 = vsel %vm1188, 1, 0
        %v3504 = vsel %vm1189, 1, 0
        %v3505 = vsel %vm1190, 1, 0
        %v3506 = vsel %vm1191, 1, 0
        %v3507 = vsel %vm1192, 1, 0
        %v3508 = vsel %vm1193, 1, 0
        %v3509 = vsel %vm1194, 1, 0
        %v3510 = vsel %vm1195, 1, 0
        %v3511 = vsel %vm1196, 1, 0
        %v3512 = vsel %vm1197, 1, 0
        %v3513 = vsel %vm1198, 1, 0
        %v3514 = vsel %vm1199, 1, 0
        %v3515 = vsel %vm1200, 1, 0
        %v3516 = vsel %vm1201, 1, 0
        %v3517 = vsel %vm1202, 1, 0
        %v3518 = vsel %vm1203, 1, 0
        %v3519 = vsel %vm1204, 1, 0
        %v3520 = vsel %vm1205, 1, 0
        %v3521 = vsel %vm1206, 1, 0
        %v3522 = vsel %vm1207, 1, 0
        %v3523 = vsel %vm1208, 1, 0
        %v3524 = vsel %vm1209, 1, 0
        %v3525 = vsel %vm1210, 1, 0
        %v3526 = vsel %vm1211, 1, 0
        %v3527 = vsel %vm1212, 1, 0
        %v3528 = vsel %vm1213, 1, 0
        %v3529 = vsel %vm1214, 1, 0
        %v3530 = vsel %vm1215, 1, 0
        %v3531 = vsel %vm1216, 1, 0
        %vm3532 = vcmp.eq.s32.totalorder %v3500, 1
        %vm3533 = vcmp.eq.s32.totalorder %v3501, 1
        %vm3534 = vcmp.eq.s32.totalorder %v3502, 1
        %vm3535 = vcmp.eq.s32.totalorder %v3503, 1
        %vm3536 = vcmp.eq.s32.totalorder %v3504, 1
        %vm3537 = vcmp.eq.s32.totalorder %v3505, 1
        %vm3538 = vcmp.eq.s32.totalorder %v3506, 1
        %vm3539 = vcmp.eq.s32.totalorder %v3507, 1
        %vm3540 = vcmp.eq.s32.totalorder %v3508, 1
        %vm3541 = vcmp.eq.s32.totalorder %v3509, 1
        %vm3542 = vcmp.eq.s32.totalorder %v3510, 1
        %vm3543 = vcmp.eq.s32.totalorder %v3511, 1
        %vm3544 = vcmp.eq.s32.totalorder %v3512, 1
        %vm3545 = vcmp.eq.s32.totalorder %v3513, 1
        %vm3546 = vcmp.eq.s32.totalorder %v3514, 1
        %vm3547 = vcmp.eq.s32.totalorder %v3515, 1
        %vm3548 = vcmp.eq.s32.totalorder %v3516, 1
        %vm3549 = vcmp.eq.s32.totalorder %v3517, 1
        %vm3550 = vcmp.eq.s32.totalorder %v3518, 1
        %vm3551 = vcmp.eq.s32.totalorder %v3519, 1
        %vm3552 = vcmp.eq.s32.totalorder %v3520, 1
        %vm3553 = vcmp.eq.s32.totalorder %v3521, 1
        %vm3554 = vcmp.eq.s32.totalorder %v3522, 1
        %vm3555 = vcmp.eq.s32.totalorder %v3523, 1
        %vm3556 = vcmp.eq.s32.totalorder %v3524, 1
        %vm3557 = vcmp.eq.s32.totalorder %v3525, 1
        %vm3558 = vcmp.eq.s32.totalorder %v3526, 1
        %vm3559 = vcmp.eq.s32.totalorder %v3527, 1
        %vm3560 = vcmp.eq.s32.totalorder %v3528, 1
        %vm3561 = vcmp.eq.s32.totalorder %v3529, 1
        %vm3562 = vcmp.eq.s32.totalorder %v3530, 1
        %vm3563 = vcmp.eq.s32.totalorder %v3531, 1
        %v3564 = vsel %vm3532, %v706, 0.0
        %v3565 = vsel %vm3533, %v707, 0.0
        %v3566 = vsel %vm3534, %v708, 0.0
        %v3567 = vsel %vm3535, %v709, 0.0
        %v3568 = vsel %vm3536, %v710, 0.0
        %v3569 = vsel %vm3537, %v711, 0.0
        %v3570 = vsel %vm3538, %v712, 0.0
        %v3571 = vsel %vm3539, %v713, 0.0
        %v3572 = vsel %vm3540, %v714, 0.0
        %v3573 = vsel %vm3541, %v715, 0.0
        %v3574 = vsel %vm3542, %v716, 0.0
        %v3575 = vsel %vm3543, %v717, 0.0
        %v3576 = vsel %vm3544, %v718, 0.0
        %v3577 = vsel %vm3545, %v719, 0.0
        %v3578 = vsel %vm3546, %v720, 0.0
        %v3579 = vsel %vm3547, %v721, 0.0
        %v3580 = vsel %vm3548, %v722, 0.0
        %v3581 = vsel %vm3549, %v723, 0.0
        %v3582 = vsel %vm3550, %v724, 0.0
        %v3583 = vsel %vm3551, %v725, 0.0
        %v3584 = vsel %vm3552, %v726, 0.0
        %v3585 = vsel %vm3553, %v727, 0.0
        %v3586 = vsel %vm3554, %v728, 0.0
        %v3587 = vsel %vm3555, %v729, 0.0
        %v3588 = vsel %vm3556, %v730, 0.0
        %v3589 = vsel %vm3557, %v731, 0.0
        %v3590 = vsel %vm3558, %v732, 0.0
        %v3591 = vsel %vm3559, %v733, 0.0
        %v3592 = vsel %vm3560, %v734, 0.0
        %v3593 = vsel %vm3561, %v735, 0.0
        %v3594 = vsel %vm3562, %v704, 0.0
        %v3595 = vsel %vm3563, %v705, 0.0
        %v3596 = vpack.c.bf16 %v3565, %v3564
        %v3597 = vpack.c.bf16 %v3567, %v3566
        %v3598 = vpack.c.bf16 %v3569, %v3568
        %v3599 = vpack.c.bf16 %v3571, %v3570
        %v3600 = vpack.c.bf16 %v3573, %v3572
        %v3601 = vpack.c.bf16 %v3575, %v3574
        %v3602 = vpack.c.bf16 %v3577, %v3576
        %v3603 = vpack.c.bf16 %v3579, %v3578
        %v3604 = vpack.c.bf16 %v3581, %v3580
        %v3605 = vpack.c.bf16 %v3583, %v3582
        %v3606 = vpack.c.bf16 %v3585, %v3584
        %v3607 = vpack.c.bf16 %v3587, %v3586
        %v3608 = vpack.c.bf16 %v3589, %v3588
        %v3609 = vpack.c.bf16 %v3591, %v3590
        %v3610 = vpack.c.bf16 %v3593, %v3592
        %v3611 = vpack.c.bf16 %v3595, %v3594
        %s3612 = scalar_lea.vmem [#allocation7], 448
        %v3613 = vld [vmem:[%s3612] sm:$0xf]
        %v3614 = vld [vmem:[%s3612 + $0x4] sm:$0xf]
        %v3615 = vld [vmem:[%s3612 + $0x8] sm:$0xf]
        %v3616 = vld [vmem:[%s3612 + $0xc] sm:$0xf]
        %v3617 = vld [vmem:[%s3612 + $0x10] sm:$0xf]
        %v3618 = vld [vmem:[%s3612 + $0x14] sm:$0xf]
        %v3619 = vld [vmem:[%s3612 + $0x18] sm:$0xf]
        %v3620 = vld [vmem:[%s3612 + $0x1c] sm:$0xf]
        %v3621 = vld [vmem:[%s3612 + $0x20] sm:$0xf]
        %v3622 = vld [vmem:[%s3612 + $0x24] sm:$0xf]
        %v3623 = vld [vmem:[%s3612 + $0x28] sm:$0xf]
        %v3624 = vld [vmem:[%s3612 + $0x2c] sm:$0xf]
        %v3625 = vld [vmem:[%s3612 + $0x30] sm:$0xf]
        %v3626 = vld [vmem:[%s3612 + $0x34] sm:$0xf]
        %v3627 = vld [vmem:[%s3612 + $0x38] sm:$0xf]
        %v3628 = vld [vmem:[%s3612 + $0x3c] sm:$0xf]
        %v3645 = vunpack.c.l.b16 %v3613
        %v3646 = vunpack.c.l.b16 %v3614
        %v3647 = vunpack.c.l.b16 %v3615
        %v3648 = vunpack.c.l.b16 %v3616
        %v3649 = vunpack.c.l.b16 %v3617
        %v3650 = vunpack.c.l.b16 %v3618
        %v3651 = vunpack.c.l.b16 %v3619
        %v3652 = vunpack.c.l.b16 %v3620
        %v3653 = vunpack.c.l.b16 %v3621
        %v3654 = vunpack.c.l.b16 %v3622
        %v3655 = vunpack.c.l.b16 %v3623
        %v3656 = vunpack.c.l.b16 %v3624
        %v3657 = vunpack.c.l.b16 %v3625
        %v3658 = vunpack.c.l.b16 %v3626
        %v3659 = vunpack.c.l.b16 %v3627
        %v3660 = vunpack.c.l.b16 %v3628
        %v3661 = vpack.c.b16 %v3646, %v3645
        %v3662 = vpack.c.b16 %v3648, %v3647
        %v3663 = vpack.c.b16 %v3650, %v3649
        %v3664 = vpack.c.b16 %v3652, %v3651
        %v3665 = vpack.c.b16 %v3654, %v3653
        %v3666 = vpack.c.b16 %v3656, %v3655
        %v3667 = vpack.c.b16 %v3658, %v3657
        %v3668 = vpack.c.b16 %v3660, %v3659
        %3677 = vmatpush.bf16.msra.mxu0 %v3668
        %3678 = vmatpush.bf16.msra.mxu0 %v3667
        %3679 = vmatpush.bf16.msra.mxu0 %v3666
        %3680 = vmatpush.bf16.msra.mxu0 %v3665
        %3681 = vmatpush.bf16.msra.mxu0 %v3664
        %3682 = vmatpush.bf16.msra.mxu0 %v3663
        %3683 = vmatpush.bf16.msra.mxu0 %v3662
        %3684 = vmatpush.bf16.msra.mxu0 %v3661
        %3685 = vmatmul.bf16.gmra.mxu0 %v3596
        %v3686 = vpop.f32.mrf.mxu0
        %v3687 = vadd.f32 0.0, %v3686
        %v3688 = vpop.f32.mrf.mxu0
        %v3689 = vadd.f32 0.0, %v3688
        %3690 = vmatmul.bf16.gmra.mxu0 %v3597
        %v3691 = vpop.f32.mrf.mxu0
        %v3692 = vadd.f32 0.0, %v3691
        %v3693 = vpop.f32.mrf.mxu0
        %v3694 = vadd.f32 0.0, %v3693
        %3695 = vmatmul.bf16.gmra.mxu0 %v3598
        %v3696 = vpop.f32.mrf.mxu0
        %v3697 = vadd.f32 0.0, %v3696
        %v3698 = vpop.f32.mrf.mxu0
        %v3699 = vadd.f32 0.0, %v3698
        %3700 = vmatmul.bf16.gmra.mxu0 %v3599
        %v3701 = vpop.f32.mrf.mxu0
        %v3702 = vadd.f32 0.0, %v3701
        %v3703 = vpop.f32.mrf.mxu0
        %v3704 = vadd.f32 0.0, %v3703
        %3705 = vmatmul.bf16.gmra.mxu0 %v3600
        %v3706 = vpop.f32.mrf.mxu0
        %v3707 = vadd.f32 0.0, %v3706
        %v3708 = vpop.f32.mrf.mxu0
        %v3709 = vadd.f32 0.0, %v3708
        %3710 = vmatmul.bf16.gmra.mxu0 %v3601
        %v3711 = vpop.f32.mrf.mxu0
        %v3712 = vadd.f32 0.0, %v3711
        %v3713 = vpop.f32.mrf.mxu0
        %v3714 = vadd.f32 0.0, %v3713
        %3715 = vmatmul.bf16.gmra.mxu0 %v3602
        %v3716 = vpop.f32.mrf.mxu0
        %v3717 = vadd.f32 0.0, %v3716
        %v3718 = vpop.f32.mrf.mxu0
        %v3719 = vadd.f32 0.0, %v3718
        %3720 = vmatmul.bf16.gmra.mxu0 %v3603
        %v3721 = vpop.f32.mrf.mxu0
        %v3722 = vadd.f32 0.0, %v3721
        %v3723 = vpop.f32.mrf.mxu0
        %v3724 = vadd.f32 0.0, %v3723
        %3725 = vmatmul.bf16.gmra.mxu0 %v3604
        %v3726 = vpop.f32.mrf.mxu0
        %v3727 = vadd.f32 0.0, %v3726
        %v3728 = vpop.f32.mrf.mxu0
        %v3729 = vadd.f32 0.0, %v3728
        %3730 = vmatmul.bf16.gmra.mxu0 %v3605
        %v3731 = vpop.f32.mrf.mxu0
        %v3732 = vadd.f32 0.0, %v3731
        %v3733 = vpop.f32.mrf.mxu0
        %v3734 = vadd.f32 0.0, %v3733
        %3735 = vmatmul.bf16.gmra.mxu0 %v3606
        %v3736 = vpop.f32.mrf.mxu0
        %v3737 = vadd.f32 0.0, %v3736
        %v3738 = vpop.f32.mrf.mxu0
        %v3739 = vadd.f32 0.0, %v3738
        %3740 = vmatmul.bf16.gmra.mxu0 %v3607
        %v3741 = vpop.f32.mrf.mxu0
        %v3742 = vadd.f32 0.0, %v3741
        %v3743 = vpop.f32.mrf.mxu0
        %v3744 = vadd.f32 0.0, %v3743
        %3745 = vmatmul.bf16.gmra.mxu0 %v3608
        %v3746 = vpop.f32.mrf.mxu0
        %v3747 = vadd.f32 0.0, %v3746
        %v3748 = vpop.f32.mrf.mxu0
        %v3749 = vadd.f32 0.0, %v3748
        %3750 = vmatmul.bf16.gmra.mxu0 %v3609
        %v3751 = vpop.f32.mrf.mxu0
        %v3752 = vadd.f32 0.0, %v3751
        %v3753 = vpop.f32.mrf.mxu0
        %v3754 = vadd.f32 0.0, %v3753
        %3755 = vmatmul.bf16.gmra.mxu0 %v3610
        %v3756 = vpop.f32.mrf.mxu0
        %v3757 = vadd.f32 0.0, %v3756
        %v3758 = vpop.f32.mrf.mxu0
        %v3759 = vadd.f32 0.0, %v3758
        %3760 = vmatmul.bf16.gmra.mxu0 %v3611
        %v3761 = vpop.f32.mrf.mxu0
        %v3762 = vadd.f32 0.0, %v3761
        %v3763 = vpop.f32.mrf.mxu0
        %v3764 = vadd.f32 0.0, %v3763
        %3765 = vdwg.mxu0
        %v3766 = vadd.f32 %v3468, %v3687
        %v3767 = vadd.f32 %v3469, %v3689
        %v3768 = vadd.f32 %v3470, %v3692
        %v3769 = vadd.f32 %v3471, %v3694
        %v3770 = vadd.f32 %v3472, %v3697
        %v3771 = vadd.f32 %v3473, %v3699
        %v3772 = vadd.f32 %v3474, %v3702
        %v3773 = vadd.f32 %v3475, %v3704
        %v3774 = vadd.f32 %v3476, %v3707
        %v3775 = vadd.f32 %v3477, %v3709
        %v3776 = vadd.f32 %v3478, %v3712
        %v3777 = vadd.f32 %v3479, %v3714
        %v3778 = vadd.f32 %v3480, %v3717
        %v3779 = vadd.f32 %v3481, %v3719
        %v3780 = vadd.f32 %v3482, %v3722
        %v3781 = vadd.f32 %v3483, %v3724
        %v3782 = vadd.f32 %v3484, %v3727
        %v3783 = vadd.f32 %v3485, %v3729
        %v3784 = vadd.f32 %v3486, %v3732
        %v3785 = vadd.f32 %v3487, %v3734
        %v3786 = vadd.f32 %v3488, %v3737
        %v3787 = vadd.f32 %v3489, %v3739
        %v3788 = vadd.f32 %v3490, %v3742
        %v3789 = vadd.f32 %v3491, %v3744
        %v3790 = vadd.f32 %v3492, %v3747
        %v3791 = vadd.f32 %v3493, %v3749
        %v3792 = vadd.f32 %v3494, %v3752
        %v3793 = vadd.f32 %v3495, %v3754
        %v3794 = vadd.f32 %v3496, %v3757
        %v3795 = vadd.f32 %v3497, %v3759
        %v3796 = vadd.f32 %v3498, %v3762
        %v3797 = vadd.f32 %v3499, %v3764
        %vm3798 = vmand %vm1185, %vm1249
        %vm3799 = vmand %vm1186, %vm1250
        %vm3800 = vmand %vm1187, %vm1251
        %vm3801 = vmand %vm1188, %vm1252
        %vm3802 = vmand %vm1189, %vm1253
        %vm3803 = vmand %vm1190, %vm1254
        %vm3804 = vmand %vm1191, %vm1255
        %vm3805 = vmand %vm1192, %vm1256
        %vm3806 = vmand %vm1193, %vm1257
        %vm3807 = vmand %vm1194, %vm1258
        %vm3808 = vmand %vm1195, %vm1259
        %vm3809 = vmand %vm1196, %vm1260
        %vm3810 = vmand %vm1197, %vm1261
        %vm3811 = vmand %vm1198, %vm1262
        %vm3812 = vmand %vm1199, %vm1263
        %vm3813 = vmand %vm1200, %vm1264
        %vm3814 = vmand %vm1201, %vm1265
        %vm3815 = vmand %vm1202, %vm1266
        %vm3816 = vmand %vm1203, %vm1267
        %vm3817 = vmand %vm1204, %vm1268
        %vm3818 = vmand %vm1205, %vm1269
        %vm3819 = vmand %vm1206, %vm1270
        %vm3820 = vmand %vm1207, %vm1271
        %vm3821 = vmand %vm1208, %vm1272
        %vm3822 = vmand %vm1209, %vm1273
        %vm3823 = vmand %vm1210, %vm1274
        %vm3824 = vmand %vm1211, %vm1275
        %vm3825 = vmand %vm1212, %vm1276
        %vm3826 = vmand %vm1213, %vm1277
        %vm3827 = vmand %vm1214, %vm1278
        %vm3828 = vmand %vm1215, %vm1279
        %vm3829 = vmand %vm1216, %vm1280
        %v3830 = vsel %vm3798, 1, 0
        %v3831 = vsel %vm3799, 1, 0
        %v3832 = vsel %vm3800, 1, 0
        %v3833 = vsel %vm3801, 1, 0
        %v3834 = vsel %vm3802, 1, 0
        %v3835 = vsel %vm3803, 1, 0
        %v3836 = vsel %vm3804, 1, 0
        %v3837 = vsel %vm3805, 1, 0
        %v3838 = vsel %vm3806, 1, 0
        %v3839 = vsel %vm3807, 1, 0
        %v3840 = vsel %vm3808, 1, 0
        %v3841 = vsel %vm3809, 1, 0
        %v3842 = vsel %vm3810, 1, 0
        %v3843 = vsel %vm3811, 1, 0
        %v3844 = vsel %vm3812, 1, 0
        %v3845 = vsel %vm3813, 1, 0
        %v3846 = vsel %vm3814, 1, 0
        %v3847 = vsel %vm3815, 1, 0
        %v3848 = vsel %vm3816, 1, 0
        %v3849 = vsel %vm3817, 1, 0
        %v3850 = vsel %vm3818, 1, 0
        %v3851 = vsel %vm3819, 1, 0
        %v3852 = vsel %vm3820, 1, 0
        %v3853 = vsel %vm3821, 1, 0
        %v3854 = vsel %vm3822, 1, 0
        %v3855 = vsel %vm3823, 1, 0
        %v3856 = vsel %vm3824, 1, 0
        %v3857 = vsel %vm3825, 1, 0
        %v3858 = vsel %vm3826, 1, 0
        %v3859 = vsel %vm3827, 1, 0
        %v3860 = vsel %vm3828, 1, 0
        %v3861 = vsel %vm3829, 1, 0
        %vm3862 = vcmp.eq.s32.totalorder %v3830, 1
        %vm3863 = vcmp.eq.s32.totalorder %v3831, 1
        %vm3864 = vcmp.eq.s32.totalorder %v3832, 1
        %vm3865 = vcmp.eq.s32.totalorder %v3833, 1
        %vm3866 = vcmp.eq.s32.totalorder %v3834, 1
        %vm3867 = vcmp.eq.s32.totalorder %v3835, 1
        %vm3868 = vcmp.eq.s32.totalorder %v3836, 1
        %vm3869 = vcmp.eq.s32.totalorder %v3837, 1
        %vm3870 = vcmp.eq.s32.totalorder %v3838, 1
        %vm3871 = vcmp.eq.s32.totalorder %v3839, 1
        %vm3872 = vcmp.eq.s32.totalorder %v3840, 1
        %vm3873 = vcmp.eq.s32.totalorder %v3841, 1
        %vm3874 = vcmp.eq.s32.totalorder %v3842, 1
        %vm3875 = vcmp.eq.s32.totalorder %v3843, 1
        %vm3876 = vcmp.eq.s32.totalorder %v3844, 1
        %vm3877 = vcmp.eq.s32.totalorder %v3845, 1
        %vm3878 = vcmp.eq.s32.totalorder %v3846, 1
        %vm3879 = vcmp.eq.s32.totalorder %v3847, 1
        %vm3880 = vcmp.eq.s32.totalorder %v3848, 1
        %vm3881 = vcmp.eq.s32.totalorder %v3849, 1
        %vm3882 = vcmp.eq.s32.totalorder %v3850, 1
        %vm3883 = vcmp.eq.s32.totalorder %v3851, 1
        %vm3884 = vcmp.eq.s32.totalorder %v3852, 1
        %vm3885 = vcmp.eq.s32.totalorder %v3853, 1
        %vm3886 = vcmp.eq.s32.totalorder %v3854, 1
        %vm3887 = vcmp.eq.s32.totalorder %v3855, 1
        %vm3888 = vcmp.eq.s32.totalorder %v3856, 1
        %vm3889 = vcmp.eq.s32.totalorder %v3857, 1
        %vm3890 = vcmp.eq.s32.totalorder %v3858, 1
        %vm3891 = vcmp.eq.s32.totalorder %v3859, 1
        %vm3892 = vcmp.eq.s32.totalorder %v3860, 1
        %vm3893 = vcmp.eq.s32.totalorder %v3861, 1
        %v3894 = vsel %vm3862, %v2038, 0.0
        %v3895 = vsel %vm3863, %v2037, 0.0
        %v3896 = vsel %vm3864, %v2036, 0.0
        %v3897 = vsel %vm3865, %v2035, 0.0
        %v3898 = vsel %vm3866, %v2034, 0.0
        %v3899 = vsel %vm3867, %v2033, 0.0
        %v3900 = vsel %vm3868, %v2032, 0.0
        %v3901 = vsel %vm3869, %v2031, 0.0
        %v3902 = vsel %vm3870, %v2030, 0.0
        %v3903 = vsel %vm3871, %v2029, 0.0
        %v3904 = vsel %vm3872, %v2028, 0.0
        %v3905 = vsel %vm3873, %v2027, 0.0
        %v3906 = vsel %vm3874, %v2026, 0.0
        %v3907 = vsel %vm3875, %v2025, 0.0
        %v3908 = vsel %vm3876, %v2024, 0.0
        %v3909 = vsel %vm3877, %v2023, 0.0
        %v3910 = vsel %vm3878, %v2022, 0.0
        %v3911 = vsel %vm3879, %v2021, 0.0
        %v3912 = vsel %vm3880, %v2020, 0.0
        %v3913 = vsel %vm3881, %v2019, 0.0
        %v3914 = vsel %vm3882, %v2018, 0.0
        %v3915 = vsel %vm3883, %v2017, 0.0
        %v3916 = vsel %vm3884, %v2016, 0.0
        %v3917 = vsel %vm3885, %v2015, 0.0
        %v3918 = vsel %vm3886, %v2014, 0.0
        %v3919 = vsel %vm3887, %v2013, 0.0
        %v3920 = vsel %vm3888, %v2012, 0.0
        %v3921 = vsel %vm3889, %v2011, 0.0
        %v3922 = vsel %vm3890, %v2010, 0.0
        %v3923 = vsel %vm3891, %v2041, 0.0
        %v3924 = vsel %vm3892, %v2040, 0.0
        %v3925 = vsel %vm3893, %v2039, 0.0
        %v3926 = vpack.c.bf16 %v3895, %v3894
        %v3927 = vpack.c.bf16 %v3897, %v3896
        %v3928 = vpack.c.bf16 %v3899, %v3898
        %v3929 = vpack.c.bf16 %v3901, %v3900
        %v3930 = vpack.c.bf16 %v3903, %v3902
        %v3931 = vpack.c.bf16 %v3905, %v3904
        %v3932 = vpack.c.bf16 %v3907, %v3906
        %v3933 = vpack.c.bf16 %v3909, %v3908
        %v3934 = vpack.c.bf16 %v3911, %v3910
        %v3935 = vpack.c.bf16 %v3913, %v3912
        %v3936 = vpack.c.bf16 %v3915, %v3914
        %v3937 = vpack.c.bf16 %v3917, %v3916
        %v3938 = vpack.c.bf16 %v3919, %v3918
        %v3939 = vpack.c.bf16 %v3921, %v3920
        %v3940 = vpack.c.bf16 %v3923, %v3922
        %v3941 = vpack.c.bf16 %v3925, %v3924
        %s3942 = scalar_lea.vmem [#allocation7], 512
        %v3943 = vld [vmem:[%s3942] sm:$0xf]
        %v3944 = vld [vmem:[%s3942 + $0x4] sm:$0xf]
        %v3945 = vld [vmem:[%s3942 + $0x8] sm:$0xf]
        %v3946 = vld [vmem:[%s3942 + $0xc] sm:$0xf]
        %v3947 = vld [vmem:[%s3942 + $0x10] sm:$0xf]
        %v3948 = vld [vmem:[%s3942 + $0x14] sm:$0xf]
        %v3949 = vld [vmem:[%s3942 + $0x18] sm:$0xf]
        %v3950 = vld [vmem:[%s3942 + $0x1c] sm:$0xf]
        %v3951 = vld [vmem:[%s3942 + $0x20] sm:$0xf]
        %v3952 = vld [vmem:[%s3942 + $0x24] sm:$0xf]
        %v3953 = vld [vmem:[%s3942 + $0x28] sm:$0xf]
        %v3954 = vld [vmem:[%s3942 + $0x2c] sm:$0xf]
        %v3955 = vld [vmem:[%s3942 + $0x30] sm:$0xf]
        %v3956 = vld [vmem:[%s3942 + $0x34] sm:$0xf]
        %v3957 = vld [vmem:[%s3942 + $0x38] sm:$0xf]
        %v3958 = vld [vmem:[%s3942 + $0x3c] sm:$0xf]
        %v3975 = vunpack.c.l.b16 %v3943
        %v3976 = vunpack.c.l.b16 %v3944
        %v3977 = vunpack.c.l.b16 %v3945
        %v3978 = vunpack.c.l.b16 %v3946
        %v3979 = vunpack.c.l.b16 %v3947
        %v3980 = vunpack.c.l.b16 %v3948
        %v3981 = vunpack.c.l.b16 %v3949
        %v3982 = vunpack.c.l.b16 %v3950
        %v3983 = vunpack.c.l.b16 %v3951
        %v3984 = vunpack.c.l.b16 %v3952
        %v3985 = vunpack.c.l.b16 %v3953
        %v3986 = vunpack.c.l.b16 %v3954
        %v3987 = vunpack.c.l.b16 %v3955
        %v3988 = vunpack.c.l.b16 %v3956
        %v3989 = vunpack.c.l.b16 %v3957
        %v3990 = vunpack.c.l.b16 %v3958
        %v3991 = vpack.c.b16 %v3976, %v3975
        %v3992 = vpack.c.b16 %v3978, %v3977
        %v3993 = vpack.c.b16 %v3980, %v3979
        %v3994 = vpack.c.b16 %v3982, %v3981
        %v3995 = vpack.c.b16 %v3984, %v3983
        %v3996 = vpack.c.b16 %v3986, %v3985
        %v3997 = vpack.c.b16 %v3988, %v3987
        %v3998 = vpack.c.b16 %v3990, %v3989
        %4007 = vmatpush.bf16.msra.mxu0 %v3998
        %4008 = vmatpush.bf16.msra.mxu0 %v3997
        %4009 = vmatpush.bf16.msra.mxu0 %v3996
        %4010 = vmatpush.bf16.msra.mxu0 %v3995
        %4011 = vmatpush.bf16.msra.mxu0 %v3994
        %4012 = vmatpush.bf16.msra.mxu0 %v3993
        %4013 = vmatpush.bf16.msra.mxu0 %v3992
        %4014 = vmatpush.bf16.msra.mxu0 %v3991
        %4015 = vmatmul.bf16.gmra.mxu0 %v3926
        %v4016 = vpop.f32.mrf.mxu0
        %v4017 = vadd.f32 0.0, %v4016
        %v4018 = vpop.f32.mrf.mxu0
        %v4019 = vadd.f32 0.0, %v4018
        %4020 = vmatmul.bf16.gmra.mxu0 %v3927
        %v4021 = vpop.f32.mrf.mxu0
        %v4022 = vadd.f32 0.0, %v4021
        %v4023 = vpop.f32.mrf.mxu0
        %v4024 = vadd.f32 0.0, %v4023
        %4025 = vmatmul.bf16.gmra.mxu0 %v3928
        %v4026 = vpop.f32.mrf.mxu0
        %v4027 = vadd.f32 0.0, %v4026
        %v4028 = vpop.f32.mrf.mxu0
        %v4029 = vadd.f32 0.0, %v4028
        %4030 = vmatmul.bf16.gmra.mxu0 %v3929
        %v4031 = vpop.f32.mrf.mxu0
        %v4032 = vadd.f32 0.0, %v4031
        %v4033 = vpop.f32.mrf.mxu0
        %v4034 = vadd.f32 0.0, %v4033
        %4035 = vmatmul.bf16.gmra.mxu0 %v3930
        %v4036 = vpop.f32.mrf.mxu0
        %v4037 = vadd.f32 0.0, %v4036
        %v4038 = vpop.f32.mrf.mxu0
        %v4039 = vadd.f32 0.0, %v4038
        %4040 = vmatmul.bf16.gmra.mxu0 %v3931
        %v4041 = vpop.f32.mrf.mxu0
        %v4042 = vadd.f32 0.0, %v4041
        %v4043 = vpop.f32.mrf.mxu0
        %v4044 = vadd.f32 0.0, %v4043
        %4045 = vmatmul.bf16.gmra.mxu0 %v3932
        %v4046 = vpop.f32.mrf.mxu0
        %v4047 = vadd.f32 0.0, %v4046
        %v4048 = vpop.f32.mrf.mxu0
        %v4049 = vadd.f32 0.0, %v4048
        %4050 = vmatmul.bf16.gmra.mxu0 %v3933
        %v4051 = vpop.f32.mrf.mxu0
        %v4052 = vadd.f32 0.0, %v4051
        %v4053 = vpop.f32.mrf.mxu0
        %v4054 = vadd.f32 0.0, %v4053
        %4055 = vmatmul.bf16.gmra.mxu0 %v3934
        %v4056 = vpop.f32.mrf.mxu0
        %v4057 = vadd.f32 0.0, %v4056
        %v4058 = vpop.f32.mrf.mxu0
        %v4059 = vadd.f32 0.0, %v4058
        %4060 = vmatmul.bf16.gmra.mxu0 %v3935
        %v4061 = vpop.f32.mrf.mxu0
        %v4062 = vadd.f32 0.0, %v4061
        %v4063 = vpop.f32.mrf.mxu0
        %v4064 = vadd.f32 0.0, %v4063
        %4065 = vmatmul.bf16.gmra.mxu0 %v3936
        %v4066 = vpop.f32.mrf.mxu0
        %v4067 = vadd.f32 0.0, %v4066
        %v4068 = vpop.f32.mrf.mxu0
        %v4069 = vadd.f32 0.0, %v4068
        %4070 = vmatmul.bf16.gmra.mxu0 %v3937
        %v4071 = vpop.f32.mrf.mxu0
        %v4072 = vadd.f32 0.0, %v4071
        %v4073 = vpop.f32.mrf.mxu0
        %v4074 = vadd.f32 0.0, %v4073
        %4075 = vmatmul.bf16.gmra.mxu0 %v3938
        %v4076 = vpop.f32.mrf.mxu0
        %v4077 = vadd.f32 0.0, %v4076
        %v4078 = vpop.f32.mrf.mxu0
        %v4079 = vadd.f32 0.0, %v4078
        %4080 = vmatmul.bf16.gmra.mxu0 %v3939
        %v4081 = vpop.f32.mrf.mxu0
        %v4082 = vadd.f32 0.0, %v4081
        %v4083 = vpop.f32.mrf.mxu0
        %v4084 = vadd.f32 0.0, %v4083
        %4085 = vmatmul.bf16.gmra.mxu0 %v3940
        %v4086 = vpop.f32.mrf.mxu0
        %v4087 = vadd.f32 0.0, %v4086
        %v4088 = vpop.f32.mrf.mxu0
        %v4089 = vadd.f32 0.0, %v4088
        %4090 = vmatmul.bf16.gmra.mxu0 %v3941
        %v4091 = vpop.f32.mrf.mxu0
        %v4092 = vadd.f32 0.0, %v4091
        %v4093 = vpop.f32.mrf.mxu0
        %v4094 = vadd.f32 0.0, %v4093
        %4095 = vdwg.mxu0
        %v4096 = vadd.f32 %v3766, %v4017
        %v4097 = vadd.f32 %v3767, %v4019
        %v4098 = vadd.f32 %v3768, %v4022
        %v4099 = vadd.f32 %v3769, %v4024
        %v4100 = vadd.f32 %v3770, %v4027
        %v4101 = vadd.f32 %v3771, %v4029
        %v4102 = vadd.f32 %v3772, %v4032
        %v4103 = vadd.f32 %v3773, %v4034
        %v4104 = vadd.f32 %v3774, %v4037
        %v4105 = vadd.f32 %v3775, %v4039
        %v4106 = vadd.f32 %v3776, %v4042
        %v4107 = vadd.f32 %v3777, %v4044
        %v4108 = vadd.f32 %v3778, %v4047
        %v4109 = vadd.f32 %v3779, %v4049
        %v4110 = vadd.f32 %v3780, %v4052
        %v4111 = vadd.f32 %v3781, %v4054
        %v4112 = vadd.f32 %v3782, %v4057
        %v4113 = vadd.f32 %v3783, %v4059
        %v4114 = vadd.f32 %v3784, %v4062
        %v4115 = vadd.f32 %v3785, %v4064
        %v4116 = vadd.f32 %v3786, %v4067
        %v4117 = vadd.f32 %v3787, %v4069
        %v4118 = vadd.f32 %v3788, %v4072
        %v4119 = vadd.f32 %v3789, %v4074
        %v4120 = vadd.f32 %v3790, %v4077
        %v4121 = vadd.f32 %v3791, %v4079
        %v4122 = vadd.f32 %v3792, %v4082
        %v4123 = vadd.f32 %v3793, %v4084
        %v4124 = vadd.f32 %v3794, %v4087
        %v4125 = vadd.f32 %v3795, %v4089
        %v4126 = vadd.f32 %v3796, %v4092
        %v4127 = vadd.f32 %v3797, %v4094
        %v4128 = vmax.f32 %v4096, 0.0
        %v4129 = vmax.f32 %v4097, 0.0
        %v4130 = vmax.f32 %v4098, 0.0
        %v4131 = vmax.f32 %v4099, 0.0
        %v4132 = vmax.f32 %v4100, 0.0
        %v4133 = vmax.f32 %v4101, 0.0
        %v4134 = vmax.f32 %v4102, 0.0
        %v4135 = vmax.f32 %v4103, 0.0
        %v4136 = vmax.f32 %v4104, 0.0
        %v4137 = vmax.f32 %v4105, 0.0
        %v4138 = vmax.f32 %v4106, 0.0
        %v4139 = vmax.f32 %v4107, 0.0
        %v4140 = vmax.f32 %v4108, 0.0
        %v4141 = vmax.f32 %v4109, 0.0
        %v4142 = vmax.f32 %v4110, 0.0
        %v4143 = vmax.f32 %v4111, 0.0
        %v4144 = vmax.f32 %v4112, 0.0
        %v4145 = vmax.f32 %v4113, 0.0
        %v4146 = vmax.f32 %v4114, 0.0
        %v4147 = vmax.f32 %v4115, 0.0
        %v4148 = vmax.f32 %v4116, 0.0
        %v4149 = vmax.f32 %v4117, 0.0
        %v4150 = vmax.f32 %v4118, 0.0
        %v4151 = vmax.f32 %v4119, 0.0
        %v4152 = vmax.f32 %v4120, 0.0
        %v4153 = vmax.f32 %v4121, 0.0
        %v4154 = vmax.f32 %v4122, 0.0
        %v4155 = vmax.f32 %v4123, 0.0
        %v4156 = vmax.f32 %v4124, 0.0
        %v4157 = vmax.f32 %v4125, 0.0
        %v4158 = vmax.f32 %v4126, 0.0
        %v4159 = vmax.f32 %v4127, 0.0
        %v4160 = vadd.f32 %v4128, %v4130
        %v4161 = vadd.f32 %v4129, %v4131
        %v4162 = vadd.f32 %v4132, %v4134
        %v4163 = vadd.f32 %v4133, %v4135
        %v4164 = vadd.f32 %v4136, %v4138
        %v4165 = vadd.f32 %v4137, %v4139
        %v4166 = vadd.f32 %v4140, %v4142
        %v4167 = vadd.f32 %v4141, %v4143
        %v4168 = vadd.f32 %v4144, %v4146
        %v4169 = vadd.f32 %v4145, %v4147
        %v4170 = vadd.f32 %v4148, %v4150
        %v4171 = vadd.f32 %v4149, %v4151
        %v4172 = vadd.f32 %v4152, %v4154
        %v4173 = vadd.f32 %v4153, %v4155
        %v4174 = vadd.f32 %v4156, %v4158
        %v4175 = vadd.f32 %v4157, %v4159
        %v4192 = vrot.slane %v4160, 2
        %v4193 = vrot.slane %v4160, 4
        %v4194 = vrot.slane %v4160, 6
        %v4195 = vrot.slane %v4161, 2
        %v4196 = vrot.slane %v4161, 4
        %v4197 = vrot.slane %v4161, 6
        %v4198 = vrot.slane %v4162, 2
        %v4199 = vrot.slane %v4162, 4
        %v4200 = vrot.slane %v4162, 6
        %v4201 = vrot.slane %v4163, 2
        %v4202 = vrot.slane %v4163, 4
        %v4203 = vrot.slane %v4163, 6
        %v4204 = vrot.slane %v4164, 2
        %v4205 = vrot.slane %v4164, 4
        %v4206 = vrot.slane %v4164, 6
        %v4207 = vrot.slane %v4165, 2
        %v4208 = vrot.slane %v4165, 4
        %v4209 = vrot.slane %v4165, 6
        %v4210 = vrot.slane %v4166, 2
        %v4211 = vrot.slane %v4166, 4
        %v4212 = vrot.slane %v4166, 6
        %v4213 = vrot.slane %v4167, 2
        %v4214 = vrot.slane %v4167, 4
        %v4215 = vrot.slane %v4167, 6
        %v4216 = vrot.slane %v4168, 2
        %v4217 = vrot.slane %v4168, 4
        %v4218 = vrot.slane %v4168, 6
        %v4219 = vrot.slane %v4169, 2
        %v4220 = vrot.slane %v4169, 4
        %v4221 = vrot.slane %v4169, 6
        %v4222 = vrot.slane %v4170, 2
        %v4223 = vrot.slane %v4170, 4
        %v4224 = vrot.slane %v4170, 6
        %v4225 = vrot.slane %v4171, 2
        %v4226 = vrot.slane %v4171, 4
        %v4227 = vrot.slane %v4171, 6
        %v4228 = vrot.slane %v4172, 2
        %v4229 = vrot.slane %v4172, 4
        %v4230 = vrot.slane %v4172, 6
        %v4231 = vrot.slane %v4173, 2
        %v4232 = vrot.slane %v4173, 4
        %v4233 = vrot.slane %v4173, 6
        %v4234 = vrot.slane %v4174, 2
        %v4235 = vrot.slane %v4174, 4
        %v4236 = vrot.slane %v4174, 6
        %v4237 = vrot.slane %v4175, 2
        %v4238 = vrot.slane %v4175, 4
        %v4239 = vrot.slane %v4175, 6
        %vm4288 = vcmask 1041408
        %v4289 = vsel %vm4288, %v4160, 0.0
        %v4290 = vrot.slane %v4289, 4
        %v4291 = vadd.f32 %v4289, %v4290
        %v4292 = vrot.slane %v4291, 2
        %v4293 = vadd.f32 %v4291, %v4292
        %v4294 = vrot.slane %v4293, 1
        %v4295 = vadd.f32 %v4293, %v4294
        %v4296 = vsel %vm4288, %v4192, 0.0
        %v4297 = vrot.slane %v4296, 4
        %v4298 = vadd.f32 %v4296, %v4297
        %v4299 = vrot.slane %v4298, 2
        %v4300 = vadd.f32 %v4298, %v4299
        %v4301 = vrot.slane %v4300, 1
        %v4302 = vadd.f32 %v4300, %v4301
        %v4303 = vsel %vm4288, %v4193, 0.0
        %v4304 = vrot.slane %v4303, 4
        %v4305 = vadd.f32 %v4303, %v4304
        %v4306 = vrot.slane %v4305, 2
        %v4307 = vadd.f32 %v4305, %v4306
        %v4308 = vrot.slane %v4307, 1
        %v4309 = vadd.f32 %v4307, %v4308
        %v4310 = vsel %vm4288, %v4194, 0.0
        %v4311 = vrot.slane %v4310, 4
        %v4312 = vadd.f32 %v4310, %v4311
        %v4313 = vrot.slane %v4312, 2
        %v4314 = vadd.f32 %v4312, %v4313
        %v4315 = vrot.slane %v4314, 1
        %v4316 = vadd.f32 %v4314, %v4315
        %v4317 = vsel %vm4288, %v4161, 0.0
        %v4318 = vrot.slane %v4317, 4
        %v4319 = vadd.f32 %v4317, %v4318
        %v4320 = vrot.slane %v4319, 2
        %v4321 = vadd.f32 %v4319, %v4320
        %v4322 = vrot.slane %v4321, 1
        %v4323 = vadd.f32 %v4321, %v4322
        %v4324 = vsel %vm4288, %v4195, 0.0
        %v4325 = vrot.slane %v4324, 4
        %v4326 = vadd.f32 %v4324, %v4325
        %v4327 = vrot.slane %v4326, 2
        %v4328 = vadd.f32 %v4326, %v4327
        %v4329 = vrot.slane %v4328, 1
        %v4330 = vadd.f32 %v4328, %v4329
        %v4331 = vsel %vm4288, %v4196, 0.0
        %v4332 = vrot.slane %v4331, 4
        %v4333 = vadd.f32 %v4331, %v4332
        %v4334 = vrot.slane %v4333, 2
        %v4335 = vadd.f32 %v4333, %v4334
        %v4336 = vrot.slane %v4335, 1
        %v4337 = vadd.f32 %v4335, %v4336
        %v4338 = vsel %vm4288, %v4197, 0.0
        %v4339 = vrot.slane %v4338, 4
        %v4340 = vadd.f32 %v4338, %v4339
        %v4341 = vrot.slane %v4340, 2
        %v4342 = vadd.f32 %v4340, %v4341
        %v4343 = vrot.slane %v4342, 1
        %v4344 = vadd.f32 %v4342, %v4343
        %v4345 = vsel %vm4288, %v4162, 0.0
        %v4346 = vrot.slane %v4345, 4
        %v4347 = vadd.f32 %v4345, %v4346
        %v4348 = vrot.slane %v4347, 2
        %v4349 = vadd.f32 %v4347, %v4348
        %v4350 = vrot.slane %v4349, 1
        %v4351 = vadd.f32 %v4349, %v4350
        %v4352 = vsel %vm4288, %v4198, 0.0
        %v4353 = vrot.slane %v4352, 4
        %v4354 = vadd.f32 %v4352, %v4353
        %v4355 = vrot.slane %v4354, 2
        %v4356 = vadd.f32 %v4354, %v4355
        %v4357 = vrot.slane %v4356, 1
        %v4358 = vadd.f32 %v4356, %v4357
        %v4359 = vsel %vm4288, %v4199, 0.0
        %v4360 = vrot.slane %v4359, 4
        %v4361 = vadd.f32 %v4359, %v4360
        %v4362 = vrot.slane %v4361, 2
        %v4363 = vadd.f32 %v4361, %v4362
        %v4364 = vrot.slane %v4363, 1
        %v4365 = vadd.f32 %v4363, %v4364
        %v4366 = vsel %vm4288, %v4200, 0.0
        %v4367 = vrot.slane %v4366, 4
        %v4368 = vadd.f32 %v4366, %v4367
        %v4369 = vrot.slane %v4368, 2
        %v4370 = vadd.f32 %v4368, %v4369
        %v4371 = vrot.slane %v4370, 1
        %v4372 = vadd.f32 %v4370, %v4371
        %v4373 = vsel %vm4288, %v4163, 0.0
        %v4374 = vrot.slane %v4373, 4
        %v4375 = vadd.f32 %v4373, %v4374
        %v4376 = vrot.slane %v4375, 2
        %v4377 = vadd.f32 %v4375, %v4376
        %v4378 = vrot.slane %v4377, 1
        %v4379 = vadd.f32 %v4377, %v4378
        %v4380 = vsel %vm4288, %v4201, 0.0
        %v4381 = vrot.slane %v4380, 4
        %v4382 = vadd.f32 %v4380, %v4381
        %v4383 = vrot.slane %v4382, 2
        %v4384 = vadd.f32 %v4382, %v4383
        %v4385 = vrot.slane %v4384, 1
        %v4386 = vadd.f32 %v4384, %v4385
        %v4387 = vsel %vm4288, %v4202, 0.0
        %v4388 = vrot.slane %v4387, 4
        %v4389 = vadd.f32 %v4387, %v4388
        %v4390 = vrot.slane %v4389, 2
        %v4391 = vadd.f32 %v4389, %v4390
        %v4392 = vrot.slane %v4391, 1
        %v4393 = vadd.f32 %v4391, %v4392
        %v4394 = vsel %vm4288, %v4203, 0.0
        %v4395 = vrot.slane %v4394, 4
        %v4396 = vadd.f32 %v4394, %v4395
        %v4397 = vrot.slane %v4396, 2
        %v4398 = vadd.f32 %v4396, %v4397
        %v4399 = vrot.slane %v4398, 1
        %v4400 = vadd.f32 %v4398, %v4399
        %v4401 = vsel %vm4288, %v4164, 0.0
        %v4402 = vrot.slane %v4401, 4
        %v4403 = vadd.f32 %v4401, %v4402
        %v4404 = vrot.slane %v4403, 2
        %v4405 = vadd.f32 %v4403, %v4404
        %v4406 = vrot.slane %v4405, 1
        %v4407 = vadd.f32 %v4405, %v4406
        %v4408 = vsel %vm4288, %v4204, 0.0
        %v4409 = vrot.slane %v4408, 4
        %v4410 = vadd.f32 %v4408, %v4409
        %v4411 = vrot.slane %v4410, 2
        %v4412 = vadd.f32 %v4410, %v4411
        %v4413 = vrot.slane %v4412, 1
        %v4414 = vadd.f32 %v4412, %v4413
        %v4415 = vsel %vm4288, %v4205, 0.0
        %v4416 = vrot.slane %v4415, 4
        %v4417 = vadd.f32 %v4415, %v4416
        %v4418 = vrot.slane %v4417, 2
        %v4419 = vadd.f32 %v4417, %v4418
        %v4420 = vrot.slane %v4419, 1
        %v4421 = vadd.f32 %v4419, %v4420
        %v4422 = vsel %vm4288, %v4206, 0.0
        %v4423 = vrot.slane %v4422, 4
        %v4424 = vadd.f32 %v4422, %v4423
        %v4425 = vrot.slane %v4424, 2
        %v4426 = vadd.f32 %v4424, %v4425
        %v4427 = vrot.slane %v4426, 1
        %v4428 = vadd.f32 %v4426, %v4427
        %v4429 = vsel %vm4288, %v4165, 0.0
        %v4430 = vrot.slane %v4429, 4
        %v4431 = vadd.f32 %v4429, %v4430
        %v4432 = vrot.slane %v4431, 2
        %v4433 = vadd.f32 %v4431, %v4432
        %v4434 = vrot.slane %v4433, 1
        %v4435 = vadd.f32 %v4433, %v4434
        %v4436 = vsel %vm4288, %v4207, 0.0
        %v4437 = vrot.slane %v4436, 4
        %v4438 = vadd.f32 %v4436, %v4437
        %v4439 = vrot.slane %v4438, 2
        %v4440 = vadd.f32 %v4438, %v4439
        %v4441 = vrot.slane %v4440, 1
        %v4442 = vadd.f32 %v4440, %v4441
        %v4443 = vsel %vm4288, %v4208, 0.0
        %v4444 = vrot.slane %v4443, 4
        %v4445 = vadd.f32 %v4443, %v4444
        %v4446 = vrot.slane %v4445, 2
        %v4447 = vadd.f32 %v4445, %v4446
        %v4448 = vrot.slane %v4447, 1
        %v4449 = vadd.f32 %v4447, %v4448
        %v4450 = vsel %vm4288, %v4209, 0.0
        %v4451 = vrot.slane %v4450, 4
        %v4452 = vadd.f32 %v4450, %v4451
        %v4453 = vrot.slane %v4452, 2
        %v4454 = vadd.f32 %v4452, %v4453
        %v4455 = vrot.slane %v4454, 1
        %v4456 = vadd.f32 %v4454, %v4455
        %v4457 = vsel %vm4288, %v4166, 0.0
        %v4458 = vrot.slane %v4457, 4
        %v4459 = vadd.f32 %v4457, %v4458
        %v4460 = vrot.slane %v4459, 2
        %v4461 = vadd.f32 %v4459, %v4460
        %v4462 = vrot.slane %v4461, 1
        %v4463 = vadd.f32 %v4461, %v4462
        %v4464 = vsel %vm4288, %v4210, 0.0
        %v4465 = vrot.slane %v4464, 4
        %v4466 = vadd.f32 %v4464, %v4465
        %v4467 = vrot.slane %v4466, 2
        %v4468 = vadd.f32 %v4466, %v4467
        %v4469 = vrot.slane %v4468, 1
        %v4470 = vadd.f32 %v4468, %v4469
        %v4471 = vsel %vm4288, %v4211, 0.0
        %v4472 = vrot.slane %v4471, 4
        %v4473 = vadd.f32 %v4471, %v4472
        %v4474 = vrot.slane %v4473, 2
        %v4475 = vadd.f32 %v4473, %v4474
        %v4476 = vrot.slane %v4475, 1
        %v4477 = vadd.f32 %v4475, %v4476
        %v4478 = vsel %vm4288, %v4212, 0.0
        %v4479 = vrot.slane %v4478, 4
        %v4480 = vadd.f32 %v4478, %v4479
        %v4481 = vrot.slane %v4480, 2
        %v4482 = vadd.f32 %v4480, %v4481
        %v4483 = vrot.slane %v4482, 1
        %v4484 = vadd.f32 %v4482, %v4483
        %v4485 = vsel %vm4288, %v4167, 0.0
        %v4486 = vrot.slane %v4485, 4
        %v4487 = vadd.f32 %v4485, %v4486
        %v4488 = vrot.slane %v4487, 2
        %v4489 = vadd.f32 %v4487, %v4488
        %v4490 = vrot.slane %v4489, 1
        %v4491 = vadd.f32 %v4489, %v4490
        %v4492 = vsel %vm4288, %v4213, 0.0
        %v4493 = vrot.slane %v4492, 4
        %v4494 = vadd.f32 %v4492, %v4493
        %v4495 = vrot.slane %v4494, 2
        %v4496 = vadd.f32 %v4494, %v4495
        %v4497 = vrot.slane %v4496, 1
        %v4498 = vadd.f32 %v4496, %v4497
        %v4499 = vsel %vm4288, %v4214, 0.0
        %v4500 = vrot.slane %v4499, 4
        %v4501 = vadd.f32 %v4499, %v4500
        %v4502 = vrot.slane %v4501, 2
        %v4503 = vadd.f32 %v4501, %v4502
        %v4504 = vrot.slane %v4503, 1
        %v4505 = vadd.f32 %v4503, %v4504
        %v4506 = vsel %vm4288, %v4215, 0.0
        %v4507 = vrot.slane %v4506, 4
        %v4508 = vadd.f32 %v4506, %v4507
        %v4509 = vrot.slane %v4508, 2
        %v4510 = vadd.f32 %v4508, %v4509
        %v4511 = vrot.slane %v4510, 1
        %v4512 = vadd.f32 %v4510, %v4511
        %v4513 = vsel %vm4288, %v4168, 0.0
        %v4514 = vrot.slane %v4513, 4
        %v4515 = vadd.f32 %v4513, %v4514
        %v4516 = vrot.slane %v4515, 2
        %v4517 = vadd.f32 %v4515, %v4516
        %v4518 = vrot.slane %v4517, 1
        %v4519 = vadd.f32 %v4517, %v4518
        %v4520 = vsel %vm4288, %v4216, 0.0
        %v4521 = vrot.slane %v4520, 4
        %v4522 = vadd.f32 %v4520, %v4521
        %v4523 = vrot.slane %v4522, 2
        %v4524 = vadd.f32 %v4522, %v4523
        %v4525 = vrot.slane %v4524, 1
        %v4526 = vadd.f32 %v4524, %v4525
        %v4527 = vsel %vm4288, %v4217, 0.0
        %v4528 = vrot.slane %v4527, 4
        %v4529 = vadd.f32 %v4527, %v4528
        %v4530 = vrot.slane %v4529, 2
        %v4531 = vadd.f32 %v4529, %v4530
        %v4532 = vrot.slane %v4531, 1
        %v4533 = vadd.f32 %v4531, %v4532
        %v4534 = vsel %vm4288, %v4218, 0.0
        %v4535 = vrot.slane %v4534, 4
        %v4536 = vadd.f32 %v4534, %v4535
        %v4537 = vrot.slane %v4536, 2
        %v4538 = vadd.f32 %v4536, %v4537
        %v4539 = vrot.slane %v4538, 1
        %v4540 = vadd.f32 %v4538, %v4539
        %v4541 = vsel %vm4288, %v4169, 0.0
        %v4542 = vrot.slane %v4541, 4
        %v4543 = vadd.f32 %v4541, %v4542
        %v4544 = vrot.slane %v4543, 2
        %v4545 = vadd.f32 %v4543, %v4544
        %v4546 = vrot.slane %v4545, 1
        %v4547 = vadd.f32 %v4545, %v4546
        %v4548 = vsel %vm4288, %v4219, 0.0
        %v4549 = vrot.slane %v4548, 4
        %v4550 = vadd.f32 %v4548, %v4549
        %v4551 = vrot.slane %v4550, 2
        %v4552 = vadd.f32 %v4550, %v4551
        %v4553 = vrot.slane %v4552, 1
        %v4554 = vadd.f32 %v4552, %v4553
        %v4555 = vsel %vm4288, %v4220, 0.0
        %v4556 = vrot.slane %v4555, 4
        %v4557 = vadd.f32 %v4555, %v4556
        %v4558 = vrot.slane %v4557, 2
        %v4559 = vadd.f32 %v4557, %v4558
        %v4560 = vrot.slane %v4559, 1
        %v4561 = vadd.f32 %v4559, %v4560
        %v4562 = vsel %vm4288, %v4221, 0.0
        %v4563 = vrot.slane %v4562, 4
        %v4564 = vadd.f32 %v4562, %v4563
        %v4565 = vrot.slane %v4564, 2
        %v4566 = vadd.f32 %v4564, %v4565
        %v4567 = vrot.slane %v4566, 1
        %v4568 = vadd.f32 %v4566, %v4567
        %v4569 = vsel %vm4288, %v4170, 0.0
        %v4570 = vrot.slane %v4569, 4
        %v4571 = vadd.f32 %v4569, %v4570
        %v4572 = vrot.slane %v4571, 2
        %v4573 = vadd.f32 %v4571, %v4572
        %v4574 = vrot.slane %v4573, 1
        %v4575 = vadd.f32 %v4573, %v4574
        %v4576 = vsel %vm4288, %v4222, 0.0
        %v4577 = vrot.slane %v4576, 4
        %v4578 = vadd.f32 %v4576, %v4577
        %v4579 = vrot.slane %v4578, 2
        %v4580 = vadd.f32 %v4578, %v4579
        %v4581 = vrot.slane %v4580, 1
        %v4582 = vadd.f32 %v4580, %v4581
        %v4583 = vsel %vm4288, %v4223, 0.0
        %v4584 = vrot.slane %v4583, 4
        %v4585 = vadd.f32 %v4583, %v4584
        %v4586 = vrot.slane %v4585, 2
        %v4587 = vadd.f32 %v4585, %v4586
        %v4588 = vrot.slane %v4587, 1
        %v4589 = vadd.f32 %v4587, %v4588
        %v4590 = vsel %vm4288, %v4224, 0.0
        %v4591 = vrot.slane %v4590, 4
        %v4592 = vadd.f32 %v4590, %v4591
        %v4593 = vrot.slane %v4592, 2
        %v4594 = vadd.f32 %v4592, %v4593
        %v4595 = vrot.slane %v4594, 1
        %v4596 = vadd.f32 %v4594, %v4595
        %v4597 = vsel %vm4288, %v4171, 0.0
        %v4598 = vrot.slane %v4597, 4
        %v4599 = vadd.f32 %v4597, %v4598
        %v4600 = vrot.slane %v4599, 2
        %v4601 = vadd.f32 %v4599, %v4600
        %v4602 = vrot.slane %v4601, 1
        %v4603 = vadd.f32 %v4601, %v4602
        %v4604 = vsel %vm4288, %v4225, 0.0
        %v4605 = vrot.slane %v4604, 4
        %v4606 = vadd.f32 %v4604, %v4605
        %v4607 = vrot.slane %v4606, 2
        %v4608 = vadd.f32 %v4606, %v4607
        %v4609 = vrot.slane %v4608, 1
        %v4610 = vadd.f32 %v4608, %v4609
        %v4611 = vsel %vm4288, %v4226, 0.0
        %v4612 = vrot.slane %v4611, 4
        %v4613 = vadd.f32 %v4611, %v4612
        %v4614 = vrot.slane %v4613, 2
        %v4615 = vadd.f32 %v4613, %v4614
        %v4616 = vrot.slane %v4615, 1
        %v4617 = vadd.f32 %v4615, %v4616
        %v4618 = vsel %vm4288, %v4227, 0.0
        %v4619 = vrot.slane %v4618, 4
        %v4620 = vadd.f32 %v4618, %v4619
        %v4621 = vrot.slane %v4620, 2
        %v4622 = vadd.f32 %v4620, %v4621
        %v4623 = vrot.slane %v4622, 1
        %v4624 = vadd.f32 %v4622, %v4623
        %v4625 = vsel %vm4288, %v4172, 0.0
        %v4626 = vrot.slane %v4625, 4
        %v4627 = vadd.f32 %v4625, %v4626
        %v4628 = vrot.slane %v4627, 2
        %v4629 = vadd.f32 %v4627, %v4628
        %v4630 = vrot.slane %v4629, 1
        %v4631 = vadd.f32 %v4629, %v4630
        %v4632 = vsel %vm4288, %v4228, 0.0
        %v4633 = vrot.slane %v4632, 4
        %v4634 = vadd.f32 %v4632, %v4633
        %v4635 = vrot.slane %v4634, 2
        %v4636 = vadd.f32 %v4634, %v4635
        %v4637 = vrot.slane %v4636, 1
        %v4638 = vadd.f32 %v4636, %v4637
        %v4639 = vsel %vm4288, %v4229, 0.0
        %v4640 = vrot.slane %v4639, 4
        %v4641 = vadd.f32 %v4639, %v4640
        %v4642 = vrot.slane %v4641, 2
        %v4643 = vadd.f32 %v4641, %v4642
        %v4644 = vrot.slane %v4643, 1
        %v4645 = vadd.f32 %v4643, %v4644
        %v4646 = vsel %vm4288, %v4230, 0.0
        %v4647 = vrot.slane %v4646, 4
        %v4648 = vadd.f32 %v4646, %v4647
        %v4649 = vrot.slane %v4648, 2
        %v4650 = vadd.f32 %v4648, %v4649
        %v4651 = vrot.slane %v4650, 1
        %v4652 = vadd.f32 %v4650, %v4651
        %v4653 = vsel %vm4288, %v4173, 0.0
        %v4654 = vrot.slane %v4653, 4
        %v4655 = vadd.f32 %v4653, %v4654
        %v4656 = vrot.slane %v4655, 2
        %v4657 = vadd.f32 %v4655, %v4656
        %v4658 = vrot.slane %v4657, 1
        %v4659 = vadd.f32 %v4657, %v4658
        %v4660 = vsel %vm4288, %v4231, 0.0
        %v4661 = vrot.slane %v4660, 4
        %v4662 = vadd.f32 %v4660, %v4661
        %v4663 = vrot.slane %v4662, 2
        %v4664 = vadd.f32 %v4662, %v4663
        %v4665 = vrot.slane %v4664, 1
        %v4666 = vadd.f32 %v4664, %v4665
        %v4667 = vsel %vm4288, %v4232, 0.0
        %v4668 = vrot.slane %v4667, 4
        %v4669 = vadd.f32 %v4667, %v4668
        %v4670 = vrot.slane %v4669, 2
        %v4671 = vadd.f32 %v4669, %v4670
        %v4672 = vrot.slane %v4671, 1
        %v4673 = vadd.f32 %v4671, %v4672
        %v4674 = vsel %vm4288, %v4233, 0.0
        %v4675 = vrot.slane %v4674, 4
        %v4676 = vadd.f32 %v4674, %v4675
        %v4677 = vrot.slane %v4676, 2
        %v4678 = vadd.f32 %v4676, %v4677
        %v4679 = vrot.slane %v4678, 1
        %v4680 = vadd.f32 %v4678, %v4679
        %v4681 = vsel %vm4288, %v4174, 0.0
        %v4682 = vrot.slane %v4681, 4
        %v4683 = vadd.f32 %v4681, %v4682
        %v4684 = vrot.slane %v4683, 2
        %v4685 = vadd.f32 %v4683, %v4684
        %v4686 = vrot.slane %v4685, 1
        %v4687 = vadd.f32 %v4685, %v4686
        %v4688 = vsel %vm4288, %v4234, 0.0
        %v4689 = vrot.slane %v4688, 4
        %v4690 = vadd.f32 %v4688, %v4689
        %v4691 = vrot.slane %v4690, 2
        %v4692 = vadd.f32 %v4690, %v4691
        %v4693 = vrot.slane %v4692, 1
        %v4694 = vadd.f32 %v4692, %v4693
        %v4695 = vsel %vm4288, %v4235, 0.0
        %v4696 = vrot.slane %v4695, 4
        %v4697 = vadd.f32 %v4695, %v4696
        %v4698 = vrot.slane %v4697, 2
        %v4699 = vadd.f32 %v4697, %v4698
        %v4700 = vrot.slane %v4699, 1
        %v4701 = vadd.f32 %v4699, %v4700
        %v4702 = vsel %vm4288, %v4236, 0.0
        %v4703 = vrot.slane %v4702, 4
        %v4704 = vadd.f32 %v4702, %v4703
        %v4705 = vrot.slane %v4704, 2
        %v4706 = vadd.f32 %v4704, %v4705
        %v4707 = vrot.slane %v4706, 1
        %v4708 = vadd.f32 %v4706, %v4707
        %v4709 = vsel %vm4288, %v4175, 0.0
        %v4710 = vrot.slane %v4709, 4
        %v4711 = vadd.f32 %v4709, %v4710
        %v4712 = vrot.slane %v4711, 2
        %v4713 = vadd.f32 %v4711, %v4712
        %v4714 = vrot.slane %v4713, 1
        %v4715 = vadd.f32 %v4713, %v4714
        %v4716 = vsel %vm4288, %v4237, 0.0
        %v4717 = vrot.slane %v4716, 4
        %v4718 = vadd.f32 %v4716, %v4717
        %v4719 = vrot.slane %v4718, 2
        %v4720 = vadd.f32 %v4718, %v4719
        %v4721 = vrot.slane %v4720, 1
        %v4722 = vadd.f32 %v4720, %v4721
        %v4723 = vsel %vm4288, %v4238, 0.0
        %v4724 = vrot.slane %v4723, 4
        %v4725 = vadd.f32 %v4723, %v4724
        %v4726 = vrot.slane %v4725, 2
        %v4727 = vadd.f32 %v4725, %v4726
        %v4728 = vrot.slane %v4727, 1
        %v4729 = vadd.f32 %v4727, %v4728
        %v4730 = vsel %vm4288, %v4239, 0.0
        %v4731 = vrot.slane %v4730, 4
        %v4732 = vadd.f32 %v4730, %v4731
        %v4733 = vrot.slane %v4732, 2
        %v4734 = vadd.f32 %v4732, %v4733
        %v4735 = vrot.slane %v4734, 1
        %v4736 = vadd.f32 %v4734, %v4735
        %v4737 = vpack.c.bf16 %v4295, %v4295
        %v4738 = vpack.c.bf16 %v4302, %v4302
        %v4739 = vpack.c.bf16 %v4309, %v4309
        %v4740 = vpack.c.bf16 %v4316, %v4316
        %v4741 = vpack.c.bf16 %v4323, %v4323
        %v4742 = vpack.c.bf16 %v4330, %v4330
        %v4743 = vpack.c.bf16 %v4337, %v4337
        %v4744 = vpack.c.bf16 %v4344, %v4344
        %v4745 = vpack.c.bf16 %v4351, %v4351
        %v4746 = vpack.c.bf16 %v4358, %v4358
        %v4747 = vpack.c.bf16 %v4365, %v4365
        %v4748 = vpack.c.bf16 %v4372, %v4372
        %v4749 = vpack.c.bf16 %v4379, %v4379
        %v4750 = vpack.c.bf16 %v4386, %v4386
        %v4751 = vpack.c.bf16 %v4393, %v4393
        %v4752 = vpack.c.bf16 %v4400, %v4400
        %v4753 = vpack.c.bf16 %v4407, %v4407
        %v4754 = vpack.c.bf16 %v4414, %v4414
        %v4755 = vpack.c.bf16 %v4421, %v4421
        %v4756 = vpack.c.bf16 %v4428, %v4428
        %v4757 = vpack.c.bf16 %v4435, %v4435
        %v4758 = vpack.c.bf16 %v4442, %v4442
        %v4759 = vpack.c.bf16 %v4449, %v4449
        %v4760 = vpack.c.bf16 %v4456, %v4456
        %v4761 = vpack.c.bf16 %v4463, %v4463
        %v4762 = vpack.c.bf16 %v4470, %v4470
        %v4763 = vpack.c.bf16 %v4477, %v4477
        %v4764 = vpack.c.bf16 %v4484, %v4484
        %v4765 = vpack.c.bf16 %v4491, %v4491
        %v4766 = vpack.c.bf16 %v4498, %v4498
        %v4767 = vpack.c.bf16 %v4505, %v4505
        %v4768 = vpack.c.bf16 %v4512, %v4512
        %v4769 = vpack.c.bf16 %v4519, %v4519
        %v4770 = vpack.c.bf16 %v4526, %v4526
        %v4771 = vpack.c.bf16 %v4533, %v4533
        %v4772 = vpack.c.bf16 %v4540, %v4540
        %v4773 = vpack.c.bf16 %v4547, %v4547
        %v4774 = vpack.c.bf16 %v4554, %v4554
        %v4775 = vpack.c.bf16 %v4561, %v4561
        %v4776 = vpack.c.bf16 %v4568, %v4568
        %v4777 = vpack.c.bf16 %v4575, %v4575
        %v4778 = vpack.c.bf16 %v4582, %v4582
        %v4779 = vpack.c.bf16 %v4589, %v4589
        %v4780 = vpack.c.bf16 %v4596, %v4596
        %v4781 = vpack.c.bf16 %v4603, %v4603
        %v4782 = vpack.c.bf16 %v4610, %v4610
        %v4783 = vpack.c.bf16 %v4617, %v4617
        %v4784 = vpack.c.bf16 %v4624, %v4624
        %v4785 = vpack.c.bf16 %v4631, %v4631
        %v4786 = vpack.c.bf16 %v4638, %v4638
        %v4787 = vpack.c.bf16 %v4645, %v4645
        %v4788 = vpack.c.bf16 %v4652, %v4652
        %v4789 = vpack.c.bf16 %v4659, %v4659
        %v4790 = vpack.c.bf16 %v4666, %v4666
        %v4791 = vpack.c.bf16 %v4673, %v4673
        %v4792 = vpack.c.bf16 %v4680, %v4680
        %v4793 = vpack.c.bf16 %v4687, %v4687
        %v4794 = vpack.c.bf16 %v4694, %v4694
        %v4795 = vpack.c.bf16 %v4701, %v4701
        %v4796 = vpack.c.bf16 %v4708, %v4708
        %v4797 = vpack.c.bf16 %v4715, %v4715
        %v4798 = vpack.c.bf16 %v4722, %v4722
        %v4799 = vpack.c.bf16 %v4729, %v4729
        %v4800 = vpack.c.bf16 %v4736, %v4736
        %v4801 = vld [vmem:[#allocation8] sm:$0xf]
        %v4802 = vld [vmem:[#allocation8 + $0x4] sm:$0xf]
        %v4803 = vld [vmem:[#allocation8 + $0x8] sm:$0xf]
        %v4804 = vld [vmem:[#allocation8 + $0xc] sm:$0xf]
        %v4805 = vld [vmem:[#allocation8 + $0x10] sm:$0xf]
        %v4806 = vld [vmem:[#allocation8 + $0x14] sm:$0xf]
        %v4807 = vld [vmem:[#allocation8 + $0x18] sm:$0xf]
        %v4808 = vld [vmem:[#allocation8 + $0x1c] sm:$0xf]
        %v4809 = vld [vmem:[#allocation8 + $0x20] sm:$0xf]
        %v4810 = vld [vmem:[#allocation8 + $0x24] sm:$0xf]
        %v4811 = vld [vmem:[#allocation8 + $0x28] sm:$0xf]
        %v4812 = vld [vmem:[#allocation8 + $0x2c] sm:$0xf]
        %v4813 = vld [vmem:[#allocation8 + $0x30] sm:$0xf]
        %v4814 = vld [vmem:[#allocation8 + $0x34] sm:$0xf]
        %v4815 = vld [vmem:[#allocation8 + $0x38] sm:$0xf]
        %v4816 = vld [vmem:[#allocation8 + $0x3c] sm:$0xf]
        %v4817 = vld [vmem:[%s6] sm:$0x1]
        %v4819 = vperm.slane %v4817, 0
        %v4885 = vunpack.c.l.b16 %v4737
        %v4886 = vunpack.c.l.b16 %v4738
        %v4887 = vunpack.c.l.b16 %v4739
        %v4888 = vunpack.c.l.b16 %v4740
        %v4889 = vunpack.c.l.b16 %v4741
        %v4890 = vunpack.c.l.b16 %v4742
        %v4891 = vunpack.c.l.b16 %v4743
        %v4892 = vunpack.c.l.b16 %v4744
        %v4893 = vunpack.c.l.b16 %v4745
        %v4894 = vunpack.c.l.b16 %v4746
        %v4895 = vunpack.c.l.b16 %v4747
        %v4896 = vunpack.c.l.b16 %v4748
        %v4897 = vunpack.c.l.b16 %v4749
        %v4898 = vunpack.c.l.b16 %v4750
        %v4899 = vunpack.c.l.b16 %v4751
        %v4900 = vunpack.c.l.b16 %v4752
        %v4901 = vunpack.c.l.b16 %v4753
        %v4902 = vunpack.c.l.b16 %v4754
        %v4903 = vunpack.c.l.b16 %v4755
        %v4904 = vunpack.c.l.b16 %v4756
        %v4905 = vunpack.c.l.b16 %v4757
        %v4906 = vunpack.c.l.b16 %v4758
        %v4907 = vunpack.c.l.b16 %v4759
        %v4908 = vunpack.c.l.b16 %v4760
        %v4909 = vunpack.c.l.b16 %v4761
        %v4910 = vunpack.c.l.b16 %v4762
        %v4911 = vunpack.c.l.b16 %v4763
        %v4912 = vunpack.c.l.b16 %v4764
        %v4913 = vunpack.c.l.b16 %v4765
        %v4914 = vunpack.c.l.b16 %v4766
        %v4915 = vunpack.c.l.b16 %v4767
        %v4916 = vunpack.c.l.b16 %v4768
        %v4917 = vunpack.c.l.b16 %v4769
        %v4918 = vunpack.c.l.b16 %v4770
        %v4919 = vunpack.c.l.b16 %v4771
        %v4920 = vunpack.c.l.b16 %v4772
        %v4921 = vunpack.c.l.b16 %v4773
        %v4922 = vunpack.c.l.b16 %v4774
        %v4923 = vunpack.c.l.b16 %v4775
        %v4924 = vunpack.c.l.b16 %v4776
        %v4925 = vunpack.c.l.b16 %v4777
        %v4926 = vunpack.c.l.b16 %v4778
        %v4927 = vunpack.c.l.b16 %v4779
        %v4928 = vunpack.c.l.b16 %v4780
        %v4929 = vunpack.c.l.b16 %v4781
        %v4930 = vunpack.c.l.b16 %v4782
        %v4931 = vunpack.c.l.b16 %v4783
        %v4932 = vunpack.c.l.b16 %v4784
        %v4933 = vunpack.c.l.b16 %v4785
        %v4934 = vunpack.c.l.b16 %v4786
        %v4935 = vunpack.c.l.b16 %v4787
        %v4936 = vunpack.c.l.b16 %v4788
        %v4937 = vunpack.c.l.b16 %v4789
        %v4938 = vunpack.c.l.b16 %v4790
        %v4939 = vunpack.c.l.b16 %v4791
        %v4940 = vunpack.c.l.b16 %v4792
        %v4941 = vunpack.c.l.b16 %v4793
        %v4942 = vunpack.c.l.b16 %v4794
        %v4943 = vunpack.c.l.b16 %v4795
        %v4944 = vunpack.c.l.b16 %v4796
        %v4945 = vunpack.c.l.b16 %v4797
        %v4946 = vunpack.c.l.b16 %v4798
        %v4947 = vunpack.c.l.b16 %v4799
        %v4948 = vunpack.c.l.b16 %v4800
        %vm4949 = vcmask 1041409
        %v4950 = vsel %vm4949, %v4886, %v4885
        %vm4951 = vcmask 1042434
        %v4952 = vsel %vm4951, %v4887, %v4950
        %vm4953 = vcmask 1043459
        %v4954 = vsel %vm4953, %v4888, %v4952
        %vm4955 = vcmask 1044484
        %v4956 = vsel %vm4955, %v4889, %v4954
        %vm4957 = vcmask 1045509
        %v4958 = vsel %vm4957, %v4890, %v4956
        %vm4959 = vcmask 1046534
        %v4960 = vsel %vm4959, %v4891, %v4958
        %vm4961 = vcmask 1047559
        %v4962 = vsel %vm4961, %v4892, %v4960
        %v4963 = vsel %vm4949, %v4894, %v4893
        %v4964 = vsel %vm4951, %v4895, %v4963
        %v4965 = vsel %vm4953, %v4896, %v4964
        %v4966 = vsel %vm4955, %v4897, %v4965
        %v4967 = vsel %vm4957, %v4898, %v4966
        %v4968 = vsel %vm4959, %v4899, %v4967
        %v4969 = vsel %vm4961, %v4900, %v4968
        %v4970 = vsel %vm4949, %v4902, %v4901
        %v4971 = vsel %vm4951, %v4903, %v4970
        %v4972 = vsel %vm4953, %v4904, %v4971
        %v4973 = vsel %vm4955, %v4905, %v4972
        %v4974 = vsel %vm4957, %v4906, %v4973
        %v4975 = vsel %vm4959, %v4907, %v4974
        %v4976 = vsel %vm4961, %v4908, %v4975
        %v4977 = vsel %vm4949, %v4910, %v4909
        %v4978 = vsel %vm4951, %v4911, %v4977
        %v4979 = vsel %vm4953, %v4912, %v4978
        %v4980 = vsel %vm4955, %v4913, %v4979
        %v4981 = vsel %vm4957, %v4914, %v4980
        %v4982 = vsel %vm4959, %v4915, %v4981
        %v4983 = vsel %vm4961, %v4916, %v4982
        %v4984 = vsel %vm4949, %v4918, %v4917
        %v4985 = vsel %vm4951, %v4919, %v4984
        %v4986 = vsel %vm4953, %v4920, %v4985
        %v4987 = vsel %vm4955, %v4921, %v4986
        %v4988 = vsel %vm4957, %v4922, %v4987
        %v4989 = vsel %vm4959, %v4923, %v4988
        %v4990 = vsel %vm4961, %v4924, %v4989
        %v4991 = vsel %vm4949, %v4926, %v4925
        %v4992 = vsel %vm4951, %v4927, %v4991
        %v4993 = vsel %vm4953, %v4928, %v4992
        %v4994 = vsel %vm4955, %v4929, %v4993
        %v4995 = vsel %vm4957, %v4930, %v4994
        %v4996 = vsel %vm4959, %v4931, %v4995
        %v4997 = vsel %vm4961, %v4932, %v4996
        %v4998 = vsel %vm4949, %v4934, %v4933
        %v4999 = vsel %vm4951, %v4935, %v4998
        %v5000 = vsel %vm4953, %v4936, %v4999
        %v5001 = vsel %vm4955, %v4937, %v5000
        %v5002 = vsel %vm4957, %v4938, %v5001
        %v5003 = vsel %vm4959, %v4939, %v5002
        %v5004 = vsel %vm4961, %v4940, %v5003
        %v5005 = vsel %vm4949, %v4942, %v4941
        %v5006 = vsel %vm4951, %v4943, %v5005
        %v5007 = vsel %vm4953, %v4944, %v5006
        %v5008 = vsel %vm4955, %v4945, %v5007
        %v5009 = vsel %vm4957, %v4946, %v5008
        %v5010 = vsel %vm4959, %v4947, %v5009
        %v5011 = vsel %vm4961, %v4948, %v5010
        %v5012 = vpack.c.b16 %v4969, %v4962
        %v5013 = vpack.c.b16 %v4983, %v4976
        %v5014 = vpack.c.b16 %v4997, %v4990
        %v5015 = vpack.c.b16 %v5011, %v5004
        %v5036 = vunpack.c.l.b16 %v4801
        %v5037 = vunpack.c.l.b16 %v4802
        %v5038 = vunpack.c.l.b16 %v4803
        %v5039 = vunpack.c.l.b16 %v4804
        %v5040 = vunpack.c.l.b16 %v4805
        %v5041 = vunpack.c.l.b16 %v4806
        %v5042 = vunpack.c.l.b16 %v4807
        %v5043 = vunpack.c.l.b16 %v4808
        %v5044 = vunpack.c.l.b16 %v4809
        %v5045 = vunpack.c.l.b16 %v4810
        %v5046 = vunpack.c.l.b16 %v4811
        %v5047 = vunpack.c.l.b16 %v4812
        %v5048 = vunpack.c.l.b16 %v4813
        %v5049 = vunpack.c.l.b16 %v4814
        %v5050 = vunpack.c.l.b16 %v4815
        %v5051 = vunpack.c.l.b16 %v4816
        %v5052 = vpack.c.b16 %v5037, %v5036
        %v5053 = vpack.c.b16 %v5039, %v5038
        %v5054 = vpack.c.b16 %v5041, %v5040
        %v5055 = vpack.c.b16 %v5043, %v5042
        %v5056 = vpack.c.b16 %v5045, %v5044
        %v5057 = vpack.c.b16 %v5047, %v5046
        %v5058 = vpack.c.b16 %v5049, %v5048
        %v5059 = vpack.c.b16 %v5051, %v5050
        %5068 = vmatpush.bf16.msra.mxu0 %v5059
        %5069 = vmatpush.bf16.msra.mxu0 %v5058
        %5070 = vmatpush.bf16.msra.mxu0 %v5057
        %5071 = vmatpush.bf16.msra.mxu0 %v5056
        %5072 = vmatpush.bf16.msra.mxu0 %v5055
        %5073 = vmatpush.bf16.msra.mxu0 %v5054
        %5074 = vmatpush.bf16.msra.mxu0 %v5053
        %5075 = vmatpush.bf16.msra.mxu0 %v5052
        %5076 = vmatmul.bf16.gmra.mxu0 %v5012
        %v5077 = vpop.f32.mrf.mxu0
        %v5078 = vadd.f32 %v4819, %v5077
        %v5079 = vpop.f32.mrf.mxu0
        %v5080 = vadd.f32 %v4819, %v5079
        %5081 = vmatmul.bf16.gmra.mxu0 %v5013
        %v5082 = vpop.f32.mrf.mxu0
        %v5083 = vadd.f32 %v4819, %v5082
        %v5084 = vpop.f32.mrf.mxu0
        %v5085 = vadd.f32 %v4819, %v5084
        %5086 = vmatmul.bf16.gmra.mxu0 %v5014
        %v5087 = vpop.f32.mrf.mxu0
        %v5088 = vadd.f32 %v4819, %v5087
        %v5089 = vpop.f32.mrf.mxu0
        %v5090 = vadd.f32 %v4819, %v5089
        %5091 = vmatmul.bf16.gmra.mxu0 %v5015
        %v5092 = vpop.f32.mrf.mxu0
        %v5093 = vadd.f32 %v4819, %v5092
        %v5094 = vpop.f32.mrf.mxu0
        %v5095 = vadd.f32 %v4819, %v5094
        %5096 = vdwg.mxu0
        %v5097 = vunpack.c.l.bf16 %v419
        %v5098 = vunpack.c.l.bf16 %v420
        %v5099 = vunpack.c.l.bf16 %v421
        %v5100 = vunpack.c.l.bf16 %v422
        %v5101 = vunpack.c.l.bf16 %v423
        %v5102 = vunpack.c.l.bf16 %v424
        %v5103 = vunpack.c.l.bf16 %v425
        %v5104 = vunpack.c.l.bf16 %v426
        %v5105 = vunpack.c.l.bf16 %v427
        %v5106 = vunpack.c.l.bf16 %v428
        %v5107 = vunpack.c.l.bf16 %v429
        %v5108 = vunpack.c.l.bf16 %v430
        %v5109 = vunpack.c.l.bf16 %v431
        %v5110 = vunpack.c.l.bf16 %v432
        %v5111 = vunpack.c.l.bf16 %v433
        %v5112 = vunpack.c.l.bf16 %v434
        %v5113 = vunpack.c.l.bf16 %v435
        %v5114 = vunpack.c.l.bf16 %v436
        %v5115 = vunpack.c.l.bf16 %v437
        %v5116 = vunpack.c.l.bf16 %v438
        %v5117 = vunpack.c.l.bf16 %v439
        %v5118 = vunpack.c.l.bf16 %v440
        %v5119 = vunpack.c.l.bf16 %v441
        %v5120 = vunpack.c.l.bf16 %v442
        %v5121 = vunpack.c.l.bf16 %v443
        %v5122 = vunpack.c.l.bf16 %v444
        %v5123 = vunpack.c.l.bf16 %v445
        %v5124 = vunpack.c.l.bf16 %v446
        %v5125 = vunpack.c.l.bf16 %v447
        %v5126 = vunpack.c.l.bf16 %v448
        %v5127 = vunpack.c.l.bf16 %v449
        %v5128 = vunpack.c.l.bf16 %v450
        %v5129 = vadd.f32 %v5097, %v5099
        %v5130 = vadd.f32 %v5098, %v5100
        %v5131 = vadd.f32 %v5101, %v5103
        %v5132 = vadd.f32 %v5102, %v5104
        %v5133 = vadd.f32 %v5105, %v5107
        %v5134 = vadd.f32 %v5106, %v5108
        %v5135 = vadd.f32 %v5109, %v5111
        %v5136 = vadd.f32 %v5110, %v5112
        %v5137 = vadd.f32 %v5113, %v5115
        %v5138 = vadd.f32 %v5114, %v5116
        %v5139 = vadd.f32 %v5117, %v5119
        %v5140 = vadd.f32 %v5118, %v5120
        %v5141 = vadd.f32 %v5121, %v5123
        %v5142 = vadd.f32 %v5122, %v5124
        %v5143 = vadd.f32 %v5125, %v5127
        %v5144 = vadd.f32 %v5126, %v5128
        %v5161 = vrot.slane %v5129, 2
        %v5162 = vrot.slane %v5129, 4
        %v5163 = vrot.slane %v5129, 6
        %v5164 = vrot.slane %v5130, 2
        %v5165 = vrot.slane %v5130, 4
        %v5166 = vrot.slane %v5130, 6
        %v5167 = vrot.slane %v5131, 2
        %v5168 = vrot.slane %v5131, 4
        %v5169 = vrot.slane %v5131, 6
        %v5170 = vrot.slane %v5132, 2
        %v5171 = vrot.slane %v5132, 4
        %v5172 = vrot.slane %v5132, 6
        %v5173 = vrot.slane %v5133, 2
        %v5174 = vrot.slane %v5133, 4
        %v5175 = vrot.slane %v5133, 6
        %v5176 = vrot.slane %v5134, 2
        %v5177 = vrot.slane %v5134, 4
        %v5178 = vrot.slane %v5134, 6
        %v5179 = vrot.slane %v5135, 2
        %v5180 = vrot.slane %v5135, 4
        %v5181 = vrot.slane %v5135, 6
        %v5182 = vrot.slane %v5136, 2
        %v5183 = vrot.slane %v5136, 4
        %v5184 = vrot.slane %v5136, 6
        %v5185 = vrot.slane %v5137, 2
        %v5186 = vrot.slane %v5137, 4
        %v5187 = vrot.slane %v5137, 6
        %v5188 = vrot.slane %v5138, 2
        %v5189 = vrot.slane %v5138, 4
        %v5190 = vrot.slane %v5138, 6
        %v5191 = vrot.slane %v5139, 2
        %v5192 = vrot.slane %v5139, 4
        %v5193 = vrot.slane %v5139, 6
        %v5194 = vrot.slane %v5140, 2
        %v5195 = vrot.slane %v5140, 4
        %v5196 = vrot.slane %v5140, 6
        %v5197 = vrot.slane %v5141, 2
        %v5198 = vrot.slane %v5141, 4
        %v5199 = vrot.slane %v5141, 6
        %v5200 = vrot.slane %v5142, 2
        %v5201 = vrot.slane %v5142, 4
        %v5202 = vrot.slane %v5142, 6
        %v5203 = vrot.slane %v5143, 2
        %v5204 = vrot.slane %v5143, 4
        %v5205 = vrot.slane %v5143, 6
        %v5206 = vrot.slane %v5144, 2
        %v5207 = vrot.slane %v5144, 4
        %v5208 = vrot.slane %v5144, 6
        %v5257 = vsel %vm4288, %v5129, 0.0
        %v5258 = vrot.slane %v5257, 4
        %v5259 = vadd.f32 %v5257, %v5258
        %v5260 = vrot.slane %v5259, 2
        %v5261 = vadd.f32 %v5259, %v5260
        %v5262 = vrot.slane %v5261, 1
        %v5263 = vadd.f32 %v5261, %v5262
        %v5264 = vsel %vm4288, %v5161, 0.0
        %v5265 = vrot.slane %v5264, 4
        %v5266 = vadd.f32 %v5264, %v5265
        %v5267 = vrot.slane %v5266, 2
        %v5268 = vadd.f32 %v5266, %v5267
        %v5269 = vrot.slane %v5268, 1
        %v5270 = vadd.f32 %v5268, %v5269
        %v5271 = vsel %vm4288, %v5162, 0.0
        %v5272 = vrot.slane %v5271, 4
        %v5273 = vadd.f32 %v5271, %v5272
        %v5274 = vrot.slane %v5273, 2
        %v5275 = vadd.f32 %v5273, %v5274
        %v5276 = vrot.slane %v5275, 1
        %v5277 = vadd.f32 %v5275, %v5276
        %v5278 = vsel %vm4288, %v5163, 0.0
        %v5279 = vrot.slane %v5278, 4
        %v5280 = vadd.f32 %v5278, %v5279
        %v5281 = vrot.slane %v5280, 2
        %v5282 = vadd.f32 %v5280, %v5281
        %v5283 = vrot.slane %v5282, 1
        %v5284 = vadd.f32 %v5282, %v5283
        %v5285 = vsel %vm4288, %v5130, 0.0
        %v5286 = vrot.slane %v5285, 4
        %v5287 = vadd.f32 %v5285, %v5286
        %v5288 = vrot.slane %v5287, 2
        %v5289 = vadd.f32 %v5287, %v5288
        %v5290 = vrot.slane %v5289, 1
        %v5291 = vadd.f32 %v5289, %v5290
        %v5292 = vsel %vm4288, %v5164, 0.0
        %v5293 = vrot.slane %v5292, 4
        %v5294 = vadd.f32 %v5292, %v5293
        %v5295 = vrot.slane %v5294, 2
        %v5296 = vadd.f32 %v5294, %v5295
        %v5297 = vrot.slane %v5296, 1
        %v5298 = vadd.f32 %v5296, %v5297
        %v5299 = vsel %vm4288, %v5165, 0.0
        %v5300 = vrot.slane %v5299, 4
        %v5301 = vadd.f32 %v5299, %v5300
        %v5302 = vrot.slane %v5301, 2
        %v5303 = vadd.f32 %v5301, %v5302
        %v5304 = vrot.slane %v5303, 1
        %v5305 = vadd.f32 %v5303, %v5304
        %v5306 = vsel %vm4288, %v5166, 0.0
        %v5307 = vrot.slane %v5306, 4
        %v5308 = vadd.f32 %v5306, %v5307
        %v5309 = vrot.slane %v5308, 2
        %v5310 = vadd.f32 %v5308, %v5309
        %v5311 = vrot.slane %v5310, 1
        %v5312 = vadd.f32 %v5310, %v5311
        %v5313 = vsel %vm4288, %v5131, 0.0
        %v5314 = vrot.slane %v5313, 4
        %v5315 = vadd.f32 %v5313, %v5314
        %v5316 = vrot.slane %v5315, 2
        %v5317 = vadd.f32 %v5315, %v5316
        %v5318 = vrot.slane %v5317, 1
        %v5319 = vadd.f32 %v5317, %v5318
        %v5320 = vsel %vm4288, %v5167, 0.0
        %v5321 = vrot.slane %v5320, 4
        %v5322 = vadd.f32 %v5320, %v5321
        %v5323 = vrot.slane %v5322, 2
        %v5324 = vadd.f32 %v5322, %v5323
        %v5325 = vrot.slane %v5324, 1
        %v5326 = vadd.f32 %v5324, %v5325
        %v5327 = vsel %vm4288, %v5168, 0.0
        %v5328 = vrot.slane %v5327, 4
        %v5329 = vadd.f32 %v5327, %v5328
        %v5330 = vrot.slane %v5329, 2
        %v5331 = vadd.f32 %v5329, %v5330
        %v5332 = vrot.slane %v5331, 1
        %v5333 = vadd.f32 %v5331, %v5332
        %v5334 = vsel %vm4288, %v5169, 0.0
        %v5335 = vrot.slane %v5334, 4
        %v5336 = vadd.f32 %v5334, %v5335
        %v5337 = vrot.slane %v5336, 2
        %v5338 = vadd.f32 %v5336, %v5337
        %v5339 = vrot.slane %v5338, 1
        %v5340 = vadd.f32 %v5338, %v5339
        %v5341 = vsel %vm4288, %v5132, 0.0
        %v5342 = vrot.slane %v5341, 4
        %v5343 = vadd.f32 %v5341, %v5342
        %v5344 = vrot.slane %v5343, 2
        %v5345 = vadd.f32 %v5343, %v5344
        %v5346 = vrot.slane %v5345, 1
        %v5347 = vadd.f32 %v5345, %v5346
        %v5348 = vsel %vm4288, %v5170, 0.0
        %v5349 = vrot.slane %v5348, 4
        %v5350 = vadd.f32 %v5348, %v5349
        %v5351 = vrot.slane %v5350, 2
        %v5352 = vadd.f32 %v5350, %v5351
        %v5353 = vrot.slane %v5352, 1
        %v5354 = vadd.f32 %v5352, %v5353
        %v5355 = vsel %vm4288, %v5171, 0.0
        %v5356 = vrot.slane %v5355, 4
        %v5357 = vadd.f32 %v5355, %v5356
        %v5358 = vrot.slane %v5357, 2
        %v5359 = vadd.f32 %v5357, %v5358
        %v5360 = vrot.slane %v5359, 1
        %v5361 = vadd.f32 %v5359, %v5360
        %v5362 = vsel %vm4288, %v5172, 0.0
        %v5363 = vrot.slane %v5362, 4
        %v5364 = vadd.f32 %v5362, %v5363
        %v5365 = vrot.slane %v5364, 2
        %v5366 = vadd.f32 %v5364, %v5365
        %v5367 = vrot.slane %v5366, 1
        %v5368 = vadd.f32 %v5366, %v5367
        %v5369 = vsel %vm4288, %v5133, 0.0
        %v5370 = vrot.slane %v5369, 4
        %v5371 = vadd.f32 %v5369, %v5370
        %v5372 = vrot.slane %v5371, 2
        %v5373 = vadd.f32 %v5371, %v5372
        %v5374 = vrot.slane %v5373, 1
        %v5375 = vadd.f32 %v5373, %v5374
        %v5376 = vsel %vm4288, %v5173, 0.0
        %v5377 = vrot.slane %v5376, 4
        %v5378 = vadd.f32 %v5376, %v5377
        %v5379 = vrot.slane %v5378, 2
        %v5380 = vadd.f32 %v5378, %v5379
        %v5381 = vrot.slane %v5380, 1
        %v5382 = vadd.f32 %v5380, %v5381
        %v5383 = vsel %vm4288, %v5174, 0.0
        %v5384 = vrot.slane %v5383, 4
        %v5385 = vadd.f32 %v5383, %v5384
        %v5386 = vrot.slane %v5385, 2
        %v5387 = vadd.f32 %v5385, %v5386
        %v5388 = vrot.slane %v5387, 1
        %v5389 = vadd.f32 %v5387, %v5388
        %v5390 = vsel %vm4288, %v5175, 0.0
        %v5391 = vrot.slane %v5390, 4
        %v5392 = vadd.f32 %v5390, %v5391
        %v5393 = vrot.slane %v5392, 2
        %v5394 = vadd.f32 %v5392, %v5393
        %v5395 = vrot.slane %v5394, 1
        %v5396 = vadd.f32 %v5394, %v5395
        %v5397 = vsel %vm4288, %v5134, 0.0
        %v5398 = vrot.slane %v5397, 4
        %v5399 = vadd.f32 %v5397, %v5398
        %v5400 = vrot.slane %v5399, 2
        %v5401 = vadd.f32 %v5399, %v5400
        %v5402 = vrot.slane %v5401, 1
        %v5403 = vadd.f32 %v5401, %v5402
        %v5404 = vsel %vm4288, %v5176, 0.0
        %v5405 = vrot.slane %v5404, 4
        %v5406 = vadd.f32 %v5404, %v5405
        %v5407 = vrot.slane %v5406, 2
        %v5408 = vadd.f32 %v5406, %v5407
        %v5409 = vrot.slane %v5408, 1
        %v5410 = vadd.f32 %v5408, %v5409
        %v5411 = vsel %vm4288, %v5177, 0.0
        %v5412 = vrot.slane %v5411, 4
        %v5413 = vadd.f32 %v5411, %v5412
        %v5414 = vrot.slane %v5413, 2
        %v5415 = vadd.f32 %v5413, %v5414
        %v5416 = vrot.slane %v5415, 1
        %v5417 = vadd.f32 %v5415, %v5416
        %v5418 = vsel %vm4288, %v5178, 0.0
        %v5419 = vrot.slane %v5418, 4
        %v5420 = vadd.f32 %v5418, %v5419
        %v5421 = vrot.slane %v5420, 2
        %v5422 = vadd.f32 %v5420, %v5421
        %v5423 = vrot.slane %v5422, 1
        %v5424 = vadd.f32 %v5422, %v5423
        %v5425 = vsel %vm4288, %v5135, 0.0
        %v5426 = vrot.slane %v5425, 4
        %v5427 = vadd.f32 %v5425, %v5426
        %v5428 = vrot.slane %v5427, 2
        %v5429 = vadd.f32 %v5427, %v5428
        %v5430 = vrot.slane %v5429, 1
        %v5431 = vadd.f32 %v5429, %v5430
        %v5432 = vsel %vm4288, %v5179, 0.0
        %v5433 = vrot.slane %v5432, 4
        %v5434 = vadd.f32 %v5432, %v5433
        %v5435 = vrot.slane %v5434, 2
        %v5436 = vadd.f32 %v5434, %v5435
        %v5437 = vrot.slane %v5436, 1
        %v5438 = vadd.f32 %v5436, %v5437
        %v5439 = vsel %vm4288, %v5180, 0.0
        %v5440 = vrot.slane %v5439, 4
        %v5441 = vadd.f32 %v5439, %v5440
        %v5442 = vrot.slane %v5441, 2
        %v5443 = vadd.f32 %v5441, %v5442
        %v5444 = vrot.slane %v5443, 1
        %v5445 = vadd.f32 %v5443, %v5444
        %v5446 = vsel %vm4288, %v5181, 0.0
        %v5447 = vrot.slane %v5446, 4
        %v5448 = vadd.f32 %v5446, %v5447
        %v5449 = vrot.slane %v5448, 2
        %v5450 = vadd.f32 %v5448, %v5449
        %v5451 = vrot.slane %v5450, 1
        %v5452 = vadd.f32 %v5450, %v5451
        %v5453 = vsel %vm4288, %v5136, 0.0
        %v5454 = vrot.slane %v5453, 4
        %v5455 = vadd.f32 %v5453, %v5454
        %v5456 = vrot.slane %v5455, 2
        %v5457 = vadd.f32 %v5455, %v5456
        %v5458 = vrot.slane %v5457, 1
        %v5459 = vadd.f32 %v5457, %v5458
        %v5460 = vsel %vm4288, %v5182, 0.0
        %v5461 = vrot.slane %v5460, 4
        %v5462 = vadd.f32 %v5460, %v5461
        %v5463 = vrot.slane %v5462, 2
        %v5464 = vadd.f32 %v5462, %v5463
        %v5465 = vrot.slane %v5464, 1
        %v5466 = vadd.f32 %v5464, %v5465
        %v5467 = vsel %vm4288, %v5183, 0.0
        %v5468 = vrot.slane %v5467, 4
        %v5469 = vadd.f32 %v5467, %v5468
        %v5470 = vrot.slane %v5469, 2
        %v5471 = vadd.f32 %v5469, %v5470
        %v5472 = vrot.slane %v5471, 1
        %v5473 = vadd.f32 %v5471, %v5472
        %v5474 = vsel %vm4288, %v5184, 0.0
        %v5475 = vrot.slane %v5474, 4
        %v5476 = vadd.f32 %v5474, %v5475
        %v5477 = vrot.slane %v5476, 2
        %v5478 = vadd.f32 %v5476, %v5477
        %v5479 = vrot.slane %v5478, 1
        %v5480 = vadd.f32 %v5478, %v5479
        %v5481 = vsel %vm4288, %v5137, 0.0
        %v5482 = vrot.slane %v5481, 4
        %v5483 = vadd.f32 %v5481, %v5482
        %v5484 = vrot.slane %v5483, 2
        %v5485 = vadd.f32 %v5483, %v5484
        %v5486 = vrot.slane %v5485, 1
        %v5487 = vadd.f32 %v5485, %v5486
        %v5488 = vsel %vm4288, %v5185, 0.0
        %v5489 = vrot.slane %v5488, 4
        %v5490 = vadd.f32 %v5488, %v5489
        %v5491 = vrot.slane %v5490, 2
        %v5492 = vadd.f32 %v5490, %v5491
        %v5493 = vrot.slane %v5492, 1
        %v5494 = vadd.f32 %v5492, %v5493
        %v5495 = vsel %vm4288, %v5186, 0.0
        %v5496 = vrot.slane %v5495, 4
        %v5497 = vadd.f32 %v5495, %v5496
        %v5498 = vrot.slane %v5497, 2
        %v5499 = vadd.f32 %v5497, %v5498
        %v5500 = vrot.slane %v5499, 1
        %v5501 = vadd.f32 %v5499, %v5500
        %v5502 = vsel %vm4288, %v5187, 0.0
        %v5503 = vrot.slane %v5502, 4
        %v5504 = vadd.f32 %v5502, %v5503
        %v5505 = vrot.slane %v5504, 2
        %v5506 = vadd.f32 %v5504, %v5505
        %v5507 = vrot.slane %v5506, 1
        %v5508 = vadd.f32 %v5506, %v5507
        %v5509 = vsel %vm4288, %v5138, 0.0
        %v5510 = vrot.slane %v5509, 4
        %v5511 = vadd.f32 %v5509, %v5510
        %v5512 = vrot.slane %v5511, 2
        %v5513 = vadd.f32 %v5511, %v5512
        %v5514 = vrot.slane %v5513, 1
        %v5515 = vadd.f32 %v5513, %v5514
        %v5516 = vsel %vm4288, %v5188, 0.0
        %v5517 = vrot.slane %v5516, 4
        %v5518 = vadd.f32 %v5516, %v5517
        %v5519 = vrot.slane %v5518, 2
        %v5520 = vadd.f32 %v5518, %v5519
        %v5521 = vrot.slane %v5520, 1
        %v5522 = vadd.f32 %v5520, %v5521
        %v5523 = vsel %vm4288, %v5189, 0.0
        %v5524 = vrot.slane %v5523, 4
        %v5525 = vadd.f32 %v5523, %v5524
        %v5526 = vrot.slane %v5525, 2
        %v5527 = vadd.f32 %v5525, %v5526
        %v5528 = vrot.slane %v5527, 1
        %v5529 = vadd.f32 %v5527, %v5528
        %v5530 = vsel %vm4288, %v5190, 0.0
        %v5531 = vrot.slane %v5530, 4
        %v5532 = vadd.f32 %v5530, %v5531
        %v5533 = vrot.slane %v5532, 2
        %v5534 = vadd.f32 %v5532, %v5533
        %v5535 = vrot.slane %v5534, 1
        %v5536 = vadd.f32 %v5534, %v5535
        %v5537 = vsel %vm4288, %v5139, 0.0
        %v5538 = vrot.slane %v5537, 4
        %v5539 = vadd.f32 %v5537, %v5538
        %v5540 = vrot.slane %v5539, 2
        %v5541 = vadd.f32 %v5539, %v5540
        %v5542 = vrot.slane %v5541, 1
        %v5543 = vadd.f32 %v5541, %v5542
        %v5544 = vsel %vm4288, %v5191, 0.0
        %v5545 = vrot.slane %v5544, 4
        %v5546 = vadd.f32 %v5544, %v5545
        %v5547 = vrot.slane %v5546, 2
        %v5548 = vadd.f32 %v5546, %v5547
        %v5549 = vrot.slane %v5548, 1
        %v5550 = vadd.f32 %v5548, %v5549
        %v5551 = vsel %vm4288, %v5192, 0.0
        %v5552 = vrot.slane %v5551, 4
        %v5553 = vadd.f32 %v5551, %v5552
        %v5554 = vrot.slane %v5553, 2
        %v5555 = vadd.f32 %v5553, %v5554
        %v5556 = vrot.slane %v5555, 1
        %v5557 = vadd.f32 %v5555, %v5556
        %v5558 = vsel %vm4288, %v5193, 0.0
        %v5559 = vrot.slane %v5558, 4
        %v5560 = vadd.f32 %v5558, %v5559
        %v5561 = vrot.slane %v5560, 2
        %v5562 = vadd.f32 %v5560, %v5561
        %v5563 = vrot.slane %v5562, 1
        %v5564 = vadd.f32 %v5562, %v5563
        %v5565 = vsel %vm4288, %v5140, 0.0
        %v5566 = vrot.slane %v5565, 4
        %v5567 = vadd.f32 %v5565, %v5566
        %v5568 = vrot.slane %v5567, 2
        %v5569 = vadd.f32 %v5567, %v5568
        %v5570 = vrot.slane %v5569, 1
        %v5571 = vadd.f32 %v5569, %v5570
        %v5572 = vsel %vm4288, %v5194, 0.0
        %v5573 = vrot.slane %v5572, 4
        %v5574 = vadd.f32 %v5572, %v5573
        %v5575 = vrot.slane %v5574, 2
        %v5576 = vadd.f32 %v5574, %v5575
        %v5577 = vrot.slane %v5576, 1
        %v5578 = vadd.f32 %v5576, %v5577
        %v5579 = vsel %vm4288, %v5195, 0.0
        %v5580 = vrot.slane %v5579, 4
        %v5581 = vadd.f32 %v5579, %v5580
        %v5582 = vrot.slane %v5581, 2
        %v5583 = vadd.f32 %v5581, %v5582
        %v5584 = vrot.slane %v5583, 1
        %v5585 = vadd.f32 %v5583, %v5584
        %v5586 = vsel %vm4288, %v5196, 0.0
        %v5587 = vrot.slane %v5586, 4
        %v5588 = vadd.f32 %v5586, %v5587
        %v5589 = vrot.slane %v5588, 2
        %v5590 = vadd.f32 %v5588, %v5589
        %v5591 = vrot.slane %v5590, 1
        %v5592 = vadd.f32 %v5590, %v5591
        %v5593 = vsel %vm4288, %v5141, 0.0
        %v5594 = vrot.slane %v5593, 4
        %v5595 = vadd.f32 %v5593, %v5594
        %v5596 = vrot.slane %v5595, 2
        %v5597 = vadd.f32 %v5595, %v5596
        %v5598 = vrot.slane %v5597, 1
        %v5599 = vadd.f32 %v5597, %v5598
        %v5600 = vsel %vm4288, %v5197, 0.0
        %v5601 = vrot.slane %v5600, 4
        %v5602 = vadd.f32 %v5600, %v5601
        %v5603 = vrot.slane %v5602, 2
        %v5604 = vadd.f32 %v5602, %v5603
        %v5605 = vrot.slane %v5604, 1
        %v5606 = vadd.f32 %v5604, %v5605
        %v5607 = vsel %vm4288, %v5198, 0.0
        %v5608 = vrot.slane %v5607, 4
        %v5609 = vadd.f32 %v5607, %v5608
        %v5610 = vrot.slane %v5609, 2
        %v5611 = vadd.f32 %v5609, %v5610
        %v5612 = vrot.slane %v5611, 1
        %v5613 = vadd.f32 %v5611, %v5612
        %v5614 = vsel %vm4288, %v5199, 0.0
        %v5615 = vrot.slane %v5614, 4
        %v5616 = vadd.f32 %v5614, %v5615
        %v5617 = vrot.slane %v5616, 2
        %v5618 = vadd.f32 %v5616, %v5617
        %v5619 = vrot.slane %v5618, 1
        %v5620 = vadd.f32 %v5618, %v5619
        %v5621 = vsel %vm4288, %v5142, 0.0
        %v5622 = vrot.slane %v5621, 4
        %v5623 = vadd.f32 %v5621, %v5622
        %v5624 = vrot.slane %v5623, 2
        %v5625 = vadd.f32 %v5623, %v5624
        %v5626 = vrot.slane %v5625, 1
        %v5627 = vadd.f32 %v5625, %v5626
        %v5628 = vsel %vm4288, %v5200, 0.0
        %v5629 = vrot.slane %v5628, 4
        %v5630 = vadd.f32 %v5628, %v5629
        %v5631 = vrot.slane %v5630, 2
        %v5632 = vadd.f32 %v5630, %v5631
        %v5633 = vrot.slane %v5632, 1
        %v5634 = vadd.f32 %v5632, %v5633
        %v5635 = vsel %vm4288, %v5201, 0.0
        %v5636 = vrot.slane %v5635, 4
        %v5637 = vadd.f32 %v5635, %v5636
        %v5638 = vrot.slane %v5637, 2
        %v5639 = vadd.f32 %v5637, %v5638
        %v5640 = vrot.slane %v5639, 1
        %v5641 = vadd.f32 %v5639, %v5640
        %v5642 = vsel %vm4288, %v5202, 0.0
        %v5643 = vrot.slane %v5642, 4
        %v5644 = vadd.f32 %v5642, %v5643
        %v5645 = vrot.slane %v5644, 2
        %v5646 = vadd.f32 %v5644, %v5645
        %v5647 = vrot.slane %v5646, 1
        %v5648 = vadd.f32 %v5646, %v5647
        %v5649 = vsel %vm4288, %v5143, 0.0
        %v5650 = vrot.slane %v5649, 4
        %v5651 = vadd.f32 %v5649, %v5650
        %v5652 = vrot.slane %v5651, 2
        %v5653 = vadd.f32 %v5651, %v5652
        %v5654 = vrot.slane %v5653, 1
        %v5655 = vadd.f32 %v5653, %v5654
        %v5656 = vsel %vm4288, %v5203, 0.0
        %v5657 = vrot.slane %v5656, 4
        %v5658 = vadd.f32 %v5656, %v5657
        %v5659 = vrot.slane %v5658, 2
        %v5660 = vadd.f32 %v5658, %v5659
        %v5661 = vrot.slane %v5660, 1
        %v5662 = vadd.f32 %v5660, %v5661
        %v5663 = vsel %vm4288, %v5204, 0.0
        %v5664 = vrot.slane %v5663, 4
        %v5665 = vadd.f32 %v5663, %v5664
        %v5666 = vrot.slane %v5665, 2
        %v5667 = vadd.f32 %v5665, %v5666
        %v5668 = vrot.slane %v5667, 1
        %v5669 = vadd.f32 %v5667, %v5668
        %v5670 = vsel %vm4288, %v5205, 0.0
        %v5671 = vrot.slane %v5670, 4
        %v5672 = vadd.f32 %v5670, %v5671
        %v5673 = vrot.slane %v5672, 2
        %v5674 = vadd.f32 %v5672, %v5673
        %v5675 = vrot.slane %v5674, 1
        %v5676 = vadd.f32 %v5674, %v5675
        %v5677 = vsel %vm4288, %v5144, 0.0
        %v5678 = vrot.slane %v5677, 4
        %v5679 = vadd.f32 %v5677, %v5678
        %v5680 = vrot.slane %v5679, 2
        %v5681 = vadd.f32 %v5679, %v5680
        %v5682 = vrot.slane %v5681, 1
        %v5683 = vadd.f32 %v5681, %v5682
        %v5684 = vsel %vm4288, %v5206, 0.0
        %v5685 = vrot.slane %v5684, 4
        %v5686 = vadd.f32 %v5684, %v5685
        %v5687 = vrot.slane %v5686, 2
        %v5688 = vadd.f32 %v5686, %v5687
        %v5689 = vrot.slane %v5688, 1
        %v5690 = vadd.f32 %v5688, %v5689
        %v5691 = vsel %vm4288, %v5207, 0.0
        %v5692 = vrot.slane %v5691, 4
        %v5693 = vadd.f32 %v5691, %v5692
        %v5694 = vrot.slane %v5693, 2
        %v5695 = vadd.f32 %v5693, %v5694
        %v5696 = vrot.slane %v5695, 1
        %v5697 = vadd.f32 %v5695, %v5696
        %v5698 = vsel %vm4288, %v5208, 0.0
        %v5699 = vrot.slane %v5698, 4
        %v5700 = vadd.f32 %v5698, %v5699
        %v5701 = vrot.slane %v5700, 2
        %v5702 = vadd.f32 %v5700, %v5701
        %v5703 = vrot.slane %v5702, 1
        %v5704 = vadd.f32 %v5702, %v5703
        %v5705 = vpack.c.bf16 %v5263, %v5263
        %v5706 = vpack.c.bf16 %v5270, %v5270
        %v5707 = vpack.c.bf16 %v5277, %v5277
        %v5708 = vpack.c.bf16 %v5284, %v5284
        %v5709 = vpack.c.bf16 %v5291, %v5291
        %v5710 = vpack.c.bf16 %v5298, %v5298
        %v5711 = vpack.c.bf16 %v5305, %v5305
        %v5712 = vpack.c.bf16 %v5312, %v5312
        %v5713 = vpack.c.bf16 %v5319, %v5319
        %v5714 = vpack.c.bf16 %v5326, %v5326
        %v5715 = vpack.c.bf16 %v5333, %v5333
        %v5716 = vpack.c.bf16 %v5340, %v5340
        %v5717 = vpack.c.bf16 %v5347, %v5347
        %v5718 = vpack.c.bf16 %v5354, %v5354
        %v5719 = vpack.c.bf16 %v5361, %v5361
        %v5720 = vpack.c.bf16 %v5368, %v5368
        %v5721 = vpack.c.bf16 %v5375, %v5375
        %v5722 = vpack.c.bf16 %v5382, %v5382
        %v5723 = vpack.c.bf16 %v5389, %v5389
        %v5724 = vpack.c.bf16 %v5396, %v5396
        %v5725 = vpack.c.bf16 %v5403, %v5403
        %v5726 = vpack.c.bf16 %v5410, %v5410
        %v5727 = vpack.c.bf16 %v5417, %v5417
        %v5728 = vpack.c.bf16 %v5424, %v5424
        %v5729 = vpack.c.bf16 %v5431, %v5431
        %v5730 = vpack.c.bf16 %v5438, %v5438
        %v5731 = vpack.c.bf16 %v5445, %v5445
        %v5732 = vpack.c.bf16 %v5452, %v5452
        %v5733 = vpack.c.bf16 %v5459, %v5459
        %v5734 = vpack.c.bf16 %v5466, %v5466
        %v5735 = vpack.c.bf16 %v5473, %v5473
        %v5736 = vpack.c.bf16 %v5480, %v5480
        %v5737 = vpack.c.bf16 %v5487, %v5487
        %v5738 = vpack.c.bf16 %v5494, %v5494
        %v5739 = vpack.c.bf16 %v5501, %v5501
        %v5740 = vpack.c.bf16 %v5508, %v5508
        %v5741 = vpack.c.bf16 %v5515, %v5515
        %v5742 = vpack.c.bf16 %v5522, %v5522
        %v5743 = vpack.c.bf16 %v5529, %v5529
        %v5744 = vpack.c.bf16 %v5536, %v5536
        %v5745 = vpack.c.bf16 %v5543, %v5543
        %v5746 = vpack.c.bf16 %v5550, %v5550
        %v5747 = vpack.c.bf16 %v5557, %v5557
        %v5748 = vpack.c.bf16 %v5564, %v5564
        %v5749 = vpack.c.bf16 %v5571, %v5571
        %v5750 = vpack.c.bf16 %v5578, %v5578
        %v5751 = vpack.c.bf16 %v5585, %v5585
        %v5752 = vpack.c.bf16 %v5592, %v5592
        %v5753 = vpack.c.bf16 %v5599, %v5599
        %v5754 = vpack.c.bf16 %v5606, %v5606
        %v5755 = vpack.c.bf16 %v5613, %v5613
        %v5756 = vpack.c.bf16 %v5620, %v5620
        %v5757 = vpack.c.bf16 %v5627, %v5627
        %v5758 = vpack.c.bf16 %v5634, %v5634
        %v5759 = vpack.c.bf16 %v5641, %v5641
        %v5760 = vpack.c.bf16 %v5648, %v5648
        %v5761 = vpack.c.bf16 %v5655, %v5655
        %v5762 = vpack.c.bf16 %v5662, %v5662
        %v5763 = vpack.c.bf16 %v5669, %v5669
        %v5764 = vpack.c.bf16 %v5676, %v5676
        %v5765 = vpack.c.bf16 %v5683, %v5683
        %v5766 = vpack.c.bf16 %v5690, %v5690
        %v5767 = vpack.c.bf16 %v5697, %v5697
        %v5768 = vpack.c.bf16 %v5704, %v5704
        %v5769 = vld [vmem:[#allocation10] sm:$0xf]
        %v5770 = vld [vmem:[#allocation10 + $0x4] sm:$0xf]
        %v5771 = vld [vmem:[#allocation10 + $0x8] sm:$0xf]
        %v5772 = vld [vmem:[#allocation10 + $0xc] sm:$0xf]
        %v5773 = vld [vmem:[#allocation10 + $0x10] sm:$0xf]
        %v5774 = vld [vmem:[#allocation10 + $0x14] sm:$0xf]
        %v5775 = vld [vmem:[#allocation10 + $0x18] sm:$0xf]
        %v5776 = vld [vmem:[#allocation10 + $0x1c] sm:$0xf]
        %v5777 = vld [vmem:[#allocation10 + $0x20] sm:$0xf]
        %v5778 = vld [vmem:[#allocation10 + $0x24] sm:$0xf]
        %v5779 = vld [vmem:[#allocation10 + $0x28] sm:$0xf]
        %v5780 = vld [vmem:[#allocation10 + $0x2c] sm:$0xf]
        %v5781 = vld [vmem:[#allocation10 + $0x30] sm:$0xf]
        %v5782 = vld [vmem:[#allocation10 + $0x34] sm:$0xf]
        %v5783 = vld [vmem:[#allocation10 + $0x38] sm:$0xf]
        %v5784 = vld [vmem:[#allocation10 + $0x3c] sm:$0xf]
        %v5785 = vld [vmem:[%s8] sm:$0x1]
        %v5787 = vperm.slane %v5785, 0
        %v5853 = vunpack.c.l.b16 %v5705
        %v5854 = vunpack.c.l.b16 %v5706
        %v5855 = vunpack.c.l.b16 %v5707
        %v5856 = vunpack.c.l.b16 %v5708
        %v5857 = vunpack.c.l.b16 %v5709
        %v5858 = vunpack.c.l.b16 %v5710
        %v5859 = vunpack.c.l.b16 %v5711
        %v5860 = vunpack.c.l.b16 %v5712
        %v5861 = vunpack.c.l.b16 %v5713
        %v5862 = vunpack.c.l.b16 %v5714
        %v5863 = vunpack.c.l.b16 %v5715
        %v5864 = vunpack.c.l.b16 %v5716
        %v5865 = vunpack.c.l.b16 %v5717
        %v5866 = vunpack.c.l.b16 %v5718
        %v5867 = vunpack.c.l.b16 %v5719
        %v5868 = vunpack.c.l.b16 %v5720
        %v5869 = vunpack.c.l.b16 %v5721
        %v5870 = vunpack.c.l.b16 %v5722
        %v5871 = vunpack.c.l.b16 %v5723
        %v5872 = vunpack.c.l.b16 %v5724
        %v5873 = vunpack.c.l.b16 %v5725
        %v5874 = vunpack.c.l.b16 %v5726
        %v5875 = vunpack.c.l.b16 %v5727
        %v5876 = vunpack.c.l.b16 %v5728
        %v5877 = vunpack.c.l.b16 %v5729
        %v5878 = vunpack.c.l.b16 %v5730
        %v5879 = vunpack.c.l.b16 %v5731
        %v5880 = vunpack.c.l.b16 %v5732
        %v5881 = vunpack.c.l.b16 %v5733
        %v5882 = vunpack.c.l.b16 %v5734
        %v5883 = vunpack.c.l.b16 %v5735
        %v5884 = vunpack.c.l.b16 %v5736
        %v5885 = vunpack.c.l.b16 %v5737
        %v5886 = vunpack.c.l.b16 %v5738
        %v5887 = vunpack.c.l.b16 %v5739
        %v5888 = vunpack.c.l.b16 %v5740
        %v5889 = vunpack.c.l.b16 %v5741
        %v5890 = vunpack.c.l.b16 %v5742
        %v5891 = vunpack.c.l.b16 %v5743
        %v5892 = vunpack.c.l.b16 %v5744
        %v5893 = vunpack.c.l.b16 %v5745
        %v5894 = vunpack.c.l.b16 %v5746
        %v5895 = vunpack.c.l.b16 %v5747
        %v5896 = vunpack.c.l.b16 %v5748
        %v5897 = vunpack.c.l.b16 %v5749
        %v5898 = vunpack.c.l.b16 %v5750
        %v5899 = vunpack.c.l.b16 %v5751
        %v5900 = vunpack.c.l.b16 %v5752
        %v5901 = vunpack.c.l.b16 %v5753
        %v5902 = vunpack.c.l.b16 %v5754
        %v5903 = vunpack.c.l.b16 %v5755
        %v5904 = vunpack.c.l.b16 %v5756
        %v5905 = vunpack.c.l.b16 %v5757
        %v5906 = vunpack.c.l.b16 %v5758
        %v5907 = vunpack.c.l.b16 %v5759
        %v5908 = vunpack.c.l.b16 %v5760
        %v5909 = vunpack.c.l.b16 %v5761
        %v5910 = vunpack.c.l.b16 %v5762
        %v5911 = vunpack.c.l.b16 %v5763
        %v5912 = vunpack.c.l.b16 %v5764
        %v5913 = vunpack.c.l.b16 %v5765
        %v5914 = vunpack.c.l.b16 %v5766
        %v5915 = vunpack.c.l.b16 %v5767
        %v5916 = vunpack.c.l.b16 %v5768
        %v5917 = vsel %vm4949, %v5854, %v5853
        %v5918 = vsel %vm4951, %v5855, %v5917
        %v5919 = vsel %vm4953, %v5856, %v5918
        %v5920 = vsel %vm4955, %v5857, %v5919
        %v5921 = vsel %vm4957, %v5858, %v5920
        %v5922 = vsel %vm4959, %v5859, %v5921
        %v5923 = vsel %vm4961, %v5860, %v5922
        %v5924 = vsel %vm4949, %v5862, %v5861
        %v5925 = vsel %vm4951, %v5863, %v5924
        %v5926 = vsel %vm4953, %v5864, %v5925
        %v5927 = vsel %vm4955, %v5865, %v5926
        %v5928 = vsel %vm4957, %v5866, %v5927
        %v5929 = vsel %vm4959, %v5867, %v5928
        %v5930 = vsel %vm4961, %v5868, %v5929
        %v5931 = vsel %vm4949, %v5870, %v5869
        %v5932 = vsel %vm4951, %v5871, %v5931
        %v5933 = vsel %vm4953, %v5872, %v5932
        %v5934 = vsel %vm4955, %v5873, %v5933
        %v5935 = vsel %vm4957, %v5874, %v5934
        %v5936 = vsel %vm4959, %v5875, %v5935
        %v5937 = vsel %vm4961, %v5876, %v5936
        %v5938 = vsel %vm4949, %v5878, %v5877
        %v5939 = vsel %vm4951, %v5879, %v5938
        %v5940 = vsel %vm4953, %v5880, %v5939
        %v5941 = vsel %vm4955, %v5881, %v5940
        %v5942 = vsel %vm4957, %v5882, %v5941
        %v5943 = vsel %vm4959, %v5883, %v5942
        %v5944 = vsel %vm4961, %v5884, %v5943
        %v5945 = vsel %vm4949, %v5886, %v5885
        %v5946 = vsel %vm4951, %v5887, %v5945
        %v5947 = vsel %vm4953, %v5888, %v5946
        %v5948 = vsel %vm4955, %v5889, %v5947
        %v5949 = vsel %vm4957, %v5890, %v5948
        %v5950 = vsel %vm4959, %v5891, %v5949
        %v5951 = vsel %vm4961, %v5892, %v5950
        %v5952 = vsel %vm4949, %v5894, %v5893
        %v5953 = vsel %vm4951, %v5895, %v5952
        %v5954 = vsel %vm4953, %v5896, %v5953
        %v5955 = vsel %vm4955, %v5897, %v5954
        %v5956 = vsel %vm4957, %v5898, %v5955
        %v5957 = vsel %vm4959, %v5899, %v5956
        %v5958 = vsel %vm4961, %v5900, %v5957
        %v5959 = vsel %vm4949, %v5902, %v5901
        %v5960 = vsel %vm4951, %v5903, %v5959
        %v5961 = vsel %vm4953, %v5904, %v5960
        %v5962 = vsel %vm4955, %v5905, %v5961
        %v5963 = vsel %vm4957, %v5906, %v5962
        %v5964 = vsel %vm4959, %v5907, %v5963
        %v5965 = vsel %vm4961, %v5908, %v5964
        %v5966 = vsel %vm4949, %v5910, %v5909
        %v5967 = vsel %vm4951, %v5911, %v5966
        %v5968 = vsel %vm4953, %v5912, %v5967
        %v5969 = vsel %vm4955, %v5913, %v5968
        %v5970 = vsel %vm4957, %v5914, %v5969
        %v5971 = vsel %vm4959, %v5915, %v5970
        %v5972 = vsel %vm4961, %v5916, %v5971
        %v5973 = vpack.c.b16 %v5930, %v5923
        %v5974 = vpack.c.b16 %v5944, %v5937
        %v5975 = vpack.c.b16 %v5958, %v5951
        %v5976 = vpack.c.b16 %v5972, %v5965
        %v5997 = vunpack.c.l.b16 %v5769
        %v5998 = vunpack.c.l.b16 %v5770
        %v5999 = vunpack.c.l.b16 %v5771
        %v6000 = vunpack.c.l.b16 %v5772
        %v6001 = vunpack.c.l.b16 %v5773
        %v6002 = vunpack.c.l.b16 %v5774
        %v6003 = vunpack.c.l.b16 %v5775
        %v6004 = vunpack.c.l.b16 %v5776
        %v6005 = vunpack.c.l.b16 %v5777
        %v6006 = vunpack.c.l.b16 %v5778
        %v6007 = vunpack.c.l.b16 %v5779
        %v6008 = vunpack.c.l.b16 %v5780
        %v6009 = vunpack.c.l.b16 %v5781
        %v6010 = vunpack.c.l.b16 %v5782
        %v6011 = vunpack.c.l.b16 %v5783
        %v6012 = vunpack.c.l.b16 %v5784
        %v6013 = vpack.c.b16 %v5998, %v5997
        %v6014 = vpack.c.b16 %v6000, %v5999
        %v6015 = vpack.c.b16 %v6002, %v6001
        %v6016 = vpack.c.b16 %v6004, %v6003
        %v6017 = vpack.c.b16 %v6006, %v6005
        %v6018 = vpack.c.b16 %v6008, %v6007
        %v6019 = vpack.c.b16 %v6010, %v6009
        %v6020 = vpack.c.b16 %v6012, %v6011
        %6029 = vmatpush.bf16.msra.mxu0 %v6020
        %6030 = vmatpush.bf16.msra.mxu0 %v6019
        %6031 = vmatpush.bf16.msra.mxu0 %v6018
        %6032 = vmatpush.bf16.msra.mxu0 %v6017
        %6033 = vmatpush.bf16.msra.mxu0 %v6016
        %6034 = vmatpush.bf16.msra.mxu0 %v6015
        %6035 = vmatpush.bf16.msra.mxu0 %v6014
        %6036 = vmatpush.bf16.msra.mxu0 %v6013
        %6037 = vmatmul.bf16.gmra.mxu0 %v5973
        %v6038 = vpop.f32.mrf.mxu0
        %v6039 = vadd.f32 %v5787, %v6038
        %v6040 = vpop.f32.mrf.mxu0
        %v6041 = vadd.f32 %v5787, %v6040
        %6042 = vmatmul.bf16.gmra.mxu0 %v5974
        %v6043 = vpop.f32.mrf.mxu0
        %v6044 = vadd.f32 %v5787, %v6043
        %v6045 = vpop.f32.mrf.mxu0
        %v6046 = vadd.f32 %v5787, %v6045
        %6047 = vmatmul.bf16.gmra.mxu0 %v5975
        %v6048 = vpop.f32.mrf.mxu0
        %v6049 = vadd.f32 %v5787, %v6048
        %v6050 = vpop.f32.mrf.mxu0
        %v6051 = vadd.f32 %v5787, %v6050
        %6052 = vmatmul.bf16.gmra.mxu0 %v5976
        %v6053 = vpop.f32.mrf.mxu0
        %v6054 = vadd.f32 %v5787, %v6053
        %v6055 = vpop.f32.mrf.mxu0
        %v6056 = vadd.f32 %v5787, %v6055
        %6057 = vdwg.mxu0
        %v6058 = vadd.f32 %v5078, %v6039
        %v6059 = vadd.f32 %v5080, %v6041
        %v6060 = vadd.f32 %v5083, %v6044
        %v6061 = vadd.f32 %v5085, %v6046
        %v6062 = vadd.f32 %v5088, %v6049
        %v6063 = vadd.f32 %v5090, %v6051
        %v6064 = vadd.f32 %v5093, %v6054
        %v6065 = vadd.f32 %v5095, %v6056
        %v6066 = vmax.f32 %v6058, 0.0
        %v6067 = vmax.f32 %v6059, 0.0
        %v6068 = vmax.f32 %v6060, 0.0
        %v6069 = vmax.f32 %v6061, 0.0
        %v6070 = vmax.f32 %v6062, 0.0
        %v6071 = vmax.f32 %v6063, 0.0
        %v6072 = vmax.f32 %v6064, 0.0
        %v6073 = vmax.f32 %v6065, 0.0
        %v6074 = vpack.c.bf16 %v6066, %v6066
        %v6075 = vpack.c.bf16 %v6067, %v6067
        %v6076 = vpack.c.bf16 %v6068, %v6068
        %v6077 = vpack.c.bf16 %v6069, %v6069
        %v6078 = vpack.c.bf16 %v6070, %v6070
        %v6079 = vpack.c.bf16 %v6071, %v6071
        %v6080 = vpack.c.bf16 %v6072, %v6072
        %v6081 = vpack.c.bf16 %v6073, %v6073
        %6082 = vst [vmem:[%s418] sm:$0xf] %v6074
        %6083 = vst [vmem:[%s418 + $0x4] sm:$0xf] %v6075
        %6084 = vst [vmem:[%s418 + $0x8] sm:$0xf] %v6076
        %6085 = vst [vmem:[%s418 + $0xc] sm:$0xf] %v6077
        %6086 = vst [vmem:[%s418 + $0x10] sm:$0xf] %v6078
        %6087 = vst [vmem:[%s418 + $0x14] sm:$0xf] %v6079
        %6088 = vst [vmem:[%s418 + $0x18] sm:$0xf] %v6080
        %6089 = vst [vmem:[%s418 + $0x1c] sm:$0xf] %v6081
        %s6090 = sand.u32 %s230, 1
        %s6091 = scalar_lea.sflag [#allocation4], %s6090
        %s6092 = sand.u32 %s230, 1
        %s6093 = smul.addr %s6092, 32
        %s6094 = scalar_lea.vmem [#allocation11], %s6093
        // Predicated region
        $region77: #{tpu_custom_call.1} parent=55 // pred_check
          %p6095 = pneg %p240
        $region78: #{tpu_custom_call.1} parent=55 // pred_check_branch
          %6097 = sbr.rel (%p6095) target = $region80
        $region79: #{tpu_custom_call.1} parent=55 // pred_region
          %6099 = vsyncadd %s6091, 0
          %s6100 = smul.addr %s28, 8
          %s6101 = smul.addr %s6100, 4
          %s6102 = scalar_lea.hbm %s9, %s6101
          %s6103 = sshll.u32 %s6094, 4
          %s6104 = int_to_ptr.vmem [resolvable:$true] %s6103
          %s6105 = sshll.u32 %s6102, 4
          %s6106 = int_to_ptr.hbm [resolvable:$true] %s6105
          %6111 = dma.vmem_to_hbm [thread:$0]  %s6104, 512, %s6106, %s6091, 64, 64, 4
        $region80: #{tpu_custom_call.1} parent=55 // pred_fallthru
          _
      $region56: #{tpu_custom_call.1} parent=5 // pred_fallthru
        _
      %p6112 = scmp.le.s32.totalorder 2, %s23
      // Predicated region
      $region81: #{tpu_custom_call.1} parent=5 // pred_check
        %p6113 = pneg %p6112
      $region82: #{tpu_custom_call.1} parent=5 // pred_check_branch
        %6115 = sbr.rel (%p6113) target = $region84
      $region83: #{tpu_custom_call.1} parent=5 // pred_region
        %s6116 = ssub.s32 %s23, 2
        // Predicated region
        $region85: #{tpu_custom_call.1} parent=83 // pred_check
          %p6117 = pneg %p246
        $region86: #{tpu_custom_call.1} parent=83 // pred_check_branch
          %6119 = sbr.rel (%p6117) target = $region88
        $region87: #{tpu_custom_call.1} parent=83 // pred_region
          %s6120 = sand.u32 %s231, 1
          %s6121 = scalar_lea.sflag [#allocation4], %s6120
          %s6122 = sand.u32 %s231, 1
          %s6123 = smul.addr %s6122, 32
          %s6124 = scalar_lea.vmem [#allocation11], %s6123
          %6126 = dma.done %s6121, 512
        $region88: #{tpu_custom_call.1} parent=83 // pred_fallthru
          _
      $region84: #{tpu_custom_call.1} parent=5 // pred_fallthru
        _
    $region6: #{tpu_custom_call.1} parent=1 // loop_footer
      %s27 = sadd.s32 1, %s23
    $region7: #{tpu_custom_call.1} parent=1 // loop_footer_branch
      %22 = sbr.rel target = $region3
    $region8: #{tpu_custom_call.1} parent=1 // loop_exit
      _
    %6127 = vsyncpa [#allocation3], 1
    %s6128 = scalar_lea.sflag [#allocation3], 1
    %6129 = vsyncpa %s6128, 1
    %6130 = vsyncpa [#allocation6], 1
    %6131 = vsyncpa [#allocation9], 1
    %6132 = vsyncpa [#allocation4], 1
    %s6133 = scalar_lea.sflag [#allocation4], 1
    %6134 = vsyncpa %s6133, 1

</llo_original>
